<compile_context>
chip_gen: v6e
topology: v6e:2x2x1
jax: 0.10.0
libtpu: 0.0.40
codegen_flags: <defaults>
</compile_context>

<pallas_src>
import math
from functools import partial

import jax
import jax.numpy as jnp
from jax import lax
from jax.experimental import pallas as pl
from jax.experimental.pallas import tpu as pltpu

LN_EPS = 1e-5  # nn.LayerNorm default


# ---------------------------------------------------------------------------
# In-kernel math helpers (traced inside the Pallas kernel body)
# ---------------------------------------------------------------------------
def _layernorm(x, g, b):
    mu = jnp.mean(x, axis=-1, keepdims=True)
    var = jnp.mean(jnp.square(x - mu), axis=-1, keepdims=True)
    return (x - mu) * lax.rsqrt(var + LN_EPS) * g + b


def _gelu_tanh(x):
    # TODO(synk): PyTorch nn.GELU() default is exact erf; tanh approximation differs
    # by < ~3e-3 per element (EUP tanh instead of a long VPU erf polynomial).
    c = 0.7978845608028654  # sqrt(2/pi)
    return 0.5 * x * (1.0 + jnp.tanh(c * (x + 0.044715 * x * x * x)))


def _attention(q_src, kv_src, wq_ref, bq_ref, wkv_ref, bkv_ref, wo_ref, bo_ref,
               *, tb, sq, sk, num_heads, causal):
    """Multi-head attention over a fused (tb*sq, E) row-slab.

    Weight layout (prepared once in the wrapper):
        wq : (E, E)  bf16, pre-scaled by 1/sqrt(d)     bq : (1, E)  f32 (pre-scaled)
        wkv: (E, 2E) bf16  (wk | wv fused)             bkv: (1, 2E) f32
        wo : (E, E)  bf16                              bo : (1, E)  f32
    All projections are full-width MXU dots (bf16 operands, f32 accumulation);
    heads are split from the lane-dense (M, E) results, and the per-head outputs
    are reassembled into a lane-dense (M, E) slab for a single K=E out-projection.
    """
    e = wq_ref.shape[0]
    d = e // num_heads

    q_in = q_src.astype(jnp.bfloat16)     # (tb*sq, E)
    kv_in = kv_src.astype(jnp.bfloat16)   # (tb*sk, E)

    # Full-width projections: N = E (q) and N = 2E (fused k|v).
    q = (jnp.dot(q_in, wq_ref[...], preferred_element_type=jnp.float32)
         + bq_ref[...]).astype(jnp.bfloat16)                          # (tb*sq, E), pre-scaled
    kv = jnp.dot(kv_in, wkv_ref[...], preferred_element_type=jnp.float32) + bkv_ref[...]
    k = kv[:, :e].astype(jnp.bfloat16)                                # (tb*sk, E)
    v = kv[:, e:].astype(jnp.bfloat16)                                # (tb*sk, E)

    q3 = q.reshape(tb, sq, e)
    k3 = k.reshape(tb, sk, e)
    v3 = v.reshape(tb, sk, e)

    if causal:
        rows = lax.broadcasted_iota(jnp.int32, (sq, sk), 0)
        cols = lax.broadcasted_iota(jnp.int32, (sq, sk), 1)
        # NOTE: valid because sq == sk for self-attention here; a KV cache longer
        # than the query block would need an index offset.
        neg = (cols > rows)[None, :, :]

    # TODO(synk): for very long Sk, switch to a flash-style key-blocked online
    # softmax so score/intermediate VMEM is O(sq * block_k) instead of O(sq * Sk).
    o_heads = []
    for h in range(num_heads):            # static, small
        lo = h * d
        qh = q3[:, :, lo:lo + d]          # (tb, sq, d)
        kh = k3[:, :, lo:lo + d]          # (tb, sk, d)
        vh = v3[:, :, lo:lo + d]          # (tb, sk, d)
        s = jnp.einsum("bqd,bkd->bqk", qh, kh, preferred_element_type=jnp.float32)
        if causal:
            s = jnp.where(neg, -jnp.inf, s)
        m = jnp.max(s, axis=-1, keepdims=True)
        ex = jnp.exp(s - m)
        p = ex * pl.reciprocal(jnp.sum(ex, axis=-1, keepdims=True), approx=True)
        o_heads.append(jnp.einsum("bqk,bkd->bqd", p.astype(jnp.bfloat16), vh,
                                  preferred_element_type=jnp.float32))

    # Lane-dense (M, E) slab of per-head outputs -> single out-projection with K = E.
    o = jnp.concatenate(o_heads, axis=-1).reshape(tb * sq, e)
    return (jnp.dot(o.astype(jnp.bfloat16), wo_ref[...],
                    preferred_element_type=jnp.float32) + bo_ref[...])


# ---------------------------------------------------------------------------
# Pallas kernel: one block of batch rows per grid step
# ---------------------------------------------------------------------------
def _decoder_block_kernel(
    x_ref, skip_ref,
    n1g_ref, n1b_ref, n2g_ref, n2b_ref, n3g_ref, n3b_ref,
    a1wq_ref, a1bq_ref, a1wkv_ref, a1bkv_ref, a1wo_ref, a1bo_ref,
    a2wq_ref, a2bq_ref, a2wkv_ref, a2bkv_ref, a2wo_ref, a2bo_ref,
    w1_ref, b1_ref, w2_ref, b2_ref,
    out_ref,
    *, num_heads, streaming,
):
    tb, s, e = x_ref.shape
    sk = skip_ref.shape[1]

    x = x_ref[...].astype(jnp.float32).reshape(tb * s, e)   # residual base in f32
    skip = skip_ref[...].reshape(tb * sk, e)                # stays bf16 (attention casts)

    # --- self attention (causal mask only when streaming) ---
    h = _layernorm(x, n1g_ref[...], n1b_ref[...])
    h = _attention(h, h, a1wq_ref, a1bq_ref, a1wkv_ref, a1bkv_ref, a1wo_ref, a1bo_ref,
                   tb=tb, sq=s, sk=s, num_heads=num_heads, causal=streaming)
    x = x + h

    # --- cross attention with skip ---
    h = _layernorm(x, n2g_ref[...], n2b_ref[...])
    h = _attention(h, skip, a2wq_ref, a2bq_ref, a2wkv_ref, a2bkv_ref, a2wo_ref, a2bo_ref,
                   tb=tb, sq=s, sk=sk, num_heads=num_heads, causal=False)
    x = x + h

    # --- feed forward (bf16 operands, f32 accumulation) ---
    # TODO(synk): for large E, K-block w1/w2 via pltpu.emit_pipeline (or an extra
    # "arbitrary" grid axis) so the FFN weights need not be fully resident (v7x 64 MiB).
    h = _layernorm(x, n3g_ref[...], n3b_ref[...])
    h1 = jnp.dot(h.astype(jnp.bfloat16), w1_ref[...],
                 preferred_element_type=jnp.float32) + b1_ref[...]
    h1 = _gelu_tanh(h1)
    h2 = jnp.dot(h1.astype(jnp.bfloat16), w2_ref[...],
                 preferred_element_type=jnp.float32) + b2_ref[...]

    out_ref[...] = (x + h2).reshape(tb, s, e).astype(out_ref.dtype)


# ---------------------------------------------------------------------------
# Wrapper-side helpers
# ---------------------------------------------------------------------------
def _tpu_kind():
    try:
        return jax.devices()[0].device_kind.lower()
    except Exception:
        return ""


def _vmem_capacity_bytes(default):
    try:
        return int(pltpu.get_tpu_info().vmem_capacity_bytes)
    except Exception:
        return default


def prepare_decoder_weights(params, hidden_dim, num_heads):
    """One-time weight preprocessing (hoisted out of the per-call path):
    bf16 weight casts, 1/sqrt(d) folded into wq/bq, wk|wv fused into (E, 2E)."""
    E = hidden_dim
    assert E % num_heads == 0, "hidden_dim must be divisible by num_heads"
    d = E // num_heads
    scale = 1.0 / math.sqrt(d)
    f32, bf16 = jnp.float32, jnp.bfloat16
    p = {k: jnp.asarray(v, f32) for k, v in params.items()}

    def attn_pack(a):
        return [
            (p[f"{a}wq"] * scale).astype(bf16),                               # (E, E)
            p[f"{a}bq"] * scale,                                              # (1, E)
            jnp.concatenate([p[f"{a}wk"], p[f"{a}wv"]], axis=1).astype(bf16), # (E, 2E)
            jnp.concatenate([p[f"{a}bk"], p[f"{a}bv"]], axis=1),              # (1, 2E)
            p[f"{a}wo"].astype(bf16),                                         # (E, E)
            p[f"{a}bo"],                                                      # (1, E)
        ]

    weights = [p["n1g"], p["n1b"], p["n2g"], p["n2b"], p["n3g"], p["n3b"]]
    weights += attn_pack("a1") + attn_pack("a2")
    weights += [p["w1"].astype(bf16), p["b1"], p["w2"].astype(bf16), p["b2"]]
    # TODO(synk): on v7x, fp8 weight storage (+ per-tensor scales) would halve resident
    # weight VMEM again; left opt-in pending accuracy validation.
    return tuple(weights)


def _pick_block_b(B, S, kind):
    # Target M = block_b*S ~ MXU M dimension (256 on v6e/v7x, 128 on v5e); require
    # >= 2 grid steps per TensorCore only on v7x (megacore); single-TC chips just
    # take the largest block that fits the M target.
    m_target = 128 if "v5" in kind else 256
    min_steps = 4 if "v7" in kind else 1
    block_b = 1
    while True:
        nxt = block_b * 2
        if B % nxt != 0 or B // nxt < min_steps or nxt * S > m_target:
            break
        block_b = nxt
    return block_b


_HAS_BUFFERED = hasattr(pl, "Buffered")


def _weight_spec(shape):
    idx = lambda b: (0, 0)          # grid-invariant block
    if _HAS_BUFFERED:
        try:
            # Weights never change across grid steps -> single buffer halves their VMEM.
            return pl.BlockSpec(shape, idx, pipeline_mode=pl.Buffered(1))
        except TypeError:           # narrow capability check (old BlockSpec signature)
            pass
    return pl.BlockSpec(shape, idx)


def transformer_decoder_block(x, skip, weights, num_heads, streaming=False, block_b=None):
    """x: (B,S,E), skip: (B,Sk,E); `weights` from prepare_decoder_weights().
    Activations are moved as bf16 (cast here if needed); output is bf16."""
    B, S, E = x.shape
    Bk, Sk, Ek = skip.shape
    assert Bk == B and Ek == E
    assert E % num_heads == 0

    kind = _tpu_kind()
    if block_b is None:
        block_b = _pick_block_b(B, S, kind)
    assert B % block_b == 0, "block_b must divide the batch size"
    grid = (B // block_b,)

    # bf16 activation I/O halves per-step HBM DMA (no-op if caller already passes bf16).
    x_bf = x.astype(jnp.bfloat16)
    skip_bf = skip.astype(jnp.bfloat16)

    # VMEM budget: single-buffered weights + double-buffered bf16 activations + f32
    # intermediates, clamped below the physical per-core VMEM capacity (v7x = 64 MiB).
    m, mk = block_b * S, block_b * Sk
    weight_bytes = sum(w.size * w.dtype.itemsize for w in weights)
    act_bytes = 2 * 2 * (2 * m * E + mk * E)                       # bf16, double-buffered
    interm_bytes = 4 * (8 * m * E + 2 * m * 4 * E + 2 * mk * 2 * E
                        + 2 * block_b * S * max(S, Sk))
    cap = _vmem_capacity_bytes((64 << 20) if "v7" in kind else (128 << 20))
    vmem_limit = min(cap - (16 << 20),
                     max(32 << 20,
                         int(1.5 * (weight_bytes + act_bytes + interm_bytes)) + (8 << 20)))

    in_specs = [
        pl.BlockSpec((block_b, S, E), lambda b: (b, 0, 0)),
        pl.BlockSpec((block_b, Sk, E), lambda b: (b, 0, 0)),
    ] + [_weight_spec(w.shape) for w in weights]

    return pl.pallas_call(
        partial(_decoder_block_kernel, num_heads=num_heads, streaming=streaming),
        grid=grid,
        in_specs=in_specs,
        out_specs=pl.BlockSpec((block_b, S, E), lambda b: (b, 0, 0)),
        out_shape=jax.ShapeDtypeStruct((B, S, E), jnp.bfloat16),
        compiler_params=pltpu.CompilerParams(
            dimension_semantics=("parallel",),
            vmem_limit_bytes=int(vmem_limit),
        ),
    )(x_bf, skip_bf, *weights)


# ---------------------------------------------------------------------------
# Deterministic parameter init (shapes from the module's __init__)
# ---------------------------------------------------------------------------
def init_params(key, hidden_dim):
    E, F = hidden_dim, 4 * hidden_dim
    counter = [0]

    def rnd(shape, scale=0.1):
        k = jax.random.fold_in(key, counter[0])
        counter[0] += 1
        return scale * jax.random.normal(k, shape, jnp.float32)

    p = {}
    for n in ("n1", "n2", "n3"):              # nn.LayerNorm init: gamma=1, beta=0
        p[n + "g"] = jnp.ones((1, E), jnp.float32)
        p[n + "b"] = jnp.zeros((1, E), jnp.float32)
    for a in ("a1", "a2"):                    # in_proj (q,k,v) + out_proj, pre-transposed
        for proj in ("q", "k", "v", "o"):
            p[f"{a}w{proj}"] = rnd((E, E))
            p[f"{a}b{proj}"] = rnd((1, E), 0.02)
    p["w1"] = rnd((E, F))                     # Linear(E, 4E) transposed
    p["b1"] = rnd((1, F), 0.02)
    p["w2"] = rnd((F, E))                     # Linear(4E, E) transposed
    p["b2"] = rnd((1, E), 0.02)
    return p


# ---------------------------------------------------------------------------
# Pure-JAX reference (mirrors the PyTorch forward) for correctness checking
# ---------------------------------------------------------------------------
def reference_block(x, skip, params, num_heads, streaming=False,
                    match_kernel_numerics=False):
    """match_kernel_numerics=True emulates the kernel's bf16 I/O, bf16-operand /
    f32-accumulate matmuls and tanh GELU; False is exact f32 / exact-erf semantics."""
    p = params
    bf16, f32 = jnp.bfloat16, jnp.float32
    if match_kernel_numerics:
        x = x.astype(bf16).astype(f32)
        skip = skip.astype(bf16).astype(f32)

    def mm(a, b):
        if match_kernel_numerics:
            return jnp.dot(a.astype(bf16), b.astype(bf16), preferred_element_type=f32)
        return jnp.dot(a, b)

    def ln(t, g, b):
        mu = t.mean(-1, keepdims=True)
        var = ((t - mu) ** 2).mean(-1, keepdims=True)
        return (t - mu) / jnp.sqrt(var + LN_EPS) * g + b

    def mha(qin, kvin, wq, bq, wk, bk, wv, bv, wo, bo, causal):
        B, Sq, E = qin.shape
        Sk = kvin.shape[1]
        D = E // num_heads
        q = (mm(qin, wq) + bq).reshape(B, Sq, num_heads, D).transpose(0, 2, 1, 3)
        k = (mm(kvin, wk) + bk).reshape(B, Sk, num_heads, D).transpose(0, 2, 1, 3)
        v = (mm(kvin, wv) + bv).reshape(B, Sk, num_heads, D).transpose(0, 2, 1, 3)
        if match_kernel_numerics:
            s = jnp.einsum("bhqd,bhkd->bhqk", q.astype(bf16), k.astype(bf16),
                           preferred_element_type=f32) / math.sqrt(D)
        else:
            s = jnp.einsum("bhqd,bhkd->bhqk", q, k) / math.sqrt(D)
        if causal:
            mask = jnp.triu(jnp.ones((Sq, Sk), bool), k=1)
            s = jnp.where(mask, -jnp.inf, s)
        attn = jax.nn.softmax(s, axis=-1)
        if match_kernel_numerics:
            o = jnp.einsum("bhqk,bhkd->bhqd", attn.astype(bf16), v.astype(bf16),
                           preferred_element_type=f32)
        else:
            o = jnp.einsum("bhqk,bhkd->bhqd", attn, v)
        o = o.transpose(0, 2, 1, 3).reshape(B, Sq, E)
        return mm(o, wo) + bo

    h = ln(x, p["n1g"], p["n1b"])
    h = mha(h, h, p["a1wq"], p["a1bq"], p["a1wk"], p["a1bk"],
            p["a1wv"], p["a1bv"], p["a1wo"], p["a1bo"], streaming)
    x = x + h
    h = ln(x, p["n2g"], p["n2b"])
    h = mha(h, skip, p["a2wq"], p["a2bq"], p["a2wk"], p["a2bk"],
            p["a2wv"], p["a2bv"], p["a2wo"], p["a2bo"], False)
    x = x + h
    h = ln(x, p["n3g"], p["n3b"])
    h = mm(jax.nn.gelu(mm(h, p["w1"]) + p["b1"],
                       approximate=match_kernel_numerics), p["w2"]) + p["b2"]
    return x + h


if __name__ == "__main__":
    # Lane/sublane-aligned small shapes: E multiple of 128, S/Sk multiples of 8.
    B, S, Sk, E, H = 2, 8, 16, 128, 4
    key = jax.random.PRNGKey(0)
    kx, kskip, kp = jax.random.split(key, 3)
    x = jax.random.normal(kx, (B, S, E), jnp.float32)
    skip = jax.random.normal(kskip, (B, Sk, E), jnp.float32)
    params = init_params(kp, E)
    weights = prepare_decoder_weights(params, E, H)   # hoisted out of the per-call path

    for streaming in (False, True):
        out = jax.block_until_ready(
            transformer_decoder_block(x, skip, weights, H, streaming=streaming))
        assert out.shape == (B, S, E) and out.dtype == jnp.bfloat16
        out_f = out.astype(jnp.float32)
        ref_bf = reference_block(x, skip, params, H, streaming=streaming,
                                 match_kernel_numerics=True)
        ref_bf = ref_bf.astype(jnp.bfloat16).astype(jnp.float32)   # absorb output rounding
        ref_f32 = reference_block(x, skip, params, H, streaming=streaming,
                                  match_kernel_numerics=False)
        assert jnp.allclose(out_f, ref_bf, atol=5e-2, rtol=5e-2), \
            f"mismatch vs bf16-matched reference (streaming={streaming})"
        assert float(jnp.max(jnp.abs(out_f - ref_f32))) < 0.5, \
            f"mismatch vs exact f32 reference (streaming={streaming})"

    # Exercise explicit batch blocking (block_b=2 -> fused (2*S, E) slab per grid step).
    B2 = 4
    x2 = jax.random.normal(jax.random.fold_in(key, 7), (B2, S, E), jnp.float32)
    skip2 = jax.random.normal(jax.random.fold_in(key, 8), (B2, Sk, E), jnp.float32)
    out2 = jax.block_until_ready(
        transformer_decoder_block(x2, skip2, weights, H, streaming=True, block_b=2))
    ref2 = reference_block(x2, skip2, params, H, streaming=True,
                           match_kernel_numerics=True)
    ref2 = ref2.astype(jnp.bfloat16).astype(jnp.float32)
    assert jnp.allclose(out2.astype(jnp.float32), ref2, atol=5e-2, rtol=5e-2), \
        "mismatch with block_b=2"

    print("KERNEL_OK")
</pallas_src>

<mosaic_0001>
module attributes {stable_mosaic.version = 11 : i64} {
  func.func @_decoder_block_kernel(%arg0: i32, %arg1: memref<2x8x128xbf16, #tpu.memory_space<vmem>>, %arg2: memref<2x16x128xbf16, #tpu.memory_space<vmem>>, %arg3: memref<1x128xf32, #tpu.memory_space<vmem>>, %arg4: memref<1x128xf32, #tpu.memory_space<vmem>>, %arg5: memref<1x128xf32, #tpu.memory_space<vmem>>, %arg6: memref<1x128xf32, #tpu.memory_space<vmem>>, %arg7: memref<1x128xf32, #tpu.memory_space<vmem>>, %arg8: memref<1x128xf32, #tpu.memory_space<vmem>>, %arg9: memref<128x128xbf16, #tpu.memory_space<vmem>>, %arg10: memref<1x128xf32, #tpu.memory_space<vmem>>, %arg11: memref<128x256xbf16, #tpu.memory_space<vmem>>, %arg12: memref<1x256xf32, #tpu.memory_space<vmem>>, %arg13: memref<128x128xbf16, #tpu.memory_space<vmem>>, %arg14: memref<1x128xf32, #tpu.memory_space<vmem>>, %arg15: memref<128x128xbf16, #tpu.memory_space<vmem>>, %arg16: memref<1x128xf32, #tpu.memory_space<vmem>>, %arg17: memref<128x256xbf16, #tpu.memory_space<vmem>>, %arg18: memref<1x256xf32, #tpu.memory_space<vmem>>, %arg19: memref<128x128xbf16, #tpu.memory_space<vmem>>, %arg20: memref<1x128xf32, #tpu.memory_space<vmem>>, %arg21: memref<128x512xbf16, #tpu.memory_space<vmem>>, %arg22: memref<1x512xf32, #tpu.memory_space<vmem>>, %arg23: memref<512x128xbf16, #tpu.memory_space<vmem>>, %arg24: memref<1x128xf32, #tpu.memory_space<vmem>>, %arg25: memref<2x8x128xbf16, #tpu.memory_space<vmem>>) attributes {dimension_semantics = [#tpu.dimension_semantics<parallel>], iteration_bounds = array<i64: 1>, scalar_prefetch = 0 : i64, scratch_operands = 0 : i64, tpu.core_type = #tpu.core_type<tc>, window_params = [{transform_indices = @transform_0, window_bounds = array<i64: 2, 8, 128>}, {transform_indices = @transform_1, window_bounds = array<i64: 2, 16, 128>}, {pipeline_mode = #tpu.pipeline_mode<synchronous>, transform_indices = @transform_2, window_bounds = array<i64: 1, 128>}, {pipeline_mode = #tpu.pipeline_mode<synchronous>, transform_indices = @transform_3, window_bounds = array<i64: 1, 128>}, {pipeline_mode = #tpu.pipeline_mode<synchronous>, transform_indices = @transform_4, window_bounds = array<i64: 1, 128>}, {pipeline_mode = #tpu.pipeline_mode<synchronous>, transform_indices = @transform_5, window_bounds = array<i64: 1, 128>}, {pipeline_mode = #tpu.pipeline_mode<synchronous>, transform_indices = @transform_6, window_bounds = array<i64: 1, 128>}, {pipeline_mode = #tpu.pipeline_mode<synchronous>, transform_indices = @transform_7, window_bounds = array<i64: 1, 128>}, {pipeline_mode = #tpu.pipeline_mode<synchronous>, transform_indices = @transform_8, window_bounds = array<i64: 128, 128>}, {pipeline_mode = #tpu.pipeline_mode<synchronous>, transform_indices = @transform_9, window_bounds = array<i64: 1, 128>}, {pipeline_mode = #tpu.pipeline_mode<synchronous>, transform_indices = @transform_10, window_bounds = array<i64: 128, 256>}, {pipeline_mode = #tpu.pipeline_mode<synchronous>, transform_indices = @transform_11, window_bounds = array<i64: 1, 256>}, {pipeline_mode = #tpu.pipeline_mode<synchronous>, transform_indices = @transform_12, window_bounds = array<i64: 128, 128>}, {pipeline_mode = #tpu.pipeline_mode<synchronous>, transform_indices = @transform_13, window_bounds = array<i64: 1, 128>}, {pipeline_mode = #tpu.pipeline_mode<synchronous>, transform_indices = @transform_14, window_bounds = array<i64: 128, 128>}, {pipeline_mode = #tpu.pipeline_mode<synchronous>, transform_indices = @transform_15, window_bounds = array<i64: 1, 128>}, {pipeline_mode = #tpu.pipeline_mode<synchronous>, transform_indices = @transform_16, window_bounds = array<i64: 128, 256>}, {pipeline_mode = #tpu.pipeline_mode<synchronous>, transform_indices = @transform_17, window_bounds = array<i64: 1, 256>}, {pipeline_mode = #tpu.pipeline_mode<synchronous>, transform_indices = @transform_18, window_bounds = array<i64: 128, 128>}, {pipeline_mode = #tpu.pipeline_mode<synchronous>, transform_indices = @transform_19, window_bounds = array<i64: 1, 128>}, {pipeline_mode = #tpu.pipeline_mode<synchronous>, transform_indices = @transform_20, window_bounds = array<i64: 128, 512>}, {pipeline_mode = #tpu.pipeline_mode<synchronous>, transform_indices = @transform_21, window_bounds = array<i64: 1, 512>}, {pipeline_mode = #tpu.pipeline_mode<synchronous>, transform_indices = @transform_22, window_bounds = array<i64: 512, 128>}, {pipeline_mode = #tpu.pipeline_mode<synchronous>, transform_indices = @transform_23, window_bounds = array<i64: 1, 128>}, {transform_indices = @transform_24, window_bounds = array<i64: 2, 8, 128>}]} {
    %c0 = arith.constant 0 : index
    %c0_0 = arith.constant 0 : index
    %c0_1 = arith.constant 0 : index
    %0 = vector.load %arg1[%c0, %c0_0, %c0_1] : memref<2x8x128xbf16, #tpu.memory_space<vmem>>, vector<2x8x128xbf16>
    %1 = arith.extf %0 : vector<2x8x128xbf16> to vector<2x8x128xf32>
    %2 = vector.shape_cast %1 : vector<2x8x128xf32> to vector<16x128xf32>
    %c0_2 = arith.constant 0 : index
    %c0_3 = arith.constant 0 : index
    %c0_4 = arith.constant 0 : index
    %3 = vector.load %arg2[%c0_2, %c0_3, %c0_4] : memref<2x16x128xbf16, #tpu.memory_space<vmem>>, vector<2x16x128xbf16>
    %4 = vector.shape_cast %3 : vector<2x16x128xbf16> to vector<32x128xbf16>
    %c0_5 = arith.constant 0 : index
    %c0_6 = arith.constant 0 : index
    %5 = vector.load %arg3[%c0_5, %c0_6] : memref<1x128xf32, #tpu.memory_space<vmem>>, vector<1x128xf32>
    %c0_7 = arith.constant 0 : index
    %c0_8 = arith.constant 0 : index
    %6 = vector.load %arg4[%c0_7, %c0_8] : memref<1x128xf32, #tpu.memory_space<vmem>>, vector<1x128xf32>
    %cst = arith.constant dense<0.000000e+00> : vector<16xf32>
    %7 = vector.multi_reduction <add>, %2, %cst [1] : vector<16x128xf32> to vector<16xf32>
    %8 = vector.shape_cast %7 : vector<16xf32> to vector<16x1xf32>
    %cst_9 = arith.constant 1.280000e+02 : f32
    %9 = vector.broadcast %cst_9 : f32 to vector<16x1xf32>
    %10 = arith.divf %8, %9 : vector<16x1xf32>
    %11 = vector.broadcast %10 : vector<16x1xf32> to vector<16x128xf32>
    %12 = arith.subf %2, %11 : vector<16x128xf32>
    %13 = arith.mulf %12, %12 : vector<16x128xf32>
    %cst_10 = arith.constant dense<0.000000e+00> : vector<16xf32>
    %14 = vector.multi_reduction <add>, %13, %cst_10 [1] : vector<16x128xf32> to vector<16xf32>
    %15 = vector.shape_cast %14 : vector<16xf32> to vector<16x1xf32>
    %cst_11 = arith.constant 1.280000e+02 : f32
    %16 = vector.broadcast %cst_11 : f32 to vector<16x1xf32>
    %17 = arith.divf %15, %16 : vector<16x1xf32>
    %18 = vector.broadcast %10 : vector<16x1xf32> to vector<16x128xf32>
    %19 = arith.subf %2, %18 : vector<16x128xf32>
    %cst_12 = arith.constant 9.99999974E-6 : f32
    %20 = vector.broadcast %cst_12 : f32 to vector<16x1xf32>
    %21 = arith.addf %17, %20 : vector<16x1xf32>
    %22 = math.rsqrt %21 : vector<16x1xf32>
    %23 = vector.broadcast %22 : vector<16x1xf32> to vector<16x128xf32>
    %24 = arith.mulf %19, %23 : vector<16x128xf32>
    %25 = vector.broadcast %5 : vector<1x128xf32> to vector<16x128xf32>
    %26 = arith.mulf %24, %25 : vector<16x128xf32>
    %27 = vector.broadcast %6 : vector<1x128xf32> to vector<16x128xf32>
    %28 = arith.addf %26, %27 : vector<16x128xf32>
    %29 = arith.truncf %28 : vector<16x128xf32> to vector<16x128xbf16>
    %30 = arith.truncf %28 : vector<16x128xf32> to vector<16x128xbf16>
    %c0_13 = arith.constant 0 : index
    %c0_14 = arith.constant 0 : index
    %31 = vector.load %arg9[%c0_13, %c0_14] : memref<128x128xbf16, #tpu.memory_space<vmem>>, vector<128x128xbf16>
    %cst_15 = arith.constant dense<0.000000e+00> : vector<16x128xf32>
    %32 = tpu.matmul %29, %31, %cst_15 {dimension_numbers = #tpu.dot_dimension_numbers<[1], [0], [0], [1], [0, 0, 1, 1], [], []>} : vector<16x128xbf16>, vector<128x128xbf16>, vector<16x128xf32> -> vector<16x128xf32>
    %c0_16 = arith.constant 0 : index
    %c0_17 = arith.constant 0 : index
    %33 = vector.load %arg10[%c0_16, %c0_17] : memref<1x128xf32, #tpu.memory_space<vmem>>, vector<1x128xf32>
    %34 = vector.broadcast %33 : vector<1x128xf32> to vector<16x128xf32>
    %35 = arith.addf %32, %34 : vector<16x128xf32>
    %36 = arith.truncf %35 : vector<16x128xf32> to vector<16x128xbf16>
    %c0_18 = arith.constant 0 : index
    %c0_19 = arith.constant 0 : index
    %37 = vector.load %arg11[%c0_18, %c0_19] : memref<128x256xbf16, #tpu.memory_space<vmem>>, vector<128x256xbf16>
    %cst_20 = arith.constant dense<0.000000e+00> : vector<16x256xf32>
    %38 = tpu.matmul %30, %37, %cst_20 {dimension_numbers = #tpu.dot_dimension_numbers<[1], [0], [0], [1], [0, 0, 1, 1], [], []>} : vector<16x128xbf16>, vector<128x256xbf16>, vector<16x256xf32> -> vector<16x256xf32>
    %c0_21 = arith.constant 0 : index
    %c0_22 = arith.constant 0 : index
    %39 = vector.load %arg12[%c0_21, %c0_22] : memref<1x256xf32, #tpu.memory_space<vmem>>, vector<1x256xf32>
    %40 = vector.broadcast %39 : vector<1x256xf32> to vector<16x256xf32>
    %41 = arith.addf %38, %40 : vector<16x256xf32>
    %42 = vector.extract_strided_slice %41 {offsets = [0, 0], sizes = [16, 128], strides = [1, 1]} : vector<16x256xf32> to vector<16x128xf32>
    %43 = arith.truncf %42 : vector<16x128xf32> to vector<16x128xbf16>
    %44 = vector.extract_strided_slice %41 {offsets = [0, 128], sizes = [16, 128], strides = [1, 1]} : vector<16x256xf32> to vector<16x128xf32>
    %45 = arith.truncf %44 : vector<16x128xf32> to vector<16x128xbf16>
    %46 = vector.shape_cast %36 : vector<16x128xbf16> to vector<2x8x128xbf16>
    %47 = vector.shape_cast %43 : vector<16x128xbf16> to vector<2x8x128xbf16>
    %48 = vector.shape_cast %45 : vector<16x128xbf16> to vector<2x8x128xbf16>
    %49 = vector.extract_strided_slice %46 {offsets = [0, 0, 0], sizes = [2, 8, 32], strides = [1, 1, 1]} : vector<2x8x128xbf16> to vector<2x8x32xbf16>
    %50 = vector.extract_strided_slice %47 {offsets = [0, 0, 0], sizes = [2, 8, 32], strides = [1, 1, 1]} : vector<2x8x128xbf16> to vector<2x8x32xbf16>
    %51 = vector.extract_strided_slice %48 {offsets = [0, 0, 0], sizes = [2, 8, 32], strides = [1, 1, 1]} : vector<2x8x128xbf16> to vector<2x8x32xbf16>
    "tpu.trace_start"() <{level = 10 : i32, message = "bqd,bkd->bqk"}> : () -> ()
    %cst_23 = arith.constant dense<0.000000e+00> : vector<2x8x8xf32>
    %52 = tpu.matmul %49, %50, %cst_23 {dimension_numbers = #tpu.dot_dimension_numbers<[2], [2], [1], [1], [0, 0, 0, 1, 1, 1], [0], [0]>} : vector<2x8x32xbf16>, vector<2x8x32xbf16>, vector<2x8x8xf32> -> vector<2x8x8xf32>
    "tpu.trace_stop"() : () -> ()
    %cst_24 = arith.constant dense<0xFF800000> : vector<2x8xf32>
    %53 = vector.multi_reduction <maximumf>, %52, %cst_24 [2] : vector<2x8x8xf32> to vector<2x8xf32>
    %54 = vector.shape_cast %53 : vector<2x8xf32> to vector<2x8x1xf32>
    %55 = vector.broadcast %54 : vector<2x8x1xf32> to vector<2x8x8xf32>
    %56 = arith.subf %52, %55 : vector<2x8x8xf32>
    %57 = math.exp %56 : vector<2x8x8xf32>
    %cst_25 = arith.constant dense<0.000000e+00> : vector<2x8xf32>
    %58 = vector.multi_reduction <add>, %57, %cst_25 [2] : vector<2x8x8xf32> to vector<2x8xf32>
    %59 = vector.shape_cast %58 : vector<2x8xf32> to vector<2x8x1xf32>
    %60 = tpu.reciprocal %59 {approx = true} : vector<2x8x1xf32> -> vector<2x8x1xf32>
    %61 = vector.broadcast %60 : vector<2x8x1xf32> to vector<2x8x8xf32>
    %62 = arith.mulf %57, %61 : vector<2x8x8xf32>
    %63 = arith.truncf %62 : vector<2x8x8xf32> to vector<2x8x8xbf16>
    "tpu.trace_start"() <{level = 10 : i32, message = "bqk,bkd->bqd"}> : () -> ()
    %cst_26 = arith.constant dense<0.000000e+00> : vector<2x8x32xf32>
    %64 = tpu.matmul %63, %51, %cst_26 {dimension_numbers = #tpu.dot_dimension_numbers<[2], [1], [1], [2], [0, 0, 0, 1, 1, 2], [0], [0]>} : vector<2x8x8xbf16>, vector<2x8x32xbf16>, vector<2x8x32xf32> -> vector<2x8x32xf32>
    "tpu.trace_stop"() : () -> ()
    %65 = vector.extract_strided_slice %46 {offsets = [0, 0, 32], sizes = [2, 8, 32], strides = [1, 1, 1]} : vector<2x8x128xbf16> to vector<2x8x32xbf16>
    %66 = vector.extract_strided_slice %47 {offsets = [0, 0, 32], sizes = [2, 8, 32], strides = [1, 1, 1]} : vector<2x8x128xbf16> to vector<2x8x32xbf16>
    %67 = vector.extract_strided_slice %48 {offsets = [0, 0, 32], sizes = [2, 8, 32], strides = [1, 1, 1]} : vector<2x8x128xbf16> to vector<2x8x32xbf16>
    "tpu.trace_start"() <{level = 10 : i32, message = "bqd,bkd->bqk"}> : () -> ()
    %cst_27 = arith.constant dense<0.000000e+00> : vector<2x8x8xf32>
    %68 = tpu.matmul %65, %66, %cst_27 {dimension_numbers = #tpu.dot_dimension_numbers<[2], [2], [1], [1], [0, 0, 0, 1, 1, 1], [0], [0]>} : vector<2x8x32xbf16>, vector<2x8x32xbf16>, vector<2x8x8xf32> -> vector<2x8x8xf32>
    "tpu.trace_stop"() : () -> ()
    %cst_28 = arith.constant dense<0xFF800000> : vector<2x8xf32>
    %69 = vector.multi_reduction <maximumf>, %68, %cst_28 [2] : vector<2x8x8xf32> to vector<2x8xf32>
    %70 = vector.shape_cast %69 : vector<2x8xf32> to vector<2x8x1xf32>
    %71 = vector.broadcast %70 : vector<2x8x1xf32> to vector<2x8x8xf32>
    %72 = arith.subf %68, %71 : vector<2x8x8xf32>
    %73 = math.exp %72 : vector<2x8x8xf32>
    %cst_29 = arith.constant dense<0.000000e+00> : vector<2x8xf32>
    %74 = vector.multi_reduction <add>, %73, %cst_29 [2] : vector<2x8x8xf32> to vector<2x8xf32>
    %75 = vector.shape_cast %74 : vector<2x8xf32> to vector<2x8x1xf32>
    %76 = tpu.reciprocal %75 {approx = true} : vector<2x8x1xf32> -> vector<2x8x1xf32>
    %77 = vector.broadcast %76 : vector<2x8x1xf32> to vector<2x8x8xf32>
    %78 = arith.mulf %73, %77 : vector<2x8x8xf32>
    %79 = arith.truncf %78 : vector<2x8x8xf32> to vector<2x8x8xbf16>
    "tpu.trace_start"() <{level = 10 : i32, message = "bqk,bkd->bqd"}> : () -> ()
    %cst_30 = arith.constant dense<0.000000e+00> : vector<2x8x32xf32>
    %80 = tpu.matmul %79, %67, %cst_30 {dimension_numbers = #tpu.dot_dimension_numbers<[2], [1], [1], [2], [0, 0, 0, 1, 1, 2], [0], [0]>} : vector<2x8x8xbf16>, vector<2x8x32xbf16>, vector<2x8x32xf32> -> vector<2x8x32xf32>
    "tpu.trace_stop"() : () -> ()
    %81 = vector.extract_strided_slice %46 {offsets = [0, 0, 64], sizes = [2, 8, 32], strides = [1, 1, 1]} : vector<2x8x128xbf16> to vector<2x8x32xbf16>
    %82 = vector.extract_strided_slice %47 {offsets = [0, 0, 64], sizes = [2, 8, 32], strides = [1, 1, 1]} : vector<2x8x128xbf16> to vector<2x8x32xbf16>
    %83 = vector.extract_strided_slice %48 {offsets = [0, 0, 64], sizes = [2, 8, 32], strides = [1, 1, 1]} : vector<2x8x128xbf16> to vector<2x8x32xbf16>
    "tpu.trace_start"() <{level = 10 : i32, message = "bqd,bkd->bqk"}> : () -> ()
    %cst_31 = arith.constant dense<0.000000e+00> : vector<2x8x8xf32>
    %84 = tpu.matmul %81, %82, %cst_31 {dimension_numbers = #tpu.dot_dimension_numbers<[2], [2], [1], [1], [0, 0, 0, 1, 1, 1], [0], [0]>} : vector<2x8x32xbf16>, vector<2x8x32xbf16>, vector<2x8x8xf32> -> vector<2x8x8xf32>
    "tpu.trace_stop"() : () -> ()
    %cst_32 = arith.constant dense<0xFF800000> : vector<2x8xf32>
    %85 = vector.multi_reduction <maximumf>, %84, %cst_32 [2] : vector<2x8x8xf32> to vector<2x8xf32>
    %86 = vector.shape_cast %85 : vector<2x8xf32> to vector<2x8x1xf32>
    %87 = vector.broadcast %86 : vector<2x8x1xf32> to vector<2x8x8xf32>
    %88 = arith.subf %84, %87 : vector<2x8x8xf32>
    %89 = math.exp %88 : vector<2x8x8xf32>
    %cst_33 = arith.constant dense<0.000000e+00> : vector<2x8xf32>
    %90 = vector.multi_reduction <add>, %89, %cst_33 [2] : vector<2x8x8xf32> to vector<2x8xf32>
    %91 = vector.shape_cast %90 : vector<2x8xf32> to vector<2x8x1xf32>
    %92 = tpu.reciprocal %91 {approx = true} : vector<2x8x1xf32> -> vector<2x8x1xf32>
    %93 = vector.broadcast %92 : vector<2x8x1xf32> to vector<2x8x8xf32>
    %94 = arith.mulf %89, %93 : vector<2x8x8xf32>
    %95 = arith.truncf %94 : vector<2x8x8xf32> to vector<2x8x8xbf16>
    "tpu.trace_start"() <{level = 10 : i32, message = "bqk,bkd->bqd"}> : () -> ()
    %cst_34 = arith.constant dense<0.000000e+00> : vector<2x8x32xf32>
    %96 = tpu.matmul %95, %83, %cst_34 {dimension_numbers = #tpu.dot_dimension_numbers<[2], [1], [1], [2], [0, 0, 0, 1, 1, 2], [0], [0]>} : vector<2x8x8xbf16>, vector<2x8x32xbf16>, vector<2x8x32xf32> -> vector<2x8x32xf32>
    "tpu.trace_stop"() : () -> ()
    %97 = vector.extract_strided_slice %46 {offsets = [0, 0, 96], sizes = [2, 8, 32], strides = [1, 1, 1]} : vector<2x8x128xbf16> to vector<2x8x32xbf16>
    %98 = vector.extract_strided_slice %47 {offsets = [0, 0, 96], sizes = [2, 8, 32], strides = [1, 1, 1]} : vector<2x8x128xbf16> to vector<2x8x32xbf16>
    %99 = vector.extract_strided_slice %48 {offsets = [0, 0, 96], sizes = [2, 8, 32], strides = [1, 1, 1]} : vector<2x8x128xbf16> to vector<2x8x32xbf16>
    "tpu.trace_start"() <{level = 10 : i32, message = "bqd,bkd->bqk"}> : () -> ()
    %cst_35 = arith.constant dense<0.000000e+00> : vector<2x8x8xf32>
    %100 = tpu.matmul %97, %98, %cst_35 {dimension_numbers = #tpu.dot_dimension_numbers<[2], [2], [1], [1], [0, 0, 0, 1, 1, 1], [0], [0]>} : vector<2x8x32xbf16>, vector<2x8x32xbf16>, vector<2x8x8xf32> -> vector<2x8x8xf32>
    "tpu.trace_stop"() : () -> ()
    %cst_36 = arith.constant dense<0xFF800000> : vector<2x8xf32>
    %101 = vector.multi_reduction <maximumf>, %100, %cst_36 [2] : vector<2x8x8xf32> to vector<2x8xf32>
    %102 = vector.shape_cast %101 : vector<2x8xf32> to vector<2x8x1xf32>
    %103 = vector.broadcast %102 : vector<2x8x1xf32> to vector<2x8x8xf32>
    %104 = arith.subf %100, %103 : vector<2x8x8xf32>
    %105 = math.exp %104 : vector<2x8x8xf32>
    %cst_37 = arith.constant dense<0.000000e+00> : vector<2x8xf32>
    %106 = vector.multi_reduction <add>, %105, %cst_37 [2] : vector<2x8x8xf32> to vector<2x8xf32>
    %107 = vector.shape_cast %106 : vector<2x8xf32> to vector<2x8x1xf32>
    %108 = tpu.reciprocal %107 {approx = true} : vector<2x8x1xf32> -> vector<2x8x1xf32>
    %109 = vector.broadcast %108 : vector<2x8x1xf32> to vector<2x8x8xf32>
    %110 = arith.mulf %105, %109 : vector<2x8x8xf32>
    %111 = arith.truncf %110 : vector<2x8x8xf32> to vector<2x8x8xbf16>
    "tpu.trace_start"() <{level = 10 : i32, message = "bqk,bkd->bqd"}> : () -> ()
    %cst_38 = arith.constant dense<0.000000e+00> : vector<2x8x32xf32>
    %112 = tpu.matmul %111, %99, %cst_38 {dimension_numbers = #tpu.dot_dimension_numbers<[2], [1], [1], [2], [0, 0, 0, 1, 1, 2], [0], [0]>} : vector<2x8x8xbf16>, vector<2x8x32xbf16>, vector<2x8x32xf32> -> vector<2x8x32xf32>
    "tpu.trace_stop"() : () -> ()
    %113 = tpu.concatenate %64, %80, %96, %112 in 2 : vector<2x8x32xf32>, vector<2x8x32xf32>, vector<2x8x32xf32>, vector<2x8x32xf32> -> vector<2x8x128xf32>
    %114 = vector.shape_cast %113 : vector<2x8x128xf32> to vector<16x128xf32>
    %115 = arith.truncf %114 : vector<16x128xf32> to vector<16x128xbf16>
    %c0_39 = arith.constant 0 : index
    %c0_40 = arith.constant 0 : index
    %116 = vector.load %arg13[%c0_39, %c0_40] : memref<128x128xbf16, #tpu.memory_space<vmem>>, vector<128x128xbf16>
    %cst_41 = arith.constant dense<0.000000e+00> : vector<16x128xf32>
    %117 = tpu.matmul %115, %116, %cst_41 {dimension_numbers = #tpu.dot_dimension_numbers<[1], [0], [0], [1], [0, 0, 1, 1], [], []>} : vector<16x128xbf16>, vector<128x128xbf16>, vector<16x128xf32> -> vector<16x128xf32>
    %c0_42 = arith.constant 0 : index
    %c0_43 = arith.constant 0 : index
    %118 = vector.load %arg14[%c0_42, %c0_43] : memref<1x128xf32, #tpu.memory_space<vmem>>, vector<1x128xf32>
    %119 = vector.broadcast %118 : vector<1x128xf32> to vector<16x128xf32>
    %120 = arith.addf %117, %119 : vector<16x128xf32>
    %121 = arith.addf %2, %120 : vector<16x128xf32>
    %c0_44 = arith.constant 0 : index
    %c0_45 = arith.constant 0 : index
    %122 = vector.load %arg5[%c0_44, %c0_45] : memref<1x128xf32, #tpu.memory_space<vmem>>, vector<1x128xf32>
    %c0_46 = arith.constant 0 : index
    %c0_47 = arith.constant 0 : index
    %123 = vector.load %arg6[%c0_46, %c0_47] : memref<1x128xf32, #tpu.memory_space<vmem>>, vector<1x128xf32>
    %cst_48 = arith.constant dense<0.000000e+00> : vector<16xf32>
    %124 = vector.multi_reduction <add>, %121, %cst_48 [1] : vector<16x128xf32> to vector<16xf32>
    %125 = vector.shape_cast %124 : vector<16xf32> to vector<16x1xf32>
    %cst_49 = arith.constant 1.280000e+02 : f32
    %126 = vector.broadcast %cst_49 : f32 to vector<16x1xf32>
    %127 = arith.divf %125, %126 : vector<16x1xf32>
    %128 = vector.broadcast %127 : vector<16x1xf32> to vector<16x128xf32>
    %129 = arith.subf %121, %128 : vector<16x128xf32>
    %130 = arith.mulf %129, %129 : vector<16x128xf32>
    %cst_50 = arith.constant dense<0.000000e+00> : vector<16xf32>
    %131 = vector.multi_reduction <add>, %130, %cst_50 [1] : vector<16x128xf32> to vector<16xf32>
    %132 = vector.shape_cast %131 : vector<16xf32> to vector<16x1xf32>
    %cst_51 = arith.constant 1.280000e+02 : f32
    %133 = vector.broadcast %cst_51 : f32 to vector<16x1xf32>
    %134 = arith.divf %132, %133 : vector<16x1xf32>
    %135 = vector.broadcast %127 : vector<16x1xf32> to vector<16x128xf32>
    %136 = arith.subf %121, %135 : vector<16x128xf32>
    %cst_52 = arith.constant 9.99999974E-6 : f32
    %137 = vector.broadcast %cst_52 : f32 to vector<16x1xf32>
    %138 = arith.addf %134, %137 : vector<16x1xf32>
    %139 = math.rsqrt %138 : vector<16x1xf32>
    %140 = vector.broadcast %139 : vector<16x1xf32> to vector<16x128xf32>
    %141 = arith.mulf %136, %140 : vector<16x128xf32>
    %142 = vector.broadcast %122 : vector<1x128xf32> to vector<16x128xf32>
    %143 = arith.mulf %141, %142 : vector<16x128xf32>
    %144 = vector.broadcast %123 : vector<1x128xf32> to vector<16x128xf32>
    %145 = arith.addf %143, %144 : vector<16x128xf32>
    %146 = arith.truncf %145 : vector<16x128xf32> to vector<16x128xbf16>
    %c0_53 = arith.constant 0 : index
    %c0_54 = arith.constant 0 : index
    %147 = vector.load %arg15[%c0_53, %c0_54] : memref<128x128xbf16, #tpu.memory_space<vmem>>, vector<128x128xbf16>
    %cst_55 = arith.constant dense<0.000000e+00> : vector<16x128xf32>
    %148 = tpu.matmul %146, %147, %cst_55 {dimension_numbers = #tpu.dot_dimension_numbers<[1], [0], [0], [1], [0, 0, 1, 1], [], []>} : vector<16x128xbf16>, vector<128x128xbf16>, vector<16x128xf32> -> vector<16x128xf32>
    %c0_56 = arith.constant 0 : index
    %c0_57 = arith.constant 0 : index
    %149 = vector.load %arg16[%c0_56, %c0_57] : memref<1x128xf32, #tpu.memory_space<vmem>>, vector<1x128xf32>
    %150 = vector.broadcast %149 : vector<1x128xf32> to vector<16x128xf32>
    %151 = arith.addf %148, %150 : vector<16x128xf32>
    %152 = arith.truncf %151 : vector<16x128xf32> to vector<16x128xbf16>
    %c0_58 = arith.constant 0 : index
    %c0_59 = arith.constant 0 : index
    %153 = vector.load %arg17[%c0_58, %c0_59] : memref<128x256xbf16, #tpu.memory_space<vmem>>, vector<128x256xbf16>
    %cst_60 = arith.constant dense<0.000000e+00> : vector<32x256xf32>
    %154 = tpu.matmul %4, %153, %cst_60 {dimension_numbers = #tpu.dot_dimension_numbers<[1], [0], [0], [1], [0, 0, 1, 1], [], []>} : vector<32x128xbf16>, vector<128x256xbf16>, vector<32x256xf32> -> vector<32x256xf32>
    %c0_61 = arith.constant 0 : index
    %c0_62 = arith.constant 0 : index
    %155 = vector.load %arg18[%c0_61, %c0_62] : memref<1x256xf32, #tpu.memory_space<vmem>>, vector<1x256xf32>
    %156 = vector.broadcast %155 : vector<1x256xf32> to vector<32x256xf32>
    %157 = arith.addf %154, %156 : vector<32x256xf32>
    %158 = vector.extract_strided_slice %157 {offsets = [0, 0], sizes = [32, 128], strides = [1, 1]} : vector<32x256xf32> to vector<32x128xf32>
    %159 = arith.truncf %158 : vector<32x128xf32> to vector<32x128xbf16>
    %160 = vector.extract_strided_slice %157 {offsets = [0, 128], sizes = [32, 128], strides = [1, 1]} : vector<32x256xf32> to vector<32x128xf32>
    %161 = arith.truncf %160 : vector<32x128xf32> to vector<32x128xbf16>
    %162 = vector.shape_cast %152 : vector<16x128xbf16> to vector<2x8x128xbf16>
    %163 = vector.shape_cast %159 : vector<32x128xbf16> to vector<2x16x128xbf16>
    %164 = vector.shape_cast %161 : vector<32x128xbf16> to vector<2x16x128xbf16>
    %165 = vector.extract_strided_slice %162 {offsets = [0, 0, 0], sizes = [2, 8, 32], strides = [1, 1, 1]} : vector<2x8x128xbf16> to vector<2x8x32xbf16>
    %166 = vector.extract_strided_slice %163 {offsets = [0, 0, 0], sizes = [2, 16, 32], strides = [1, 1, 1]} : vector<2x16x128xbf16> to vector<2x16x32xbf16>
    %167 = vector.extract_strided_slice %164 {offsets = [0, 0, 0], sizes = [2, 16, 32], strides = [1, 1, 1]} : vector<2x16x128xbf16> to vector<2x16x32xbf16>
    "tpu.trace_start"() <{level = 10 : i32, message = "bqd,bkd->bqk"}> : () -> ()
    %cst_63 = arith.constant dense<0.000000e+00> : vector<2x8x16xf32>
    %168 = tpu.matmul %165, %166, %cst_63 {dimension_numbers = #tpu.dot_dimension_numbers<[2], [2], [1], [1], [0, 0, 0, 1, 1, 1], [0], [0]>} : vector<2x8x32xbf16>, vector<2x16x32xbf16>, vector<2x8x16xf32> -> vector<2x8x16xf32>
    "tpu.trace_stop"() : () -> ()
    %cst_64 = arith.constant dense<0xFF800000> : vector<2x8xf32>
    %169 = vector.multi_reduction <maximumf>, %168, %cst_64 [2] : vector<2x8x16xf32> to vector<2x8xf32>
    %170 = vector.shape_cast %169 : vector<2x8xf32> to vector<2x8x1xf32>
    %171 = vector.broadcast %170 : vector<2x8x1xf32> to vector<2x8x16xf32>
    %172 = arith.subf %168, %171 : vector<2x8x16xf32>
    %173 = math.exp %172 : vector<2x8x16xf32>
    %cst_65 = arith.constant dense<0.000000e+00> : vector<2x8xf32>
    %174 = vector.multi_reduction <add>, %173, %cst_65 [2] : vector<2x8x16xf32> to vector<2x8xf32>
    %175 = vector.shape_cast %174 : vector<2x8xf32> to vector<2x8x1xf32>
    %176 = tpu.reciprocal %175 {approx = true} : vector<2x8x1xf32> -> vector<2x8x1xf32>
    %177 = vector.broadcast %176 : vector<2x8x1xf32> to vector<2x8x16xf32>
    %178 = arith.mulf %173, %177 : vector<2x8x16xf32>
    %179 = arith.truncf %178 : vector<2x8x16xf32> to vector<2x8x16xbf16>
    "tpu.trace_start"() <{level = 10 : i32, message = "bqk,bkd->bqd"}> : () -> ()
    %cst_66 = arith.constant dense<0.000000e+00> : vector<2x8x32xf32>
    %180 = tpu.matmul %179, %167, %cst_66 {dimension_numbers = #tpu.dot_dimension_numbers<[2], [1], [1], [2], [0, 0, 0, 1, 1, 2], [0], [0]>} : vector<2x8x16xbf16>, vector<2x16x32xbf16>, vector<2x8x32xf32> -> vector<2x8x32xf32>
    "tpu.trace_stop"() : () -> ()
    %181 = vector.extract_strided_slice %162 {offsets = [0, 0, 32], sizes = [2, 8, 32], strides = [1, 1, 1]} : vector<2x8x128xbf16> to vector<2x8x32xbf16>
    %182 = vector.extract_strided_slice %163 {offsets = [0, 0, 32], sizes = [2, 16, 32], strides = [1, 1, 1]} : vector<2x16x128xbf16> to vector<2x16x32xbf16>
    %183 = vector.extract_strided_slice %164 {offsets = [0, 0, 32], sizes = [2, 16, 32], strides = [1, 1, 1]} : vector<2x16x128xbf16> to vector<2x16x32xbf16>
    "tpu.trace_start"() <{level = 10 : i32, message = "bqd,bkd->bqk"}> : () -> ()
    %cst_67 = arith.constant dense<0.000000e+00> : vector<2x8x16xf32>
    %184 = tpu.matmul %181, %182, %cst_67 {dimension_numbers = #tpu.dot_dimension_numbers<[2], [2], [1], [1], [0, 0, 0, 1, 1, 1], [0], [0]>} : vector<2x8x32xbf16>, vector<2x16x32xbf16>, vector<2x8x16xf32> -> vector<2x8x16xf32>
    "tpu.trace_stop"() : () -> ()
    %cst_68 = arith.constant dense<0xFF800000> : vector<2x8xf32>
    %185 = vector.multi_reduction <maximumf>, %184, %cst_68 [2] : vector<2x8x16xf32> to vector<2x8xf32>
    %186 = vector.shape_cast %185 : vector<2x8xf32> to vector<2x8x1xf32>
    %187 = vector.broadcast %186 : vector<2x8x1xf32> to vector<2x8x16xf32>
    %188 = arith.subf %184, %187 : vector<2x8x16xf32>
    %189 = math.exp %188 : vector<2x8x16xf32>
    %cst_69 = arith.constant dense<0.000000e+00> : vector<2x8xf32>
    %190 = vector.multi_reduction <add>, %189, %cst_69 [2] : vector<2x8x16xf32> to vector<2x8xf32>
    %191 = vector.shape_cast %190 : vector<2x8xf32> to vector<2x8x1xf32>
    %192 = tpu.reciprocal %191 {approx = true} : vector<2x8x1xf32> -> vector<2x8x1xf32>
    %193 = vector.broadcast %192 : vector<2x8x1xf32> to vector<2x8x16xf32>
    %194 = arith.mulf %189, %193 : vector<2x8x16xf32>
    %195 = arith.truncf %194 : vector<2x8x16xf32> to vector<2x8x16xbf16>
    "tpu.trace_start"() <{level = 10 : i32, message = "bqk,bkd->bqd"}> : () -> ()
    %cst_70 = arith.constant dense<0.000000e+00> : vector<2x8x32xf32>
    %196 = tpu.matmul %195, %183, %cst_70 {dimension_numbers = #tpu.dot_dimension_numbers<[2], [1], [1], [2], [0, 0, 0, 1, 1, 2], [0], [0]>} : vector<2x8x16xbf16>, vector<2x16x32xbf16>, vector<2x8x32xf32> -> vector<2x8x32xf32>
    "tpu.trace_stop"() : () -> ()
    %197 = vector.extract_strided_slice %162 {offsets = [0, 0, 64], sizes = [2, 8, 32], strides = [1, 1, 1]} : vector<2x8x128xbf16> to vector<2x8x32xbf16>
    %198 = vector.extract_strided_slice %163 {offsets = [0, 0, 64], sizes = [2, 16, 32], strides = [1, 1, 1]} : vector<2x16x128xbf16> to vector<2x16x32xbf16>
    %199 = vector.extract_strided_slice %164 {offsets = [0, 0, 64], sizes = [2, 16, 32], strides = [1, 1, 1]} : vector<2x16x128xbf16> to vector<2x16x32xbf16>
    "tpu.trace_start"() <{level = 10 : i32, message = "bqd,bkd->bqk"}> : () -> ()
    %cst_71 = arith.constant dense<0.000000e+00> : vector<2x8x16xf32>
    %200 = tpu.matmul %197, %198, %cst_71 {dimension_numbers = #tpu.dot_dimension_numbers<[2], [2], [1], [1], [0, 0, 0, 1, 1, 1], [0], [0]>} : vector<2x8x32xbf16>, vector<2x16x32xbf16>, vector<2x8x16xf32> -> vector<2x8x16xf32>
    "tpu.trace_stop"() : () -> ()
    %cst_72 = arith.constant dense<0xFF800000> : vector<2x8xf32>
    %201 = vector.multi_reduction <maximumf>, %200, %cst_72 [2] : vector<2x8x16xf32> to vector<2x8xf32>
    %202 = vector.shape_cast %201 : vector<2x8xf32> to vector<2x8x1xf32>
    %203 = vector.broadcast %202 : vector<2x8x1xf32> to vector<2x8x16xf32>
    %204 = arith.subf %200, %203 : vector<2x8x16xf32>
    %205 = math.exp %204 : vector<2x8x16xf32>
    %cst_73 = arith.constant dense<0.000000e+00> : vector<2x8xf32>
    %206 = vector.multi_reduction <add>, %205, %cst_73 [2] : vector<2x8x16xf32> to vector<2x8xf32>
    %207 = vector.shape_cast %206 : vector<2x8xf32> to vector<2x8x1xf32>
    %208 = tpu.reciprocal %207 {approx = true} : vector<2x8x1xf32> -> vector<2x8x1xf32>
    %209 = vector.broadcast %208 : vector<2x8x1xf32> to vector<2x8x16xf32>
    %210 = arith.mulf %205, %209 : vector<2x8x16xf32>
    %211 = arith.truncf %210 : vector<2x8x16xf32> to vector<2x8x16xbf16>
    "tpu.trace_start"() <{level = 10 : i32, message = "bqk,bkd->bqd"}> : () -> ()
    %cst_74 = arith.constant dense<0.000000e+00> : vector<2x8x32xf32>
    %212 = tpu.matmul %211, %199, %cst_74 {dimension_numbers = #tpu.dot_dimension_numbers<[2], [1], [1], [2], [0, 0, 0, 1, 1, 2], [0], [0]>} : vector<2x8x16xbf16>, vector<2x16x32xbf16>, vector<2x8x32xf32> -> vector<2x8x32xf32>
    "tpu.trace_stop"() : () -> ()
    %213 = vector.extract_strided_slice %162 {offsets = [0, 0, 96], sizes = [2, 8, 32], strides = [1, 1, 1]} : vector<2x8x128xbf16> to vector<2x8x32xbf16>
    %214 = vector.extract_strided_slice %163 {offsets = [0, 0, 96], sizes = [2, 16, 32], strides = [1, 1, 1]} : vector<2x16x128xbf16> to vector<2x16x32xbf16>
    %215 = vector.extract_strided_slice %164 {offsets = [0, 0, 96], sizes = [2, 16, 32], strides = [1, 1, 1]} : vector<2x16x128xbf16> to vector<2x16x32xbf16>
    "tpu.trace_start"() <{level = 10 : i32, message = "bqd,bkd->bqk"}> : () -> ()
    %cst_75 = arith.constant dense<0.000000e+00> : vector<2x8x16xf32>
    %216 = tpu.matmul %213, %214, %cst_75 {dimension_numbers = #tpu.dot_dimension_numbers<[2], [2], [1], [1], [0, 0, 0, 1, 1, 1], [0], [0]>} : vector<2x8x32xbf16>, vector<2x16x32xbf16>, vector<2x8x16xf32> -> vector<2x8x16xf32>
    "tpu.trace_stop"() : () -> ()
    %cst_76 = arith.constant dense<0xFF800000> : vector<2x8xf32>
    %217 = vector.multi_reduction <maximumf>, %216, %cst_76 [2] : vector<2x8x16xf32> to vector<2x8xf32>
    %218 = vector.shape_cast %217 : vector<2x8xf32> to vector<2x8x1xf32>
    %219 = vector.broadcast %218 : vector<2x8x1xf32> to vector<2x8x16xf32>
    %220 = arith.subf %216, %219 : vector<2x8x16xf32>
    %221 = math.exp %220 : vector<2x8x16xf32>
    %cst_77 = arith.constant dense<0.000000e+00> : vector<2x8xf32>
    %222 = vector.multi_reduction <add>, %221, %cst_77 [2] : vector<2x8x16xf32> to vector<2x8xf32>
    %223 = vector.shape_cast %222 : vector<2x8xf32> to vector<2x8x1xf32>
    %224 = tpu.reciprocal %223 {approx = true} : vector<2x8x1xf32> -> vector<2x8x1xf32>
    %225 = vector.broadcast %224 : vector<2x8x1xf32> to vector<2x8x16xf32>
    %226 = arith.mulf %221, %225 : vector<2x8x16xf32>
    %227 = arith.truncf %226 : vector<2x8x16xf32> to vector<2x8x16xbf16>
    "tpu.trace_start"() <{level = 10 : i32, message = "bqk,bkd->bqd"}> : () -> ()
    %cst_78 = arith.constant dense<0.000000e+00> : vector<2x8x32xf32>
    %228 = tpu.matmul %227, %215, %cst_78 {dimension_numbers = #tpu.dot_dimension_numbers<[2], [1], [1], [2], [0, 0, 0, 1, 1, 2], [0], [0]>} : vector<2x8x16xbf16>, vector<2x16x32xbf16>, vector<2x8x32xf32> -> vector<2x8x32xf32>
    "tpu.trace_stop"() : () -> ()
    %229 = tpu.concatenate %180, %196, %212, %228 in 2 : vector<2x8x32xf32>, vector<2x8x32xf32>, vector<2x8x32xf32>, vector<2x8x32xf32> -> vector<2x8x128xf32>
    %230 = vector.shape_cast %229 : vector<2x8x128xf32> to vector<16x128xf32>
    %231 = arith.truncf %230 : vector<16x128xf32> to vector<16x128xbf16>
    %c0_79 = arith.constant 0 : index
    %c0_80 = arith.constant 0 : index
    %232 = vector.load %arg19[%c0_79, %c0_80] : memref<128x128xbf16, #tpu.memory_space<vmem>>, vector<128x128xbf16>
    %cst_81 = arith.constant dense<0.000000e+00> : vector<16x128xf32>
    %233 = tpu.matmul %231, %232, %cst_81 {dimension_numbers = #tpu.dot_dimension_numbers<[1], [0], [0], [1], [0, 0, 1, 1], [], []>} : vector<16x128xbf16>, vector<128x128xbf16>, vector<16x128xf32> -> vector<16x128xf32>
    %c0_82 = arith.constant 0 : index
    %c0_83 = arith.constant 0 : index
    %234 = vector.load %arg20[%c0_82, %c0_83] : memref<1x128xf32, #tpu.memory_space<vmem>>, vector<1x128xf32>
    %235 = vector.broadcast %234 : vector<1x128xf32> to vector<16x128xf32>
    %236 = arith.addf %233, %235 : vector<16x128xf32>
    %237 = arith.addf %121, %236 : vector<16x128xf32>
    %c0_84 = arith.constant 0 : index
    %c0_85 = arith.constant 0 : index
    %238 = vector.load %arg7[%c0_84, %c0_85] : memref<1x128xf32, #tpu.memory_space<vmem>>, vector<1x128xf32>
    %c0_86 = arith.constant 0 : index
    %c0_87 = arith.constant 0 : index
    %239 = vector.load %arg8[%c0_86, %c0_87] : memref<1x128xf32, #tpu.memory_space<vmem>>, vector<1x128xf32>
    %cst_88 = arith.constant dense<0.000000e+00> : vector<16xf32>
    %240 = vector.multi_reduction <add>, %237, %cst_88 [1] : vector<16x128xf32> to vector<16xf32>
    %241 = vector.shape_cast %240 : vector<16xf32> to vector<16x1xf32>
    %cst_89 = arith.constant 1.280000e+02 : f32
    %242 = vector.broadcast %cst_89 : f32 to vector<16x1xf32>
    %243 = arith.divf %241, %242 : vector<16x1xf32>
    %244 = vector.broadcast %243 : vector<16x1xf32> to vector<16x128xf32>
    %245 = arith.subf %237, %244 : vector<16x128xf32>
    %246 = arith.mulf %245, %245 : vector<16x128xf32>
    %cst_90 = arith.constant dense<0.000000e+00> : vector<16xf32>
    %247 = vector.multi_reduction <add>, %246, %cst_90 [1] : vector<16x128xf32> to vector<16xf32>
    %248 = vector.shape_cast %247 : vector<16xf32> to vector<16x1xf32>
    %cst_91 = arith.constant 1.280000e+02 : f32
    %249 = vector.broadcast %cst_91 : f32 to vector<16x1xf32>
    %250 = arith.divf %248, %249 : vector<16x1xf32>
    %251 = vector.broadcast %243 : vector<16x1xf32> to vector<16x128xf32>
    %252 = arith.subf %237, %251 : vector<16x128xf32>
    %cst_92 = arith.constant 9.99999974E-6 : f32
    %253 = vector.broadcast %cst_92 : f32 to vector<16x1xf32>
    %254 = arith.addf %250, %253 : vector<16x1xf32>
    %255 = math.rsqrt %254 : vector<16x1xf32>
    %256 = vector.broadcast %255 : vector<16x1xf32> to vector<16x128xf32>
    %257 = arith.mulf %252, %256 : vector<16x128xf32>
    %258 = vector.broadcast %238 : vector<1x128xf32> to vector<16x128xf32>
    %259 = arith.mulf %257, %258 : vector<16x128xf32>
    %260 = vector.broadcast %239 : vector<1x128xf32> to vector<16x128xf32>
    %261 = arith.addf %259, %260 : vector<16x128xf32>
    %262 = arith.truncf %261 : vector<16x128xf32> to vector<16x128xbf16>
    %c0_93 = arith.constant 0 : index
    %c0_94 = arith.constant 0 : index
    %263 = vector.load %arg21[%c0_93, %c0_94] : memref<128x512xbf16, #tpu.memory_space<vmem>>, vector<128x512xbf16>
    %cst_95 = arith.constant dense<0.000000e+00> : vector<16x512xf32>
    %264 = tpu.matmul %262, %263, %cst_95 {dimension_numbers = #tpu.dot_dimension_numbers<[1], [0], [0], [1], [0, 0, 1, 1], [], []>} : vector<16x128xbf16>, vector<128x512xbf16>, vector<16x512xf32> -> vector<16x512xf32>
    %c0_96 = arith.constant 0 : index
    %c0_97 = arith.constant 0 : index
    %265 = vector.load %arg22[%c0_96, %c0_97] : memref<1x512xf32, #tpu.memory_space<vmem>>, vector<1x512xf32>
    %266 = vector.broadcast %265 : vector<1x512xf32> to vector<16x512xf32>
    %267 = arith.addf %264, %266 : vector<16x512xf32>
    %cst_98 = arith.constant 5.000000e-01 : f32
    %268 = vector.broadcast %cst_98 : f32 to vector<16x512xf32>
    %269 = arith.mulf %268, %267 : vector<16x512xf32>
    %cst_99 = arith.constant 4.471500e-02 : f32
    %270 = vector.broadcast %cst_99 : f32 to vector<16x512xf32>
    %271 = arith.mulf %270, %267 : vector<16x512xf32>
    %272 = arith.mulf %271, %267 : vector<16x512xf32>
    %273 = arith.mulf %272, %267 : vector<16x512xf32>
    %274 = arith.addf %267, %273 : vector<16x512xf32>
    %cst_100 = arith.constant 0.797884583 : f32
    %275 = vector.broadcast %cst_100 : f32 to vector<16x512xf32>
    %276 = arith.mulf %275, %274 : vector<16x512xf32>
    %277 = math.tanh %276 : vector<16x512xf32>
    %cst_101 = arith.constant 1.000000e+00 : f32
    %278 = vector.broadcast %cst_101 : f32 to vector<16x512xf32>
    %279 = arith.addf %278, %277 : vector<16x512xf32>
    %280 = arith.mulf %269, %279 : vector<16x512xf32>
    %281 = arith.truncf %280 : vector<16x512xf32> to vector<16x512xbf16>
    %c0_102 = arith.constant 0 : index
    %c0_103 = arith.constant 0 : index
    %282 = vector.load %arg23[%c0_102, %c0_103] : memref<512x128xbf16, #tpu.memory_space<vmem>>, vector<512x128xbf16>
    %cst_104 = arith.constant dense<0.000000e+00> : vector<16x128xf32>
    %283 = tpu.matmul %281, %282, %cst_104 {dimension_numbers = #tpu.dot_dimension_numbers<[1], [0], [0], [1], [0, 0, 1, 1], [], []>} : vector<16x512xbf16>, vector<512x128xbf16>, vector<16x128xf32> -> vector<16x128xf32>
    %c0_105 = arith.constant 0 : index
    %c0_106 = arith.constant 0 : index
    %284 = vector.load %arg24[%c0_105, %c0_106] : memref<1x128xf32, #tpu.memory_space<vmem>>, vector<1x128xf32>
    %285 = vector.broadcast %284 : vector<1x128xf32> to vector<16x128xf32>
    %286 = arith.addf %283, %285 : vector<16x128xf32>
    %287 = arith.addf %237, %286 : vector<16x128xf32>
    %288 = vector.shape_cast %287 : vector<16x128xf32> to vector<2x8x128xf32>
    %289 = arith.truncf %288 : vector<2x8x128xf32> to vector<2x8x128xbf16>
    %c0_107 = arith.constant 0 : index
    %c0_108 = arith.constant 0 : index
    %c0_109 = arith.constant 0 : index
    %290 = vector.load %arg25[%c0_107, %c0_108, %c0_109] : memref<2x8x128xbf16, #tpu.memory_space<vmem>>, vector<2x8x128xbf16>
    tpu.vector_store %arg25[%c0_107, %c0_108, %c0_109], %289 {strides = array<i32>} : memref<2x8x128xbf16, #tpu.memory_space<vmem>>, vector<2x8x128xbf16>,
    return
  }
  func.func @transform_0(%arg0: i32) -> (i32, i32, i32) {
    %c0_i32 = arith.constant 0 : i32
    %c0_i32_0 = arith.constant 0 : i32
    %c0_i32_1 = arith.constant 0 : i32
    return %arg0, %c0_i32, %c0_i32_0 : i32, i32, i32
  }
  func.func @transform_1(%arg0: i32) -> (i32, i32, i32) {
    %c0_i32 = arith.constant 0 : i32
    %c0_i32_0 = arith.constant 0 : i32
    %c0_i32_1 = arith.constant 0 : i32
    return %arg0, %c0_i32, %c0_i32_0 : i32, i32, i32
  }
  func.func @transform_2(%arg0: i32) -> (i32, i32) {
    %c0_i32 = arith.constant 0 : i32
    %c0_i32_0 = arith.constant 0 : i32
    %c0_i32_1 = arith.constant 0 : i32
    return %c0_i32, %c0_i32_0 : i32, i32
  }
  func.func @transform_3(%arg0: i32) -> (i32, i32) {
    %c0_i32 = arith.constant 0 : i32
    %c0_i32_0 = arith.constant 0 : i32
    %c0_i32_1 = arith.constant 0 : i32
    return %c0_i32, %c0_i32_0 : i32, i32
  }
  func.func @transform_4(%arg0: i32) -> (i32, i32) {
    %c0_i32 = arith.constant 0 : i32
    %c0_i32_0 = arith.constant 0 : i32
    %c0_i32_1 = arith.constant 0 : i32
    return %c0_i32, %c0_i32_0 : i32, i32
  }
  func.func @transform_5(%arg0: i32) -> (i32, i32) {
    %c0_i32 = arith.constant 0 : i32
    %c0_i32_0 = arith.constant 0 : i32
    %c0_i32_1 = arith.constant 0 : i32
    return %c0_i32, %c0_i32_0 : i32, i32
  }
  func.func @transform_6(%arg0: i32) -> (i32, i32) {
    %c0_i32 = arith.constant 0 : i32
    %c0_i32_0 = arith.constant 0 : i32
    %c0_i32_1 = arith.constant 0 : i32
    return %c0_i32, %c0_i32_0 : i32, i32
  }
  func.func @transform_7(%arg0: i32) -> (i32, i32) {
    %c0_i32 = arith.constant 0 : i32
    %c0_i32_0 = arith.constant 0 : i32
    %c0_i32_1 = arith.constant 0 : i32
    return %c0_i32, %c0_i32_0 : i32, i32
  }
  func.func @transform_8(%arg0: i32) -> (i32, i32) {
    %c0_i32 = arith.constant 0 : i32
    %c0_i32_0 = arith.constant 0 : i32
    %c0_i32_1 = arith.constant 0 : i32
    return %c0_i32, %c0_i32_0 : i32, i32
  }
  func.func @transform_9(%arg0: i32) -> (i32, i32) {
    %c0_i32 = arith.constant 0 : i32
    %c0_i32_0 = arith.constant 0 : i32
    %c0_i32_1 = arith.constant 0 : i32
    return %c0_i32, %c0_i32_0 : i32, i32
  }
  func.func @transform_10(%arg0: i32) -> (i32, i32) {
    %c0_i32 = arith.constant 0 : i32
    %c0_i32_0 = arith.constant 0 : i32
    %c0_i32_1 = arith.constant 0 : i32
    return %c0_i32, %c0_i32_0 : i32, i32
  }
  func.func @transform_11(%arg0: i32) -> (i32, i32) {
    %c0_i32 = arith.constant 0 : i32
    %c0_i32_0 = arith.constant 0 : i32
    %c0_i32_1 = arith.constant 0 : i32
    return %c0_i32, %c0_i32_0 : i32, i32
  }
  func.func @transform_12(%arg0: i32) -> (i32, i32) {
    %c0_i32 = arith.constant 0 : i32
    %c0_i32_0 = arith.constant 0 : i32
    %c0_i32_1 = arith.constant 0 : i32
    return %c0_i32, %c0_i32_0 : i32, i32
  }
  func.func @transform_13(%arg0: i32) -> (i32, i32) {
    %c0_i32 = arith.constant 0 : i32
    %c0_i32_0 = arith.constant 0 : i32
    %c0_i32_1 = arith.constant 0 : i32
    return %c0_i32, %c0_i32_0 : i32, i32
  }
  func.func @transform_14(%arg0: i32) -> (i32, i32) {
    %c0_i32 = arith.constant 0 : i32
    %c0_i32_0 = arith.constant 0 : i32
    %c0_i32_1 = arith.constant 0 : i32
    return %c0_i32, %c0_i32_0 : i32, i32
  }
  func.func @transform_15(%arg0: i32) -> (i32, i32) {
    %c0_i32 = arith.constant 0 : i32
    %c0_i32_0 = arith.constant 0 : i32
    %c0_i32_1 = arith.constant 0 : i32
    return %c0_i32, %c0_i32_0 : i32, i32
  }
  func.func @transform_16(%arg0: i32) -> (i32, i32) {
    %c0_i32 = arith.constant 0 : i32
    %c0_i32_0 = arith.constant 0 : i32
    %c0_i32_1 = arith.constant 0 : i32
    return %c0_i32, %c0_i32_0 : i32, i32
  }
  func.func @transform_17(%arg0: i32) -> (i32, i32) {
    %c0_i32 = arith.constant 0 : i32
    %c0_i32_0 = arith.constant 0 : i32
    %c0_i32_1 = arith.constant 0 : i32
    return %c0_i32, %c0_i32_0 : i32, i32
  }
  func.func @transform_18(%arg0: i32) -> (i32, i32) {
    %c0_i32 = arith.constant 0 : i32
    %c0_i32_0 = arith.constant 0 : i32
    %c0_i32_1 = arith.constant 0 : i32
    return %c0_i32, %c0_i32_0 : i32, i32
  }
  func.func @transform_19(%arg0: i32) -> (i32, i32) {
    %c0_i32 = arith.constant 0 : i32
    %c0_i32_0 = arith.constant 0 : i32
    %c0_i32_1 = arith.constant 0 : i32
    return %c0_i32, %c0_i32_0 : i32, i32
  }
  func.func @transform_20(%arg0: i32) -> (i32, i32) {
    %c0_i32 = arith.constant 0 : i32
    %c0_i32_0 = arith.constant 0 : i32
    %c0_i32_1 = arith.constant 0 : i32
    return %c0_i32, %c0_i32_0 : i32, i32
  }
  func.func @transform_21(%arg0: i32) -> (i32, i32) {
    %c0_i32 = arith.constant 0 : i32
    %c0_i32_0 = arith.constant 0 : i32
    %c0_i32_1 = arith.constant 0 : i32
    return %c0_i32, %c0_i32_0 : i32, i32
  }
  func.func @transform_22(%arg0: i32) -> (i32, i32) {
    %c0_i32 = arith.constant 0 : i32
    %c0_i32_0 = arith.constant 0 : i32
    %c0_i32_1 = arith.constant 0 : i32
    return %c0_i32, %c0_i32_0 : i32, i32
  }
  func.func @transform_23(%arg0: i32) -> (i32, i32) {
    %c0_i32 = arith.constant 0 : i32
    %c0_i32_0 = arith.constant 0 : i32
    %c0_i32_1 = arith.constant 0 : i32
    return %c0_i32, %c0_i32_0 : i32, i32
  }
  func.func @transform_24(%arg0: i32) -> (i32, i32, i32) {
    %c0_i32 = arith.constant 0 : i32
    %c0_i32_0 = arith.constant 0 : i32
    %c0_i32_1 = arith.constant 0 : i32
    return %arg0, %c0_i32, %c0_i32_0 : i32, i32, i32
  }
}

</mosaic_0001>

<llo_original>
// kernel: tpu_custom_call.1
$region0: #{tpu_custom_call.1}
  #allocation0 [shape = 'u32[]', space=smem, size = 0x4, offset = 0x4, fixed_abs, tag = 'smem constant byte address 0x4 - core index']
  #allocation1 [shape = 'u32[144,128]{1,0:T(1,128)}', space=vmem, size = 0x12000, scoped, tag = 'internal scratch']
  %s0 = inlined_call_operand.hbm [shape: bf16[2,8,128], index: 0, kind: input, shape index: {}]
  %s1 = inlined_call_operand.hbm [shape: bf16[2,16,128], index: 1, kind: input, shape index: {}]
  %s2 = inlined_call_operand.vmem [shape: f32[1,128], index: 2, kind: input, shape index: {}]
  %s3 = inlined_call_operand.hbm [shape: f32[1,128], index: 3, kind: input, shape index: {}]
  %s4 = inlined_call_operand.hbm [shape: f32[1,128], index: 4, kind: input, shape index: {}]
  %s5 = inlined_call_operand.hbm [shape: f32[1,128], index: 5, kind: input, shape index: {}]
  %s6 = inlined_call_operand.vmem [shape: f32[1,128], index: 6, kind: input, shape index: {}]
  %s7 = inlined_call_operand.vmem [shape: f32[1,128], index: 7, kind: input, shape index: {}]
  %s8 = inlined_call_operand.hbm [shape: bf16[128,128], index: 8, kind: input, shape index: {}]
  %s9 = inlined_call_operand.vmem [shape: f32[1,128], index: 9, kind: input, shape index: {}]
  %s10 = inlined_call_operand.hbm [shape: bf16[128,256], index: 10, kind: input, shape index: {}]
  %s11 = inlined_call_operand.vmem [shape: f32[1,256], index: 11, kind: input, shape index: {}]
  %s12 = inlined_call_operand.hbm [shape: bf16[128,128], index: 12, kind: input, shape index: {}]
  %s13 = inlined_call_operand.vmem [shape: f32[1,128], index: 13, kind: input, shape index: {}]
  %s14 = inlined_call_operand.hbm [shape: bf16[128,128], index: 14, kind: input, shape index: {}]
  %s15 = inlined_call_operand.vmem [shape: f32[1,128], index: 15, kind: input, shape index: {}]
  %s16 = inlined_call_operand.hbm [shape: bf16[128,256], index: 16, kind: input, shape index: {}]
  %s17 = inlined_call_operand.vmem [shape: f32[1,256], index: 17, kind: input, shape index: {}]
  %s18 = inlined_call_operand.hbm [shape: bf16[128,128], index: 18, kind: input, shape index: {}]
  %s19 = inlined_call_operand.vmem [shape: f32[1,128], index: 19, kind: input, shape index: {}]
  %s20 = inlined_call_operand.hbm [shape: bf16[128,512], index: 20, kind: input, shape index: {}]
  %s21 = inlined_call_operand.vmem [shape: f32[1,512], index: 21, kind: input, shape index: {}]
  %s22 = inlined_call_operand.hbm [shape: bf16[512,128], index: 22, kind: input, shape index: {}]
  %s23 = inlined_call_operand.vmem [shape: f32[1,128], index: 23, kind: input, shape index: {}]
  %s24 = inlined_call_operand.hbm [shape: bf16[2,8,128], index: 24, kind: output, shape index: {}]
  %s25 = sld [smem:[#allocation0]]
  $region158: #{tpu_custom_call.1} parent=0
    _
  %s27 = ssub.s32 1, %s25
  %s28 = scalar_select 0, %s27, %s25
  $region1: #{tpu_custom_call.1} parent=0
    #allocation2 [shape = 'u8[4096]{0}', space=vmem, size = 0x1000, scoped, tag = 'input window, operand 0, single buffered']
    #allocation3 [shape = 's32[1]{0}', space=sflag, size = 0x4, scoped, tag = 'scoped memory for tpu_custom_call.1']
    #allocation4 [shape = 's32[1]{0}', space=sflag, size = 0x4, scoped, tag = 'scoped memory for tpu_custom_call.1']
    #allocation5 [shape = 'u8[8192]{0}', space=vmem, size = 0x2000, scoped, tag = 'input window, operand 1, single buffered']
    #allocation6 [shape = 's32[1]{0}', space=sflag, size = 0x4, scoped, tag = 'scoped memory for tpu_custom_call.1']
    #allocation7 [shape = 'u8[512]{0}', space=vmem, size = 0x400, scoped, tag = 'input window, operand 3, single buffered']
    #allocation8 [shape = 'u8[512]{0}', space=vmem, size = 0x400, scoped, tag = 'input window, operand 4, single buffered']
    #allocation9 [shape = 's32[1]{0}', space=sflag, size = 0x4, scoped, tag = 'scoped memory for tpu_custom_call.1']
    #allocation10 [shape = 'u8[512]{0}', space=vmem, size = 0x400, scoped, tag = 'input window, operand 5, single buffered']
    #allocation11 [shape = 'u8[32768]{0}', space=vmem, size = 0x8000, scoped, tag = 'input window, operand 8, single buffered']
    #allocation12 [shape = 's32[1]{0}', space=sflag, size = 0x4, scoped, tag = 'scoped memory for tpu_custom_call.1']
    #allocation13 [shape = 'u8[65536]{0}', space=vmem, size = 0x10000, scoped, tag = 'input window, operand 10, single buffered']
    #allocation14 [shape = 'u8[32768]{0}', space=vmem, size = 0x8000, scoped, tag = 'input window, operand 12, single buffered']
    #allocation15 [shape = 's32[1]{0}', space=sflag, size = 0x4, scoped, tag = 'scoped memory for tpu_custom_call.1']
    #allocation16 [shape = 'u8[32768]{0}', space=vmem, size = 0x8000, scoped, tag = 'input window, operand 14, single buffered']
    #allocation17 [shape = 'u8[65536]{0}', space=vmem, size = 0x10000, scoped, tag = 'input window, operand 16, single buffered']
    #allocation18 [shape = 's32[1]{0}', space=sflag, size = 0x4, scoped, tag = 'scoped memory for tpu_custom_call.1']
    #allocation19 [shape = 'u8[32768]{0}', space=vmem, size = 0x8000, scoped, tag = 'input window, operand 18, single buffered']
    #allocation20 [shape = 'u8[131072]{0}', space=vmem, size = 0x20000, scoped, tag = 'input window, operand 20, single buffered']
    #allocation21 [shape = 's32[1]{0}', space=sflag, size = 0x4, scoped, tag = 'scoped memory for tpu_custom_call.1']
    #allocation22 [shape = 'u8[131072]{0}', space=vmem, size = 0x20000, scoped, tag = 'input window, operand 22, single buffered']
    #allocation23 [shape = 'u8[4096]{0}', space=vmem, size = 0x1000, scoped, tag = 'output window, operand 0, single buffered']
    %29 = vsyncpa [#allocation3], 0
    %30 = vsyncpa [#allocation6], 0
    %31 = vsyncpa [#allocation9], 0
    %32 = vsyncpa [#allocation12], 0
    %33 = vsyncpa [#allocation15], 0
    %34 = vsyncpa [#allocation18], 0
    %35 = vsyncpa [#allocation21], 0
    %36 = vsyncpa [#allocation4], 0
    // Predicated region
    $region2: #{tpu_custom_call.1} parent=1 // pred_check
      _
    $region3: #{tpu_custom_call.1} parent=1 // pred_check_branch
      %38 = sbr.rel (0) target = $region5
    $region4: #{tpu_custom_call.1} parent=1 // pred_region
      %s40 = ssub.s32 128, 128
      %41 = vsyncadd [#allocation3], %s40
      %s42 = sshll.u32 [#allocation2], 4
      %s43 = int_to_ptr.vmem [resolvable:$true] %s42
      %48 = dma.hbm_to_vmem [thread:$0]  %s0, 128, %s43, [#allocation3], 64, 64, 4
    $region5: #{tpu_custom_call.1} parent=1 // pred_fallthru
      _
    // Predicated region
    $region6: #{tpu_custom_call.1} parent=1 // pred_check
      _
    $region7: #{tpu_custom_call.1} parent=1 // pred_check_branch
      %50 = sbr.rel (0) target = $region9
    $region8: #{tpu_custom_call.1} parent=1 // pred_region
      %s52 = ssub.s32 256, 256
      %53 = vsyncadd [#allocation6], %s52
      %s54 = sshll.u32 [#allocation5], 4
      %s55 = int_to_ptr.vmem [resolvable:$true] %s54
      %60 = dma.hbm_to_vmem [thread:$0]  %s1, 256, %s55, [#allocation6], 64, 64, 4
    $region9: #{tpu_custom_call.1} parent=1 // pred_fallthru
      _
    // Predicated region
    $region10: #{tpu_custom_call.1} parent=1 // pred_check
      _
    $region11: #{tpu_custom_call.1} parent=1 // pred_check_branch
      %62 = sbr.rel (0) target = $region13
    $region12: #{tpu_custom_call.1} parent=1 // pred_region
      _
    $region13: #{tpu_custom_call.1} parent=1 // pred_fallthru
      _
    // Predicated region
    $region14: #{tpu_custom_call.1} parent=1 // pred_check
      _
    $region15: #{tpu_custom_call.1} parent=1 // pred_check_branch
      %64 = sbr.rel (0) target = $region17
    $region16: #{tpu_custom_call.1} parent=1 // pred_region
      %s66 = ssub.s32 16, 16
      %67 = vsyncadd [#allocation6], %s66
      %s69 = sshll.u32 [#allocation7], 4
      %s70 = int_to_ptr.vmem [resolvable:$true] %s69
      %72 = dma.hbm_to_vmem [thread:$0]  %s3, 16, %s70, [#allocation6]
    $region17: #{tpu_custom_call.1} parent=1 // pred_fallthru
      _
    // Predicated region
    $region18: #{tpu_custom_call.1} parent=1 // pred_check
      _
    $region19: #{tpu_custom_call.1} parent=1 // pred_check_branch
      %74 = sbr.rel (0) target = $region21
    $region20: #{tpu_custom_call.1} parent=1 // pred_region
      %s76 = ssub.s32 16, 16
      %77 = vsyncadd [#allocation9], %s76
      %s79 = sshll.u32 [#allocation8], 4
      %s80 = int_to_ptr.vmem [resolvable:$true] %s79
      %82 = dma.hbm_to_vmem [thread:$0]  %s4, 16, %s80, [#allocation9]
    $region21: #{tpu_custom_call.1} parent=1 // pred_fallthru
      _
    // Predicated region
    $region22: #{tpu_custom_call.1} parent=1 // pred_check
      _
    $region23: #{tpu_custom_call.1} parent=1 // pred_check_branch
      %84 = sbr.rel (0) target = $region25
    $region24: #{tpu_custom_call.1} parent=1 // pred_region
      %s86 = ssub.s32 16, 16
      %87 = vsyncadd [#allocation9], %s86
      %s89 = sshll.u32 [#allocation10], 4
      %s90 = int_to_ptr.vmem [resolvable:$true] %s89
      %92 = dma.hbm_to_vmem [thread:$0]  %s5, 16, %s90, [#allocation9]
    $region25: #{tpu_custom_call.1} parent=1 // pred_fallthru
      _
    // Predicated region
    $region26: #{tpu_custom_call.1} parent=1 // pred_check
      _
    $region27: #{tpu_custom_call.1} parent=1 // pred_check_branch
      %94 = sbr.rel (0) target = $region29
    $region28: #{tpu_custom_call.1} parent=1 // pred_region
      _
    $region29: #{tpu_custom_call.1} parent=1 // pred_fallthru
      _
    // Predicated region
    $region30: #{tpu_custom_call.1} parent=1 // pred_check
      _
    $region31: #{tpu_custom_call.1} parent=1 // pred_check_branch
      %96 = sbr.rel (0) target = $region33
    $region32: #{tpu_custom_call.1} parent=1 // pred_region
      _
    $region33: #{tpu_custom_call.1} parent=1 // pred_fallthru
      _
    // Predicated region
    $region34: #{tpu_custom_call.1} parent=1 // pred_check
      _
    $region35: #{tpu_custom_call.1} parent=1 // pred_check_branch
      %98 = sbr.rel (0) target = $region37
    $region36: #{tpu_custom_call.1} parent=1 // pred_region
      %s100 = ssub.s32 1024, 1024
      %101 = vsyncadd [#allocation12], %s100
      %s102 = sshll.u32 [#allocation11], 4
      %s103 = int_to_ptr.vmem [resolvable:$true] %s102
      %108 = dma.hbm_to_vmem [thread:$0]  %s8, 1024, %s103, [#allocation12], 64, 64, 4
    $region37: #{tpu_custom_call.1} parent=1 // pred_fallthru
      _
    // Predicated region
    $region38: #{tpu_custom_call.1} parent=1 // pred_check
      _
    $region39: #{tpu_custom_call.1} parent=1 // pred_check_branch
      %110 = sbr.rel (0) target = $region41
    $region40: #{tpu_custom_call.1} parent=1 // pred_region
      _
    $region41: #{tpu_custom_call.1} parent=1 // pred_fallthru
      _
    // Predicated region
    $region42: #{tpu_custom_call.1} parent=1 // pred_check
      _
    $region43: #{tpu_custom_call.1} parent=1 // pred_check_branch
      %112 = sbr.rel (0) target = $region45
    $region44: #{tpu_custom_call.1} parent=1 // pred_region
      %s114 = ssub.s32 2048, 2048
      %115 = vsyncadd [#allocation12], %s114
      %s116 = sshll.u32 [#allocation13], 4
      %s117 = int_to_ptr.vmem [resolvable:$true] %s116
      %122 = dma.hbm_to_vmem [thread:$0]  %s10, 2048, %s117, [#allocation12], 128, 128, 8
    $region45: #{tpu_custom_call.1} parent=1 // pred_fallthru
      _
    // Predicated region
    $region46: #{tpu_custom_call.1} parent=1 // pred_check
      _
    $region47: #{tpu_custom_call.1} parent=1 // pred_check_branch
      %124 = sbr.rel (0) target = $region49
    $region48: #{tpu_custom_call.1} parent=1 // pred_region
      _
    $region49: #{tpu_custom_call.1} parent=1 // pred_fallthru
      _
    // Predicated region
    $region50: #{tpu_custom_call.1} parent=1 // pred_check
      _
    $region51: #{tpu_custom_call.1} parent=1 // pred_check_branch
      %126 = sbr.rel (0) target = $region53
    $region52: #{tpu_custom_call.1} parent=1 // pred_region
      %s128 = ssub.s32 1024, 1024
      %129 = vsyncadd [#allocation15], %s128
      %s130 = sshll.u32 [#allocation14], 4
      %s131 = int_to_ptr.vmem [resolvable:$true] %s130
      %136 = dma.hbm_to_vmem [thread:$0]  %s12, 1024, %s131, [#allocation15], 64, 64, 4
    $region53: #{tpu_custom_call.1} parent=1 // pred_fallthru
      _
    // Predicated region
    $region54: #{tpu_custom_call.1} parent=1 // pred_check
      _
    $region55: #{tpu_custom_call.1} parent=1 // pred_check_branch
      %138 = sbr.rel (0) target = $region57
    $region56: #{tpu_custom_call.1} parent=1 // pred_region
      _
    $region57: #{tpu_custom_call.1} parent=1 // pred_fallthru
      _
    // Predicated region
    $region58: #{tpu_custom_call.1} parent=1 // pred_check
      _
    $region59: #{tpu_custom_call.1} parent=1 // pred_check_branch
      %140 = sbr.rel (0) target = $region61
    $region60: #{tpu_custom_call.1} parent=1 // pred_region
      %s142 = ssub.s32 1024, 1024
      %143 = vsyncadd [#allocation15], %s142
      %s144 = sshll.u32 [#allocation16], 4
      %s145 = int_to_ptr.vmem [resolvable:$true] %s144
      %150 = dma.hbm_to_vmem [thread:$0]  %s14, 1024, %s145, [#allocation15], 64, 64, 4
    $region61: #{tpu_custom_call.1} parent=1 // pred_fallthru
      _
    // Predicated region
    $region62: #{tpu_custom_call.1} parent=1 // pred_check
      _
    $region63: #{tpu_custom_call.1} parent=1 // pred_check_branch
      %152 = sbr.rel (0) target = $region65
    $region64: #{tpu_custom_call.1} parent=1 // pred_region
      _
    $region65: #{tpu_custom_call.1} parent=1 // pred_fallthru
      _
    // Predicated region
    $region66: #{tpu_custom_call.1} parent=1 // pred_check
      _
    $region67: #{tpu_custom_call.1} parent=1 // pred_check_branch
      %154 = sbr.rel (0) target = $region69
    $region68: #{tpu_custom_call.1} parent=1 // pred_region
      %s156 = ssub.s32 2048, 2048
      %157 = vsyncadd [#allocation18], %s156
      %s158 = sshll.u32 [#allocation17], 4
      %s159 = int_to_ptr.vmem [resolvable:$true] %s158
      %164 = dma.hbm_to_vmem [thread:$0]  %s16, 2048, %s159, [#allocation18], 128, 128, 8
    $region69: #{tpu_custom_call.1} parent=1 // pred_fallthru
      _
    // Predicated region
    $region70: #{tpu_custom_call.1} parent=1 // pred_check
      _
    $region71: #{tpu_custom_call.1} parent=1 // pred_check_branch
      %166 = sbr.rel (0) target = $region73
    $region72: #{tpu_custom_call.1} parent=1 // pred_region
      _
    $region73: #{tpu_custom_call.1} parent=1 // pred_fallthru
      _
    // Predicated region
    $region74: #{tpu_custom_call.1} parent=1 // pred_check
      _
    $region75: #{tpu_custom_call.1} parent=1 // pred_check_branch
      %168 = sbr.rel (0) target = $region77
    $region76: #{tpu_custom_call.1} parent=1 // pred_region
      %s170 = ssub.s32 1024, 1024
      %171 = vsyncadd [#allocation18], %s170
      %s172 = sshll.u32 [#allocation19], 4
      %s173 = int_to_ptr.vmem [resolvable:$true] %s172
      %178 = dma.hbm_to_vmem [thread:$0]  %s18, 1024, %s173, [#allocation18], 64, 64, 4
    $region77: #{tpu_custom_call.1} parent=1 // pred_fallthru
      _
    // Predicated region
    $region78: #{tpu_custom_call.1} parent=1 // pred_check
      _
    $region79: #{tpu_custom_call.1} parent=1 // pred_check_branch
      %180 = sbr.rel (0) target = $region81
    $region80: #{tpu_custom_call.1} parent=1 // pred_region
      _
    $region81: #{tpu_custom_call.1} parent=1 // pred_fallthru
      _
    // Predicated region
    $region82: #{tpu_custom_call.1} parent=1 // pred_check
      _
    $region83: #{tpu_custom_call.1} parent=1 // pred_check_branch
      %182 = sbr.rel (0) target = $region85
    $region84: #{tpu_custom_call.1} parent=1 // pred_region
      %s184 = ssub.s32 4096, 4096
      %185 = vsyncadd [#allocation21], %s184
      %s186 = sshll.u32 [#allocation20], 4
      %s187 = int_to_ptr.vmem [resolvable:$true] %s186
      %192 = dma.hbm_to_vmem [thread:$0]  %s20, 4096, %s187, [#allocation21], 256, 256, 16
    $region85: #{tpu_custom_call.1} parent=1 // pred_fallthru
      _
    // Predicated region
    $region86: #{tpu_custom_call.1} parent=1 // pred_check
      _
    $region87: #{tpu_custom_call.1} parent=1 // pred_check_branch
      %194 = sbr.rel (0) target = $region89
    $region88: #{tpu_custom_call.1} parent=1 // pred_region
      _
    $region89: #{tpu_custom_call.1} parent=1 // pred_fallthru
      _
    // Predicated region
    $region90: #{tpu_custom_call.1} parent=1 // pred_check
      _
    $region91: #{tpu_custom_call.1} parent=1 // pred_check_branch
      %196 = sbr.rel (0) target = $region93
    $region92: #{tpu_custom_call.1} parent=1 // pred_region
      %s198 = ssub.s32 4096, 4096
      %199 = vsyncadd [#allocation21], %s198
      %s200 = sshll.u32 [#allocation22], 4
      %s201 = int_to_ptr.vmem [resolvable:$true] %s200
      %206 = dma.hbm_to_vmem [thread:$0]  %s22, 4096, %s201, [#allocation21], 64, 64, 4
    $region93: #{tpu_custom_call.1} parent=1 // pred_fallthru
      _
    // Predicated region
    $region94: #{tpu_custom_call.1} parent=1 // pred_check
      _
    $region95: #{tpu_custom_call.1} parent=1 // pred_check_branch
      %208 = sbr.rel (0) target = $region97
    $region96: #{tpu_custom_call.1} parent=1 // pred_region
      _
    $region97: #{tpu_custom_call.1} parent=1 // pred_fallthru
      _
    // Predicated region
    $region98: #{tpu_custom_call.1} parent=1 // pred_check
      _
    $region99: #{tpu_custom_call.1} parent=1 // pred_check_branch
      %210 = sbr.rel (0) target = $region101
    $region100: #{tpu_custom_call.1} parent=1 // pred_region
      %211 = dma.done [#allocation3], 128
    $region101: #{tpu_custom_call.1} parent=1 // pred_fallthru
      _
    // Predicated region
    $region102: #{tpu_custom_call.1} parent=1 // pred_check
      _
    $region103: #{tpu_custom_call.1} parent=1 // pred_check_branch
      %213 = sbr.rel (0) target = $region105
    $region104: #{tpu_custom_call.1} parent=1 // pred_region
      %214 = dma.done [#allocation6], 256
    $region105: #{tpu_custom_call.1} parent=1 // pred_fallthru
      _
    // Predicated region
    $region106: #{tpu_custom_call.1} parent=1 // pred_check
      _
    $region107: #{tpu_custom_call.1} parent=1 // pred_check_branch
      %216 = sbr.rel (0) target = $region109
    $region108: #{tpu_custom_call.1} parent=1 // pred_region
      %217 = dma.done [#allocation6], 16
    $region109: #{tpu_custom_call.1} parent=1 // pred_fallthru
      _
    // Predicated region
    $region110: #{tpu_custom_call.1} parent=1 // pred_check
      _
    $region111: #{tpu_custom_call.1} parent=1 // pred_check_branch
      %219 = sbr.rel (0) target = $region113
    $region112: #{tpu_custom_call.1} parent=1 // pred_region
      %220 = dma.done [#allocation9], 16
    $region113: #{tpu_custom_call.1} parent=1 // pred_fallthru
      _
    // Predicated region
    $region114: #{tpu_custom_call.1} parent=1 // pred_check
      _
    $region115: #{tpu_custom_call.1} parent=1 // pred_check_branch
      %222 = sbr.rel (0) target = $region117
    $region116: #{tpu_custom_call.1} parent=1 // pred_region
      %223 = dma.done [#allocation9], 16
    $region117: #{tpu_custom_call.1} parent=1 // pred_fallthru
      _
    // Predicated region
    $region118: #{tpu_custom_call.1} parent=1 // pred_check
      _
    $region119: #{tpu_custom_call.1} parent=1 // pred_check_branch
      %225 = sbr.rel (0) target = $region121
    $region120: #{tpu_custom_call.1} parent=1 // pred_region
      %226 = dma.done [#allocation12], 1024
    $region121: #{tpu_custom_call.1} parent=1 // pred_fallthru
      _
    // Predicated region
    $region122: #{tpu_custom_call.1} parent=1 // pred_check
      _
    $region123: #{tpu_custom_call.1} parent=1 // pred_check_branch
      %228 = sbr.rel (0) target = $region125
    $region124: #{tpu_custom_call.1} parent=1 // pred_region
      %229 = dma.done [#allocation12], 2048
    $region125: #{tpu_custom_call.1} parent=1 // pred_fallthru
      _
    // Predicated region
    $region126: #{tpu_custom_call.1} parent=1 // pred_check
      _
    $region127: #{tpu_custom_call.1} parent=1 // pred_check_branch
      %231 = sbr.rel (0) target = $region129
    $region128: #{tpu_custom_call.1} parent=1 // pred_region
      %232 = dma.done [#allocation15], 1024
    $region129: #{tpu_custom_call.1} parent=1 // pred_fallthru
      _
    // Predicated region
    $region130: #{tpu_custom_call.1} parent=1 // pred_check
      _
    $region131: #{tpu_custom_call.1} parent=1 // pred_check_branch
      %234 = sbr.rel (0) target = $region133
    $region132: #{tpu_custom_call.1} parent=1 // pred_region
      %235 = dma.done [#allocation15], 1024
    $region133: #{tpu_custom_call.1} parent=1 // pred_fallthru
      _
    // Predicated region
    $region134: #{tpu_custom_call.1} parent=1 // pred_check
      _
    $region135: #{tpu_custom_call.1} parent=1 // pred_check_branch
      %237 = sbr.rel (0) target = $region137
    $region136: #{tpu_custom_call.1} parent=1 // pred_region
      %238 = dma.done [#allocation18], 2048
    $region137: #{tpu_custom_call.1} parent=1 // pred_fallthru
      _
    // Predicated region
    $region138: #{tpu_custom_call.1} parent=1 // pred_check
      _
    $region139: #{tpu_custom_call.1} parent=1 // pred_check_branch
      %240 = sbr.rel (0) target = $region141
    $region140: #{tpu_custom_call.1} parent=1 // pred_region
      %241 = dma.done [#allocation18], 1024
    $region141: #{tpu_custom_call.1} parent=1 // pred_fallthru
      _
    // Predicated region
    $region142: #{tpu_custom_call.1} parent=1 // pred_check
      _
    $region143: #{tpu_custom_call.1} parent=1 // pred_check_branch
      %243 = sbr.rel (0) target = $region145
    $region144: #{tpu_custom_call.1} parent=1 // pred_region
      %244 = dma.done [#allocation21], 4096
    $region145: #{tpu_custom_call.1} parent=1 // pred_fallthru
      _
    // Predicated region
    $region146: #{tpu_custom_call.1} parent=1 // pred_check
      _
    $region147: #{tpu_custom_call.1} parent=1 // pred_check_branch
      %246 = sbr.rel (0) target = $region149
    $region148: #{tpu_custom_call.1} parent=1 // pred_region
      %247 = dma.done [#allocation21], 4096
    $region149: #{tpu_custom_call.1} parent=1 // pred_fallthru
      _
    %v249 = vld [vmem:[#allocation2] sm:$0xf]
    %v250 = vld [vmem:[#allocation2 + $0x4] sm:$0xf]
    %v251 = vunpack.c.l.bf16 %v249
    %v252 = vunpack.c.l.bf16 %v250
    %v253 = vld [vmem:[#allocation5] sm:$0xf]
    %v254 = vld [vmem:[#allocation5 + $0x4] sm:$0xf]
    %v255 = vld [vmem:[#allocation5 + $0x8] sm:$0xf]
    %v256 = vld [vmem:[#allocation5 + $0xc] sm:$0xf]
    %v257 = vld [vmem:[%s2] sm:$0x1]
    %v258 = vld [vmem:[#allocation7] sm:$0x1]
    %259 = vadd.xlane.f32.xlu0 %v251
    %v260 = vpop.xlane.xlu0 %259
    %261 = vadd.xlane.f32.xlu0 %v252
    %v262 = vpop.xlane.xlu0 %261
    %v263 = vrcp.pop 128.0
    %v264 = vmul.f32 %v260, %v263
    %v265 = vmul.f32 %v262, %v263
    %v266 = vsub.f32 %v251, %v264
    %v267 = vsub.f32 %v252, %v265
    %v268 = vmul.f32 %v266, %v266
    %v269 = vmul.f32 %v267, %v267
    %270 = vadd.xlane.f32.xlu0 %v268
    %v271 = vpop.xlane.xlu0 %270
    %272 = vadd.xlane.f32.xlu0 %v269
    %v273 = vpop.xlane.xlu0 %272
    %v274 = vmul.f32 %v271, %v263
    %v275 = vmul.f32 %v273, %v263
    %v276 = vadd.f32 %v274, 1e-05
    %v277 = vadd.f32 %v275, 1e-05
    %v278 = vrsqrt.pop %v276
    %v279 = vrsqrt.pop %v277
    %v280 = vmul.f32 %v266, %v278
    %v281 = vmul.f32 %v267, %v279
    %v283 = vlaneseq
    %v284 = vshrl.u32 %v283, 7
    %v285 = vsub.s32 0, %v284
    %v286 = vrot.slane %v257, %v285
    %v288 = vmul.f32 %v280, %v286
    %v289 = vmul.f32 %v281, %v286
    %v291 = vlaneseq
    %v292 = vshrl.u32 %v291, 7
    %v293 = vsub.s32 0, %v292
    %v294 = vrot.slane %v258, %v293
    %v296 = vadd.f32 %v288, %v294
    %v297 = vadd.f32 %v289, %v294
    %v298 = vpack.c.bf16 %v297, %v296
    %v299 = vld [vmem:[#allocation11] sm:$0xf]
    %v300 = vld [vmem:[#allocation11 + $0x4] sm:$0xf]
    %v301 = vld [vmem:[#allocation11 + $0x8] sm:$0xf]
    %v302 = vld [vmem:[#allocation11 + $0xc] sm:$0xf]
    %v303 = vld [vmem:[#allocation11 + $0x10] sm:$0xf]
    %v304 = vld [vmem:[#allocation11 + $0x14] sm:$0xf]
    %v305 = vld [vmem:[#allocation11 + $0x18] sm:$0xf]
    %v306 = vld [vmem:[#allocation11 + $0x1c] sm:$0xf]
    %v307 = vld [vmem:[#allocation11 + $0x20] sm:$0xf]
    %v308 = vld [vmem:[#allocation11 + $0x24] sm:$0xf]
    %v309 = vld [vmem:[#allocation11 + $0x28] sm:$0xf]
    %v310 = vld [vmem:[#allocation11 + $0x2c] sm:$0xf]
    %v311 = vld [vmem:[#allocation11 + $0x30] sm:$0xf]
    %v312 = vld [vmem:[#allocation11 + $0x34] sm:$0xf]
    %v313 = vld [vmem:[#allocation11 + $0x38] sm:$0xf]
    %v314 = vld [vmem:[#allocation11 + $0x3c] sm:$0xf]
    %v315 = vld [vmem:[%s9] sm:$0x1]
    %v317 = vlaneseq
    %v318 = vshrl.u32 %v317, 7
    %v319 = vsub.s32 0, %v318
    %v320 = vrot.slane %v315, %v319
    %v338 = vunpack.c.l.b16 %v299
    %v339 = vunpack.c.l.b16 %v300
    %v340 = vunpack.c.l.b16 %v301
    %v341 = vunpack.c.l.b16 %v302
    %v342 = vunpack.c.l.b16 %v303
    %v343 = vunpack.c.l.b16 %v304
    %v344 = vunpack.c.l.b16 %v305
    %v345 = vunpack.c.l.b16 %v306
    %v346 = vunpack.c.l.b16 %v307
    %v347 = vunpack.c.l.b16 %v308
    %v348 = vunpack.c.l.b16 %v309
    %v349 = vunpack.c.l.b16 %v310
    %v350 = vunpack.c.l.b16 %v311
    %v351 = vunpack.c.l.b16 %v312
    %v352 = vunpack.c.l.b16 %v313
    %v353 = vunpack.c.l.b16 %v314
    %v354 = vpack.c.b16 %v339, %v338
    %v355 = vpack.c.b16 %v341, %v340
    %v356 = vpack.c.b16 %v343, %v342
    %v357 = vpack.c.b16 %v345, %v344
    %v358 = vpack.c.b16 %v347, %v346
    %v359 = vpack.c.b16 %v349, %v348
    %v360 = vpack.c.b16 %v351, %v350
    %v361 = vpack.c.b16 %v353, %v352
    %370 = vmatprep.subr.bf16.mxu0 0
    %371 = vmatpush1.bf16.msra.mxu0 %v361
    %372 = vmatprep.subr.bf16.mxu0 0
    %373 = vmatpush1.bf16.msra.mxu0 %v360
    %374 = vmatprep.subr.bf16.mxu0 0
    %375 = vmatpush1.bf16.msra.mxu0 %v359
    %376 = vmatprep.subr.bf16.mxu0 0
    %377 = vmatpush1.bf16.msra.mxu0 %v358
    %378 = vmatprep.subr.bf16.mxu0 0
    %379 = vmatpush1.bf16.msra.mxu0 %v357
    %380 = vmatprep.subr.bf16.mxu0 0
    %381 = vmatpush1.bf16.msra.mxu0 %v356
    %382 = vmatprep.subr.bf16.mxu0 0
    %383 = vmatpush1.bf16.msra.mxu0 %v355
    %384 = vmatprep.subr.bf16.mxu0 0
    %385 = vmatpush1.bf16.msra.mxu0 %v354
    %386 = vmatprep.subr.bf16.mxu0 0
    %387 = vmatpush2.bf16.msra.mxu0 0
    %388 = vmatprep.subr.bf16.mxu0 0
    %389 = vmatpush2.bf16.msra.mxu0 0
    %390 = vmatprep.subr.bf16.mxu0 0
    %391 = vmatpush2.bf16.msra.mxu0 0
    %392 = vmatprep.subr.bf16.mxu0 0
    %393 = vmatpush2.bf16.msra.mxu0 0
    %394 = vmatprep.subr.bf16.mxu0 0
    %395 = vmatpush2.bf16.msra.mxu0 0
    %396 = vmatprep.subr.bf16.mxu0 0
    %397 = vmatpush2.bf16.msra.mxu0 0
    %398 = vmatprep.subr.bf16.mxu0 0
    %399 = vmatpush2.bf16.msra.mxu0 0
    %400 = vmatprep.subr.bf16.mxu0 0
    %401 = vmatpush2.bf16.msra.mxu0 0
    %402 = vmatprep.mubr.bf16.mxu0 0
    %403 = vmatmul.mubr.bf16.gmra.mxu0 %v298
    %v404 = vpop.f32.mrf.mxu0
    %v405 = vadd.f32 %v320, %v404
    %v406 = vpop.f32.mrf.mxu0
    %v407 = vpop.f32.mrf.mxu0
    %v408 = vadd.f32 %v320, %v407
    %v409 = vpop.f32.mrf.mxu0
    %410 = vdwg.mxu0
    %v411 = vpack.c.bf16 %v408, %v405
    %v412 = vld [vmem:[#allocation13] sm:$0xff]
    %v413 = vld [vmem:[#allocation13 + $0x8] sm:$0xff]
    %v414 = vld [vmem:[#allocation13 + $0x10] sm:$0xff]
    %v415 = vld [vmem:[#allocation13 + $0x18] sm:$0xff]
    %v416 = vld [vmem:[#allocation13 + $0x20] sm:$0xff]
    %v417 = vld [vmem:[#allocation13 + $0x28] sm:$0xff]
    %v418 = vld [vmem:[#allocation13 + $0x30] sm:$0xff]
    %v419 = vld [vmem:[#allocation13 + $0x38] sm:$0xff]
    %v420 = vld [vmem:[#allocation13 + $0x40] sm:$0xff]
    %v421 = vld [vmem:[#allocation13 + $0x48] sm:$0xff]
    %v422 = vld [vmem:[#allocation13 + $0x50] sm:$0xff]
    %v423 = vld [vmem:[#allocation13 + $0x58] sm:$0xff]
    %v424 = vld [vmem:[#allocation13 + $0x60] sm:$0xff]
    %v425 = vld [vmem:[#allocation13 + $0x68] sm:$0xff]
    %v426 = vld [vmem:[#allocation13 + $0x70] sm:$0xff]
    %v427 = vld [vmem:[#allocation13 + $0x78] sm:$0xff]
    %v428 = vld [vmem:[%s11] sm:$0x3]
    %v430 = vlaneseq
    %v431 = vshrl.u32 %v430, 7
    %v432 = vsub.s32 0, %v431
    %v433 = vrot.slane %v428, %v432
    %v434 = vlaneseq
    %v435 = vshrl.u32 %v434, 7
    %v436 = vsub.s32 1, %v435
    %v437 = vrot.slane %v428, %v436
    %v456 = vunpack.c.l.b16 %v412
    %v457 = vunpack.c.h.b16 %v412
    %v458 = vunpack.c.l.b16 %v413
    %v459 = vunpack.c.h.b16 %v413
    %v460 = vunpack.c.l.b16 %v414
    %v461 = vunpack.c.h.b16 %v414
    %v462 = vunpack.c.l.b16 %v415
    %v463 = vunpack.c.h.b16 %v415
    %v464 = vunpack.c.l.b16 %v416
    %v465 = vunpack.c.h.b16 %v416
    %v466 = vunpack.c.l.b16 %v417
    %v467 = vunpack.c.h.b16 %v417
    %v468 = vunpack.c.l.b16 %v418
    %v469 = vunpack.c.h.b16 %v418
    %v470 = vunpack.c.l.b16 %v419
    %v471 = vunpack.c.h.b16 %v419
    %v472 = vunpack.c.l.b16 %v420
    %v473 = vunpack.c.h.b16 %v420
    %v474 = vunpack.c.l.b16 %v421
    %v475 = vunpack.c.h.b16 %v421
    %v476 = vunpack.c.l.b16 %v422
    %v477 = vunpack.c.h.b16 %v422
    %v478 = vunpack.c.l.b16 %v423
    %v479 = vunpack.c.h.b16 %v423
    %v480 = vunpack.c.l.b16 %v424
    %v481 = vunpack.c.h.b16 %v424
    %v482 = vunpack.c.l.b16 %v425
    %v483 = vunpack.c.h.b16 %v425
    %v484 = vunpack.c.l.b16 %v426
    %v485 = vunpack.c.h.b16 %v426
    %v486 = vunpack.c.l.b16 %v427
    %v487 = vunpack.c.h.b16 %v427
    %v488 = vpack.c.b16 %v458, %v456
    %v489 = vpack.c.b16 %v459, %v457
    %v490 = vpack.c.b16 %v462, %v460
    %v491 = vpack.c.b16 %v463, %v461
    %v492 = vpack.c.b16 %v466, %v464
    %v493 = vpack.c.b16 %v467, %v465
    %v494 = vpack.c.b16 %v470, %v468
    %v495 = vpack.c.b16 %v471, %v469
    %v496 = vpack.c.b16 %v474, %v472
    %v497 = vpack.c.b16 %v475, %v473
    %v498 = vpack.c.b16 %v478, %v476
    %v499 = vpack.c.b16 %v479, %v477
    %v500 = vpack.c.b16 %v482, %v480
    %v501 = vpack.c.b16 %v483, %v481
    %v502 = vpack.c.b16 %v486, %v484
    %v503 = vpack.c.b16 %v487, %v485
    %520 = vmatprep.subr.bf16.mxu0 %v503
    %521 = vmatpush1.bf16.msra.mxu0 %v502
    %522 = vmatprep.subr.bf16.mxu0 %v501
    %523 = vmatpush1.bf16.msra.mxu0 %v500
    %524 = vmatprep.subr.bf16.mxu0 %v499
    %525 = vmatpush1.bf16.msra.mxu0 %v498
    %526 = vmatprep.subr.bf16.mxu0 %v497
    %527 = vmatpush1.bf16.msra.mxu0 %v496
    %528 = vmatprep.subr.bf16.mxu0 %v495
    %529 = vmatpush1.bf16.msra.mxu0 %v494
    %530 = vmatprep.subr.bf16.mxu0 %v493
    %531 = vmatpush1.bf16.msra.mxu0 %v492
    %532 = vmatprep.subr.bf16.mxu0 %v491
    %533 = vmatpush1.bf16.msra.mxu0 %v490
    %534 = vmatprep.subr.bf16.mxu0 %v489
    %535 = vmatpush1.bf16.msra.mxu0 %v488
    %536 = vmatprep.subr.bf16.mxu0 0
    %537 = vmatpush2.bf16.msra.mxu0 0
    %538 = vmatprep.subr.bf16.mxu0 0
    %539 = vmatpush2.bf16.msra.mxu0 0
    %540 = vmatprep.subr.bf16.mxu0 0
    %541 = vmatpush2.bf16.msra.mxu0 0
    %542 = vmatprep.subr.bf16.mxu0 0
    %543 = vmatpush2.bf16.msra.mxu0 0
    %544 = vmatprep.subr.bf16.mxu0 0
    %545 = vmatpush2.bf16.msra.mxu0 0
    %546 = vmatprep.subr.bf16.mxu0 0
    %547 = vmatpush2.bf16.msra.mxu0 0
    %548 = vmatprep.subr.bf16.mxu0 0
    %549 = vmatpush2.bf16.msra.mxu0 0
    %550 = vmatprep.subr.bf16.mxu0 0
    %551 = vmatpush2.bf16.msra.mxu0 0
    %552 = vmatprep.mubr.bf16.mxu0 0
    %553 = vmatmul.mubr.bf16.gmra.mxu0 %v298
    %v554 = vpop.f32.mrf.mxu0
    %v555 = vadd.f32 %v433, %v554
    %v556 = vpop.f32.mrf.mxu0
    %v557 = vadd.f32 %v437, %v556
    %v558 = vpop.f32.mrf.mxu0
    %v559 = vadd.f32 %v433, %v558
    %v560 = vpop.f32.mrf.mxu0
    %v561 = vadd.f32 %v437, %v560
    %562 = vdwg.mxu0
    %v563 = vpack.c.bf16 %v559, %v555
    %v564 = vpack.c.bf16 %v561, %v557
    %v566 = vunpack.c.l.b16 %v411
    %v567 = vunpack.c.h.b16 %v411
    %v568 = vpack.c.b16 %v566, %v566
    %v569 = vpack.c.b16 %v567, %v567
    %v571 = vunpack.c.l.b16 %v563
    %v572 = vunpack.c.h.b16 %v563
    %v573 = vpack.c.b16 %v571, %v571
    %v574 = vpack.c.b16 %v572, %v572
    %v576 = vunpack.c.l.b16 %v564
    %v577 = vunpack.c.h.b16 %v564
    %v578 = vpack.c.b16 %v576, %v576
    %v579 = vpack.c.b16 %v577, %v577
    %vm580 = vcmask 261120
    %v582 = vsel %vm580, %v568, 0
    %v585 = vsel %vm580, %v573, 0
    %587 = vmatprep.subr.bf16.mxu0 0
    %588 = vmatpush1.bf16.xpose.msra.mxu0 0
    %589 = vmatprep.subr.bf16.mxu0 0
    %590 = vmatpush1.bf16.xpose.msra.mxu0 0
    %591 = vmatprep.subr.bf16.mxu0 0
    %592 = vmatpush1.bf16.xpose.msra.mxu0 0
    %593 = vmatprep.subr.bf16.mxu0 0
    %594 = vmatpush1.bf16.xpose.msra.mxu0 0
    %595 = vmatprep.subr.bf16.mxu0 0
    %596 = vmatpush1.bf16.xpose.msra.mxu0 0
    %597 = vmatprep.subr.bf16.mxu0 0
    %598 = vmatpush1.bf16.xpose.msra.mxu0 0
    %599 = vmatprep.subr.bf16.mxu0 0
    %600 = vmatpush1.bf16.xpose.msra.mxu0 0
    %601 = vmatprep.subr.bf16.mxu0 0
    %602 = vmatpush1.bf16.xpose.msra.mxu0 %v585
    %603 = vmatprep.subr.bf16.mxu0 0
    %604 = vmatpush2.bf16.xpose.msra.mxu0 0
    %605 = vmatprep.subr.bf16.mxu0 0
    %606 = vmatpush2.bf16.xpose.msra.mxu0 0
    %607 = vmatprep.subr.bf16.mxu0 0
    %608 = vmatpush2.bf16.xpose.msra.mxu0 0
    %609 = vmatprep.subr.bf16.mxu0 0
    %610 = vmatpush2.bf16.xpose.msra.mxu0 0
    %611 = vmatprep.subr.bf16.mxu0 0
    %612 = vmatpush2.bf16.xpose.msra.mxu0 0
    %613 = vmatprep.subr.bf16.mxu0 0
    %614 = vmatpush2.bf16.xpose.msra.mxu0 0
    %615 = vmatprep.subr.bf16.mxu0 0
    %616 = vmatpush2.bf16.xpose.msra.mxu0 0
    %617 = vmatprep.subr.bf16.mxu0 0
    %618 = vmatpush2.bf16.xpose.msra.mxu0 0
    %619 = vmatprep.mubr.bf16.mxu0 0
    %620 = vmatmul.mubr.bf16.gmra.mxu0 %v582
    %v621 = vpop.f32.mrf.mxu0
    %v622 = vadd.f32 0.0, %v621
    %v623 = vpop.f32.mrf.mxu0
    %v624 = vpop.f32.mrf.mxu0
    %v625 = vpop.f32.mrf.mxu0
    %626 = vdwg.mxu0
    %v628 = vsel %vm580, %v569, 0
    %v631 = vsel %vm580, %v574, 0
    %633 = vmatprep.subr.bf16.mxu0 0
    %634 = vmatpush1.bf16.xpose.msra.mxu0 0
    %635 = vmatprep.subr.bf16.mxu0 0
    %636 = vmatpush1.bf16.xpose.msra.mxu0 0
    %637 = vmatprep.subr.bf16.mxu0 0
    %638 = vmatpush1.bf16.xpose.msra.mxu0 0
    %639 = vmatprep.subr.bf16.mxu0 0
    %640 = vmatpush1.bf16.xpose.msra.mxu0 0
    %641 = vmatprep.subr.bf16.mxu0 0
    %642 = vmatpush1.bf16.xpose.msra.mxu0 0
    %643 = vmatprep.subr.bf16.mxu0 0
    %644 = vmatpush1.bf16.xpose.msra.mxu0 0
    %645 = vmatprep.subr.bf16.mxu0 0
    %646 = vmatpush1.bf16.xpose.msra.mxu0 0
    %647 = vmatprep.subr.bf16.mxu0 0
    %648 = vmatpush1.bf16.xpose.msra.mxu0 %v631
    %649 = vmatprep.subr.bf16.mxu0 0
    %650 = vmatpush2.bf16.xpose.msra.mxu0 0
    %651 = vmatprep.subr.bf16.mxu0 0
    %652 = vmatpush2.bf16.xpose.msra.mxu0 0
    %653 = vmatprep.subr.bf16.mxu0 0
    %654 = vmatpush2.bf16.xpose.msra.mxu0 0
    %655 = vmatprep.subr.bf16.mxu0 0
    %656 = vmatpush2.bf16.xpose.msra.mxu0 0
    %657 = vmatprep.subr.bf16.mxu0 0
    %658 = vmatpush2.bf16.xpose.msra.mxu0 0
    %659 = vmatprep.subr.bf16.mxu0 0
    %660 = vmatpush2.bf16.xpose.msra.mxu0 0
    %661 = vmatprep.subr.bf16.mxu0 0
    %662 = vmatpush2.bf16.xpose.msra.mxu0 0
    %663 = vmatprep.subr.bf16.mxu0 0
    %664 = vmatpush2.bf16.xpose.msra.mxu0 0
    %665 = vmatprep.mubr.bf16.mxu0 0
    %666 = vmatmul.mubr.bf16.gmra.mxu0 %v628
    %v667 = vpop.f32.mrf.mxu0
    %v668 = vadd.f32 0.0, %v667
    %v669 = vpop.f32.mrf.mxu0
    %v670 = vpop.f32.mrf.mxu0
    %v671 = vpop.f32.mrf.mxu0
    %672 = vdwg.mxu0
    %vm673 = vcmask 64512
    %v674 = vsel %vm673, %v622, -inf
    %675 = vmax.xlane.f32.xlu0 %v674
    %v676 = vpop.xlane.xlu0 %675
    %v677 = vsel %vm673, %v668, -inf
    %678 = vmax.xlane.f32.xlu0 %v677
    %v679 = vpop.xlane.xlu0 %678
    %v680 = vsub.f32 %v622, %v676
    %v681 = vsub.f32 %v668, %v679
    %v682 = vmul.f32 %v680, 1.442695
    %v683 = vpow.pop %v682
    %v684 = vmul.f32 %v681, 1.442695
    %v685 = vpow.pop %v684
    %v686 = vsel %vm673, %v683, 0.0
    %687 = vadd.xlane.f32.xlu0 %v686
    %v688 = vpop.xlane.xlu0 %687
    %v689 = vsel %vm673, %v685, 0.0
    %690 = vadd.xlane.f32.xlu0 %v689
    %v691 = vpop.xlane.xlu0 %690
    %v692 = vrcp.pop %v688
    %v693 = vrcp.pop %v691
    %v694 = vmul.f32 %v683, %v692
    %v695 = vmul.f32 %v685, %v693
    %v696 = vpack.c.bf16 %v694, %v694
    %v697 = vpack.c.bf16 %v695, %v695
    %v699 = vsel %vm673, %v696, 0
    %vm701 = vcmask 1043456
    %v703 = vsel %vm701, %v578, 0
    %705 = vmatprep.subr.bf16.mxu0 0
    %706 = vmatpush1.bf16.msra.mxu0 0
    %707 = vmatprep.subr.bf16.mxu0 0
    %708 = vmatpush1.bf16.msra.mxu0 0
    %709 = vmatprep.subr.bf16.mxu0 0
    %710 = vmatpush1.bf16.msra.mxu0 0
    %711 = vmatprep.subr.bf16.mxu0 0
    %712 = vmatpush1.bf16.msra.mxu0 0
    %713 = vmatprep.subr.bf16.mxu0 0
    %714 = vmatpush1.bf16.msra.mxu0 0
    %715 = vmatprep.subr.bf16.mxu0 0
    %716 = vmatpush1.bf16.msra.mxu0 0
    %717 = vmatprep.subr.bf16.mxu0 0
    %718 = vmatpush1.bf16.msra.mxu0 0
    %719 = vmatprep.subr.bf16.mxu0 0
    %720 = vmatpush1.bf16.msra.mxu0 %v703
    %721 = vmatprep.subr.bf16.mxu0 0
    %722 = vmatpush2.bf16.msra.mxu0 0
    %723 = vmatprep.subr.bf16.mxu0 0
    %724 = vmatpush2.bf16.msra.mxu0 0
    %725 = vmatprep.subr.bf16.mxu0 0
    %726 = vmatpush2.bf16.msra.mxu0 0
    %727 = vmatprep.subr.bf16.mxu0 0
    %728 = vmatpush2.bf16.msra.mxu0 0
    %729 = vmatprep.subr.bf16.mxu0 0
    %730 = vmatpush2.bf16.msra.mxu0 0
    %731 = vmatprep.subr.bf16.mxu0 0
    %732 = vmatpush2.bf16.msra.mxu0 0
    %733 = vmatprep.subr.bf16.mxu0 0
    %734 = vmatpush2.bf16.msra.mxu0 0
    %735 = vmatprep.subr.bf16.mxu0 0
    %736 = vmatpush2.bf16.msra.mxu0 0
    %737 = vmatprep.mubr.bf16.mxu0 0
    %738 = vmatmul.mubr.bf16.gmra.mxu0 %v699
    %v739 = vpop.f32.mrf.mxu0
    %v740 = vadd.f32 0.0, %v739
    %v741 = vpop.f32.mrf.mxu0
    %v742 = vpop.f32.mrf.mxu0
    %v743 = vpop.f32.mrf.mxu0
    %744 = vdwg.mxu0
    %v746 = vsel %vm673, %v697, 0
    %v749 = vsel %vm701, %v579, 0
    %751 = vmatprep.subr.bf16.mxu0 0
    %752 = vmatpush1.bf16.msra.mxu0 0
    %753 = vmatprep.subr.bf16.mxu0 0
    %754 = vmatpush1.bf16.msra.mxu0 0
    %755 = vmatprep.subr.bf16.mxu0 0
    %756 = vmatpush1.bf16.msra.mxu0 0
    %757 = vmatprep.subr.bf16.mxu0 0
    %758 = vmatpush1.bf16.msra.mxu0 0
    %759 = vmatprep.subr.bf16.mxu0 0
    %760 = vmatpush1.bf16.msra.mxu0 0
    %761 = vmatprep.subr.bf16.mxu0 0
    %762 = vmatpush1.bf16.msra.mxu0 0
    %763 = vmatprep.subr.bf16.mxu0 0
    %764 = vmatpush1.bf16.msra.mxu0 0
    %765 = vmatprep.subr.bf16.mxu0 0
    %766 = vmatpush1.bf16.msra.mxu0 %v749
    %767 = vmatprep.subr.bf16.mxu0 0
    %768 = vmatpush2.bf16.msra.mxu0 0
    %769 = vmatprep.subr.bf16.mxu0 0
    %770 = vmatpush2.bf16.msra.mxu0 0
    %771 = vmatprep.subr.bf16.mxu0 0
    %772 = vmatpush2.bf16.msra.mxu0 0
    %773 = vmatprep.subr.bf16.mxu0 0
    %774 = vmatpush2.bf16.msra.mxu0 0
    %775 = vmatprep.subr.bf16.mxu0 0
    %776 = vmatpush2.bf16.msra.mxu0 0
    %777 = vmatprep.subr.bf16.mxu0 0
    %778 = vmatpush2.bf16.msra.mxu0 0
    %779 = vmatprep.subr.bf16.mxu0 0
    %780 = vmatpush2.bf16.msra.mxu0 0
    %781 = vmatprep.subr.bf16.mxu0 0
    %782 = vmatpush2.bf16.msra.mxu0 0
    %783 = vmatprep.mubr.bf16.mxu0 0
    %784 = vmatmul.mubr.bf16.gmra.mxu0 %v746
    %v785 = vpop.f32.mrf.mxu0
    %v786 = vadd.f32 0.0, %v785
    %v787 = vpop.f32.mrf.mxu0
    %v788 = vpop.f32.mrf.mxu0
    %v789 = vpop.f32.mrf.mxu0
    %790 = vdwg.mxu0
    %791 = vrot.lane.b32.xlu0 %v568, 96
    %v792 = vpop.permute.xlu0 %791
    %793 = vrot.lane.b32.xlu0 %v573, 96
    %v794 = vpop.permute.xlu0 %793
    %v796 = vsel %vm580, %v792, 0
    %v799 = vsel %vm580, %v794, 0
    %801 = vmatprep.subr.bf16.mxu0 0
    %802 = vmatpush1.bf16.xpose.msra.mxu0 0
    %803 = vmatprep.subr.bf16.mxu0 0
    %804 = vmatpush1.bf16.xpose.msra.mxu0 0
    %805 = vmatprep.subr.bf16.mxu0 0
    %806 = vmatpush1.bf16.xpose.msra.mxu0 0
    %807 = vmatprep.subr.bf16.mxu0 0
    %808 = vmatpush1.bf16.xpose.msra.mxu0 0
    %809 = vmatprep.subr.bf16.mxu0 0
    %810 = vmatpush1.bf16.xpose.msra.mxu0 0
    %811 = vmatprep.subr.bf16.mxu0 0
    %812 = vmatpush1.bf16.xpose.msra.mxu0 0
    %813 = vmatprep.subr.bf16.mxu0 0
    %814 = vmatpush1.bf16.xpose.msra.mxu0 0
    %815 = vmatprep.subr.bf16.mxu0 0
    %816 = vmatpush1.bf16.xpose.msra.mxu0 %v799
    %817 = vmatprep.subr.bf16.mxu0 0
    %818 = vmatpush2.bf16.xpose.msra.mxu0 0
    %819 = vmatprep.subr.bf16.mxu0 0
    %820 = vmatpush2.bf16.xpose.msra.mxu0 0
    %821 = vmatprep.subr.bf16.mxu0 0
    %822 = vmatpush2.bf16.xpose.msra.mxu0 0
    %823 = vmatprep.subr.bf16.mxu0 0
    %824 = vmatpush2.bf16.xpose.msra.mxu0 0
    %825 = vmatprep.subr.bf16.mxu0 0
    %826 = vmatpush2.bf16.xpose.msra.mxu0 0
    %827 = vmatprep.subr.bf16.mxu0 0
    %828 = vmatpush2.bf16.xpose.msra.mxu0 0
    %829 = vmatprep.subr.bf16.mxu0 0
    %830 = vmatpush2.bf16.xpose.msra.mxu0 0
    %831 = vmatprep.subr.bf16.mxu0 0
    %832 = vmatpush2.bf16.xpose.msra.mxu0 0
    %833 = vmatprep.mubr.bf16.mxu0 0
    %834 = vmatmul.mubr.bf16.gmra.mxu0 %v796
    %v835 = vpop.f32.mrf.mxu0
    %v836 = vadd.f32 0.0, %v835
    %v837 = vpop.f32.mrf.mxu0
    %v838 = vpop.f32.mrf.mxu0
    %v839 = vpop.f32.mrf.mxu0
    %840 = vdwg.mxu0
    %841 = vrot.lane.b32.xlu0 %v569, 96
    %v842 = vpop.permute.xlu0 %841
    %843 = vrot.lane.b32.xlu0 %v574, 96
    %v844 = vpop.permute.xlu0 %843
    %v846 = vsel %vm580, %v842, 0
    %v849 = vsel %vm580, %v844, 0
    %851 = vmatprep.subr.bf16.mxu0 0
    %852 = vmatpush1.bf16.xpose.msra.mxu0 0
    %853 = vmatprep.subr.bf16.mxu0 0
    %854 = vmatpush1.bf16.xpose.msra.mxu0 0
    %855 = vmatprep.subr.bf16.mxu0 0
    %856 = vmatpush1.bf16.xpose.msra.mxu0 0
    %857 = vmatprep.subr.bf16.mxu0 0
    %858 = vmatpush1.bf16.xpose.msra.mxu0 0
    %859 = vmatprep.subr.bf16.mxu0 0
    %860 = vmatpush1.bf16.xpose.msra.mxu0 0
    %861 = vmatprep.subr.bf16.mxu0 0
    %862 = vmatpush1.bf16.xpose.msra.mxu0 0
    %863 = vmatprep.subr.bf16.mxu0 0
    %864 = vmatpush1.bf16.xpose.msra.mxu0 0
    %865 = vmatprep.subr.bf16.mxu0 0
    %866 = vmatpush1.bf16.xpose.msra.mxu0 %v849
    %867 = vmatprep.subr.bf16.mxu0 0
    %868 = vmatpush2.bf16.xpose.msra.mxu0 0
    %869 = vmatprep.subr.bf16.mxu0 0
    %870 = vmatpush2.bf16.xpose.msra.mxu0 0
    %871 = vmatprep.subr.bf16.mxu0 0
    %872 = vmatpush2.bf16.xpose.msra.mxu0 0
    %873 = vmatprep.subr.bf16.mxu0 0
    %874 = vmatpush2.bf16.xpose.msra.mxu0 0
    %875 = vmatprep.subr.bf16.mxu0 0
    %876 = vmatpush2.bf16.xpose.msra.mxu0 0
    %877 = vmatprep.subr.bf16.mxu0 0
    %878 = vmatpush2.bf16.xpose.msra.mxu0 0
    %879 = vmatprep.subr.bf16.mxu0 0
    %880 = vmatpush2.bf16.xpose.msra.mxu0 0
    %881 = vmatprep.subr.bf16.mxu0 0
    %882 = vmatpush2.bf16.xpose.msra.mxu0 0
    %883 = vmatprep.mubr.bf16.mxu0 0
    %884 = vmatmul.mubr.bf16.gmra.mxu0 %v846
    %v885 = vpop.f32.mrf.mxu0
    %v886 = vadd.f32 0.0, %v885
    %v887 = vpop.f32.mrf.mxu0
    %v888 = vpop.f32.mrf.mxu0
    %v889 = vpop.f32.mrf.mxu0
    %890 = vdwg.mxu0
    %v891 = vsel %vm673, %v836, -inf
    %892 = vmax.xlane.f32.xlu0 %v891
    %v893 = vpop.xlane.xlu0 %892
    %v894 = vsel %vm673, %v886, -inf
    %895 = vmax.xlane.f32.xlu0 %v894
    %v896 = vpop.xlane.xlu0 %895
    %v897 = vsub.f32 %v836, %v893
    %v898 = vsub.f32 %v886, %v896
    %v899 = vmul.f32 %v897, 1.442695
    %v900 = vpow.pop %v899
    %v901 = vmul.f32 %v898, 1.442695
    %v902 = vpow.pop %v901
    %v903 = vsel %vm673, %v900, 0.0
    %904 = vadd.xlane.f32.xlu0 %v903
    %v905 = vpop.xlane.xlu0 %904
    %v906 = vsel %vm673, %v902, 0.0
    %907 = vadd.xlane.f32.xlu0 %v906
    %v908 = vpop.xlane.xlu0 %907
    %v909 = vrcp.pop %v905
    %v910 = vrcp.pop %v908
    %v911 = vmul.f32 %v900, %v909
    %v912 = vmul.f32 %v902, %v910
    %v913 = vpack.c.bf16 %v911, %v911
    %v914 = vpack.c.bf16 %v912, %v912
    %915 = vrot.lane.b32.xlu0 %v578, 96
    %v916 = vpop.permute.xlu0 %915
    %v918 = vsel %vm673, %v913, 0
    %v921 = vsel %vm701, %v916, 0
    %923 = vmatprep.subr.bf16.mxu0 0
    %924 = vmatpush1.bf16.msra.mxu0 0
    %925 = vmatprep.subr.bf16.mxu0 0
    %926 = vmatpush1.bf16.msra.mxu0 0
    %927 = vmatprep.subr.bf16.mxu0 0
    %928 = vmatpush1.bf16.msra.mxu0 0
    %929 = vmatprep.subr.bf16.mxu0 0
    %930 = vmatpush1.bf16.msra.mxu0 0
    %931 = vmatprep.subr.bf16.mxu0 0
    %932 = vmatpush1.bf16.msra.mxu0 0
    %933 = vmatprep.subr.bf16.mxu0 0
    %934 = vmatpush1.bf16.msra.mxu0 0
    %935 = vmatprep.subr.bf16.mxu0 0
    %936 = vmatpush1.bf16.msra.mxu0 0
    %937 = vmatprep.subr.bf16.mxu0 0
    %938 = vmatpush1.bf16.msra.mxu0 %v921
    %939 = vmatprep.subr.bf16.mxu0 0
    %940 = vmatpush2.bf16.msra.mxu0 0
    %941 = vmatprep.subr.bf16.mxu0 0
    %942 = vmatpush2.bf16.msra.mxu0 0
    %943 = vmatprep.subr.bf16.mxu0 0
    %944 = vmatpush2.bf16.msra.mxu0 0
    %945 = vmatprep.subr.bf16.mxu0 0
    %946 = vmatpush2.bf16.msra.mxu0 0
    %947 = vmatprep.subr.bf16.mxu0 0
    %948 = vmatpush2.bf16.msra.mxu0 0
    %949 = vmatprep.subr.bf16.mxu0 0
    %950 = vmatpush2.bf16.msra.mxu0 0
    %951 = vmatprep.subr.bf16.mxu0 0
    %952 = vmatpush2.bf16.msra.mxu0 0
    %953 = vmatprep.subr.bf16.mxu0 0
    %954 = vmatpush2.bf16.msra.mxu0 0
    %955 = vmatprep.mubr.bf16.mxu0 0
    %956 = vmatmul.mubr.bf16.gmra.mxu0 %v918
    %v957 = vpop.f32.mrf.mxu0
    %v958 = vadd.f32 0.0, %v957
    %v959 = vpop.f32.mrf.mxu0
    %v960 = vpop.f32.mrf.mxu0
    %v961 = vpop.f32.mrf.mxu0
    %962 = vdwg.mxu0
    %963 = vrot.lane.b32.xlu0 %v579, 96
    %v964 = vpop.permute.xlu0 %963
    %v966 = vsel %vm673, %v914, 0
    %v969 = vsel %vm701, %v964, 0
    %971 = vmatprep.subr.bf16.mxu0 0
    %972 = vmatpush1.bf16.msra.mxu0 0
    %973 = vmatprep.subr.bf16.mxu0 0
    %974 = vmatpush1.bf16.msra.mxu0 0
    %975 = vmatprep.subr.bf16.mxu0 0
    %976 = vmatpush1.bf16.msra.mxu0 0
    %977 = vmatprep.subr.bf16.mxu0 0
    %978 = vmatpush1.bf16.msra.mxu0 0
    %979 = vmatprep.subr.bf16.mxu0 0
    %980 = vmatpush1.bf16.msra.mxu0 0
    %981 = vmatprep.subr.bf16.mxu0 0
    %982 = vmatpush1.bf16.msra.mxu0 0
    %983 = vmatprep.subr.bf16.mxu0 0
    %984 = vmatpush1.bf16.msra.mxu0 0
    %985 = vmatprep.subr.bf16.mxu0 0
    %986 = vmatpush1.bf16.msra.mxu0 %v969
    %987 = vmatprep.subr.bf16.mxu0 0
    %988 = vmatpush2.bf16.msra.mxu0 0
    %989 = vmatprep.subr.bf16.mxu0 0
    %990 = vmatpush2.bf16.msra.mxu0 0
    %991 = vmatprep.subr.bf16.mxu0 0
    %992 = vmatpush2.bf16.msra.mxu0 0
    %993 = vmatprep.subr.bf16.mxu0 0
    %994 = vmatpush2.bf16.msra.mxu0 0
    %995 = vmatprep.subr.bf16.mxu0 0
    %996 = vmatpush2.bf16.msra.mxu0 0
    %997 = vmatprep.subr.bf16.mxu0 0
    %998 = vmatpush2.bf16.msra.mxu0 0
    %999 = vmatprep.subr.bf16.mxu0 0
    %1000 = vmatpush2.bf16.msra.mxu0 0
    %1001 = vmatprep.subr.bf16.mxu0 0
    %1002 = vmatpush2.bf16.msra.mxu0 0
    %1003 = vmatprep.mubr.bf16.mxu0 0
    %1004 = vmatmul.mubr.bf16.gmra.mxu0 %v966
    %v1005 = vpop.f32.mrf.mxu0
    %v1006 = vadd.f32 0.0, %v1005
    %v1007 = vpop.f32.mrf.mxu0
    %v1008 = vpop.f32.mrf.mxu0
    %v1009 = vpop.f32.mrf.mxu0
    %1010 = vdwg.mxu0
    %1011 = vrot.lane.b32.xlu0 %v568, 64
    %v1012 = vpop.permute.xlu0 %1011
    %1013 = vrot.lane.b32.xlu0 %v573, 64
    %v1014 = vpop.permute.xlu0 %1013
    %v1016 = vsel %vm580, %v1012, 0
    %v1019 = vsel %vm580, %v1014, 0
    %1021 = vmatprep.subr.bf16.mxu0 0
    %1022 = vmatpush1.bf16.xpose.msra.mxu0 0
    %1023 = vmatprep.subr.bf16.mxu0 0
    %1024 = vmatpush1.bf16.xpose.msra.mxu0 0
    %1025 = vmatprep.subr.bf16.mxu0 0
    %1026 = vmatpush1.bf16.xpose.msra.mxu0 0
    %1027 = vmatprep.subr.bf16.mxu0 0
    %1028 = vmatpush1.bf16.xpose.msra.mxu0 0
    %1029 = vmatprep.subr.bf16.mxu0 0
    %1030 = vmatpush1.bf16.xpose.msra.mxu0 0
    %1031 = vmatprep.subr.bf16.mxu0 0
    %1032 = vmatpush1.bf16.xpose.msra.mxu0 0
    %1033 = vmatprep.subr.bf16.mxu0 0
    %1034 = vmatpush1.bf16.xpose.msra.mxu0 0
    %1035 = vmatprep.subr.bf16.mxu0 0
    %1036 = vmatpush1.bf16.xpose.msra.mxu0 %v1019
    %1037 = vmatprep.subr.bf16.mxu0 0
    %1038 = vmatpush2.bf16.xpose.msra.mxu0 0
    %1039 = vmatprep.subr.bf16.mxu0 0
    %1040 = vmatpush2.bf16.xpose.msra.mxu0 0
    %1041 = vmatprep.subr.bf16.mxu0 0
    %1042 = vmatpush2.bf16.xpose.msra.mxu0 0
    %1043 = vmatprep.subr.bf16.mxu0 0
    %1044 = vmatpush2.bf16.xpose.msra.mxu0 0
    %1045 = vmatprep.subr.bf16.mxu0 0
    %1046 = vmatpush2.bf16.xpose.msra.mxu0 0
    %1047 = vmatprep.subr.bf16.mxu0 0
    %1048 = vmatpush2.bf16.xpose.msra.mxu0 0
    %1049 = vmatprep.subr.bf16.mxu0 0
    %1050 = vmatpush2.bf16.xpose.msra.mxu0 0
    %1051 = vmatprep.subr.bf16.mxu0 0
    %1052 = vmatpush2.bf16.xpose.msra.mxu0 0
    %1053 = vmatprep.mubr.bf16.mxu0 0
    %1054 = vmatmul.mubr.bf16.gmra.mxu0 %v1016
    %v1055 = vpop.f32.mrf.mxu0
    %v1056 = vadd.f32 0.0, %v1055
    %v1057 = vpop.f32.mrf.mxu0
    %v1058 = vpop.f32.mrf.mxu0
    %v1059 = vpop.f32.mrf.mxu0
    %1060 = vdwg.mxu0
    %1061 = vrot.lane.b32.xlu0 %v569, 64
    %v1062 = vpop.permute.xlu0 %1061
    %1063 = vrot.lane.b32.xlu0 %v574, 64
    %v1064 = vpop.permute.xlu0 %1063
    %v1066 = vsel %vm580, %v1062, 0
    %v1069 = vsel %vm580, %v1064, 0
    %1071 = vmatprep.subr.bf16.mxu0 0
    %1072 = vmatpush1.bf16.xpose.msra.mxu0 0
    %1073 = vmatprep.subr.bf16.mxu0 0
    %1074 = vmatpush1.bf16.xpose.msra.mxu0 0
    %1075 = vmatprep.subr.bf16.mxu0 0
    %1076 = vmatpush1.bf16.xpose.msra.mxu0 0
    %1077 = vmatprep.subr.bf16.mxu0 0
    %1078 = vmatpush1.bf16.xpose.msra.mxu0 0
    %1079 = vmatprep.subr.bf16.mxu0 0
    %1080 = vmatpush1.bf16.xpose.msra.mxu0 0
    %1081 = vmatprep.subr.bf16.mxu0 0
    %1082 = vmatpush1.bf16.xpose.msra.mxu0 0
    %1083 = vmatprep.subr.bf16.mxu0 0
    %1084 = vmatpush1.bf16.xpose.msra.mxu0 0
    %1085 = vmatprep.subr.bf16.mxu0 0
    %1086 = vmatpush1.bf16.xpose.msra.mxu0 %v1069
    %1087 = vmatprep.subr.bf16.mxu0 0
    %1088 = vmatpush2.bf16.xpose.msra.mxu0 0
    %1089 = vmatprep.subr.bf16.mxu0 0
    %1090 = vmatpush2.bf16.xpose.msra.mxu0 0
    %1091 = vmatprep.subr.bf16.mxu0 0
    %1092 = vmatpush2.bf16.xpose.msra.mxu0 0
    %1093 = vmatprep.subr.bf16.mxu0 0
    %1094 = vmatpush2.bf16.xpose.msra.mxu0 0
    %1095 = vmatprep.subr.bf16.mxu0 0
    %1096 = vmatpush2.bf16.xpose.msra.mxu0 0
    %1097 = vmatprep.subr.bf16.mxu0 0
    %1098 = vmatpush2.bf16.xpose.msra.mxu0 0
    %1099 = vmatprep.subr.bf16.mxu0 0
    %1100 = vmatpush2.bf16.xpose.msra.mxu0 0
    %1101 = vmatprep.subr.bf16.mxu0 0
    %1102 = vmatpush2.bf16.xpose.msra.mxu0 0
    %1103 = vmatprep.mubr.bf16.mxu0 0
    %1104 = vmatmul.mubr.bf16.gmra.mxu0 %v1066
    %v1105 = vpop.f32.mrf.mxu0
    %v1106 = vadd.f32 0.0, %v1105
    %v1107 = vpop.f32.mrf.mxu0
    %v1108 = vpop.f32.mrf.mxu0
    %v1109 = vpop.f32.mrf.mxu0
    %1110 = vdwg.mxu0
    %v1111 = vsel %vm673, %v1056, -inf
    %1112 = vmax.xlane.f32.xlu0 %v1111
    %v1113 = vpop.xlane.xlu0 %1112
    %v1114 = vsel %vm673, %v1106, -inf
    %1115 = vmax.xlane.f32.xlu0 %v1114
    %v1116 = vpop.xlane.xlu0 %1115
    %v1117 = vsub.f32 %v1056, %v1113
    %v1118 = vsub.f32 %v1106, %v1116
    %v1119 = vmul.f32 %v1117, 1.442695
    %v1120 = vpow.pop %v1119
    %v1121 = vmul.f32 %v1118, 1.442695
    %v1122 = vpow.pop %v1121
    %v1123 = vsel %vm673, %v1120, 0.0
    %1124 = vadd.xlane.f32.xlu0 %v1123
    %v1125 = vpop.xlane.xlu0 %1124
    %v1126 = vsel %vm673, %v1122, 0.0
    %1127 = vadd.xlane.f32.xlu0 %v1126
    %v1128 = vpop.xlane.xlu0 %1127
    %v1129 = vrcp.pop %v1125
    %v1130 = vrcp.pop %v1128
    %v1131 = vmul.f32 %v1120, %v1129
    %v1132 = vmul.f32 %v1122, %v1130
    %v1133 = vpack.c.bf16 %v1131, %v1131
    %v1134 = vpack.c.bf16 %v1132, %v1132
    %1135 = vrot.lane.b32.xlu0 %v578, 64
    %v1136 = vpop.permute.xlu0 %1135
    %v1138 = vsel %vm673, %v1133, 0
    %v1141 = vsel %vm701, %v1136, 0
    %1143 = vmatprep.subr.bf16.mxu0 0
    %1144 = vmatpush1.bf16.msra.mxu0 0
    %1145 = vmatprep.subr.bf16.mxu0 0
    %1146 = vmatpush1.bf16.msra.mxu0 0
    %1147 = vmatprep.subr.bf16.mxu0 0
    %1148 = vmatpush1.bf16.msra.mxu0 0
    %1149 = vmatprep.subr.bf16.mxu0 0
    %1150 = vmatpush1.bf16.msra.mxu0 0
    %1151 = vmatprep.subr.bf16.mxu0 0
    %1152 = vmatpush1.bf16.msra.mxu0 0
    %1153 = vmatprep.subr.bf16.mxu0 0
    %1154 = vmatpush1.bf16.msra.mxu0 0
    %1155 = vmatprep.subr.bf16.mxu0 0
    %1156 = vmatpush1.bf16.msra.mxu0 0
    %1157 = vmatprep.subr.bf16.mxu0 0
    %1158 = vmatpush1.bf16.msra.mxu0 %v1141
    %1159 = vmatprep.subr.bf16.mxu0 0
    %1160 = vmatpush2.bf16.msra.mxu0 0
    %1161 = vmatprep.subr.bf16.mxu0 0
    %1162 = vmatpush2.bf16.msra.mxu0 0
    %1163 = vmatprep.subr.bf16.mxu0 0
    %1164 = vmatpush2.bf16.msra.mxu0 0
    %1165 = vmatprep.subr.bf16.mxu0 0
    %1166 = vmatpush2.bf16.msra.mxu0 0
    %1167 = vmatprep.subr.bf16.mxu0 0
    %1168 = vmatpush2.bf16.msra.mxu0 0
    %1169 = vmatprep.subr.bf16.mxu0 0
    %1170 = vmatpush2.bf16.msra.mxu0 0
    %1171 = vmatprep.subr.bf16.mxu0 0
    %1172 = vmatpush2.bf16.msra.mxu0 0
    %1173 = vmatprep.subr.bf16.mxu0 0
    %1174 = vmatpush2.bf16.msra.mxu0 0
    %1175 = vmatprep.mubr.bf16.mxu0 0
    %1176 = vmatmul.mubr.bf16.gmra.mxu0 %v1138
    %v1177 = vpop.f32.mrf.mxu0
    %v1178 = vadd.f32 0.0, %v1177
    %v1179 = vpop.f32.mrf.mxu0
    %v1180 = vpop.f32.mrf.mxu0
    %v1181 = vpop.f32.mrf.mxu0
    %1182 = vdwg.mxu0
    %1183 = vrot.lane.b32.xlu0 %v579, 64
    %v1184 = vpop.permute.xlu0 %1183
    %v1186 = vsel %vm673, %v1134, 0
    %v1189 = vsel %vm701, %v1184, 0
    %1191 = vmatprep.subr.bf16.mxu0 0
    %1192 = vmatpush1.bf16.msra.mxu0 0
    %1193 = vmatprep.subr.bf16.mxu0 0
    %1194 = vmatpush1.bf16.msra.mxu0 0
    %1195 = vmatprep.subr.bf16.mxu0 0
    %1196 = vmatpush1.bf16.msra.mxu0 0
    %1197 = vmatprep.subr.bf16.mxu0 0
    %1198 = vmatpush1.bf16.msra.mxu0 0
    %1199 = vmatprep.subr.bf16.mxu0 0
    %1200 = vmatpush1.bf16.msra.mxu0 0
    %1201 = vmatprep.subr.bf16.mxu0 0
    %1202 = vmatpush1.bf16.msra.mxu0 0
    %1203 = vmatprep.subr.bf16.mxu0 0
    %1204 = vmatpush1.bf16.msra.mxu0 0
    %1205 = vmatprep.subr.bf16.mxu0 0
    %1206 = vmatpush1.bf16.msra.mxu0 %v1189
    %1207 = vmatprep.subr.bf16.mxu0 0
    %1208 = vmatpush2.bf16.msra.mxu0 0
    %1209 = vmatprep.subr.bf16.mxu0 0
    %1210 = vmatpush2.bf16.msra.mxu0 0
    %1211 = vmatprep.subr.bf16.mxu0 0
    %1212 = vmatpush2.bf16.msra.mxu0 0
    %1213 = vmatprep.subr.bf16.mxu0 0
    %1214 = vmatpush2.bf16.msra.mxu0 0
    %1215 = vmatprep.subr.bf16.mxu0 0
    %1216 = vmatpush2.bf16.msra.mxu0 0
    %1217 = vmatprep.subr.bf16.mxu0 0
    %1218 = vmatpush2.bf16.msra.mxu0 0
    %1219 = vmatprep.subr.bf16.mxu0 0
    %1220 = vmatpush2.bf16.msra.mxu0 0
    %1221 = vmatprep.subr.bf16.mxu0 0
    %1222 = vmatpush2.bf16.msra.mxu0 0
    %1223 = vmatprep.mubr.bf16.mxu0 0
    %1224 = vmatmul.mubr.bf16.gmra.mxu0 %v1186
    %v1225 = vpop.f32.mrf.mxu0
    %v1226 = vadd.f32 0.0, %v1225
    %v1227 = vpop.f32.mrf.mxu0
    %v1228 = vpop.f32.mrf.mxu0
    %v1229 = vpop.f32.mrf.mxu0
    %1230 = vdwg.mxu0
    %1231 = vrot.lane.b32.xlu0 %v568, 32
    %v1232 = vpop.permute.xlu0 %1231
    %1233 = vrot.lane.b32.xlu0 %v573, 32
    %v1234 = vpop.permute.xlu0 %1233
    %v1236 = vsel %vm580, %v1232, 0
    %v1239 = vsel %vm580, %v1234, 0
    %1241 = vmatprep.subr.bf16.mxu0 0
    %1242 = vmatpush1.bf16.xpose.msra.mxu0 0
    %1243 = vmatprep.subr.bf16.mxu0 0
    %1244 = vmatpush1.bf16.xpose.msra.mxu0 0
    %1245 = vmatprep.subr.bf16.mxu0 0
    %1246 = vmatpush1.bf16.xpose.msra.mxu0 0
    %1247 = vmatprep.subr.bf16.mxu0 0
    %1248 = vmatpush1.bf16.xpose.msra.mxu0 0
    %1249 = vmatprep.subr.bf16.mxu0 0
    %1250 = vmatpush1.bf16.xpose.msra.mxu0 0
    %1251 = vmatprep.subr.bf16.mxu0 0
    %1252 = vmatpush1.bf16.xpose.msra.mxu0 0
    %1253 = vmatprep.subr.bf16.mxu0 0
    %1254 = vmatpush1.bf16.xpose.msra.mxu0 0
    %1255 = vmatprep.subr.bf16.mxu0 0
    %1256 = vmatpush1.bf16.xpose.msra.mxu0 %v1239
    %1257 = vmatprep.subr.bf16.mxu0 0
    %1258 = vmatpush2.bf16.xpose.msra.mxu0 0
    %1259 = vmatprep.subr.bf16.mxu0 0
    %1260 = vmatpush2.bf16.xpose.msra.mxu0 0
    %1261 = vmatprep.subr.bf16.mxu0 0
    %1262 = vmatpush2.bf16.xpose.msra.mxu0 0
    %1263 = vmatprep.subr.bf16.mxu0 0
    %1264 = vmatpush2.bf16.xpose.msra.mxu0 0
    %1265 = vmatprep.subr.bf16.mxu0 0
    %1266 = vmatpush2.bf16.xpose.msra.mxu0 0
    %1267 = vmatprep.subr.bf16.mxu0 0
    %1268 = vmatpush2.bf16.xpose.msra.mxu0 0
    %1269 = vmatprep.subr.bf16.mxu0 0
    %1270 = vmatpush2.bf16.xpose.msra.mxu0 0
    %1271 = vmatprep.subr.bf16.mxu0 0
    %1272 = vmatpush2.bf16.xpose.msra.mxu0 0
    %1273 = vmatprep.mubr.bf16.mxu0 0
    %1274 = vmatmul.mubr.bf16.gmra.mxu0 %v1236
    %v1275 = vpop.f32.mrf.mxu0
    %v1276 = vadd.f32 0.0, %v1275
    %v1277 = vpop.f32.mrf.mxu0
    %v1278 = vpop.f32.mrf.mxu0
    %v1279 = vpop.f32.mrf.mxu0
    %1280 = vdwg.mxu0
    %1281 = vrot.lane.b32.xlu0 %v569, 32
    %v1282 = vpop.permute.xlu0 %1281
    %1283 = vrot.lane.b32.xlu0 %v574, 32
    %v1284 = vpop.permute.xlu0 %1283
    %v1286 = vsel %vm580, %v1282, 0
    %v1289 = vsel %vm580, %v1284, 0
    %1291 = vmatprep.subr.bf16.mxu0 0
    %1292 = vmatpush1.bf16.xpose.msra.mxu0 0
    %1293 = vmatprep.subr.bf16.mxu0 0
    %1294 = vmatpush1.bf16.xpose.msra.mxu0 0
    %1295 = vmatprep.subr.bf16.mxu0 0
    %1296 = vmatpush1.bf16.xpose.msra.mxu0 0
    %1297 = vmatprep.subr.bf16.mxu0 0
    %1298 = vmatpush1.bf16.xpose.msra.mxu0 0
    %1299 = vmatprep.subr.bf16.mxu0 0
    %1300 = vmatpush1.bf16.xpose.msra.mxu0 0
    %1301 = vmatprep.subr.bf16.mxu0 0
    %1302 = vmatpush1.bf16.xpose.msra.mxu0 0
    %1303 = vmatprep.subr.bf16.mxu0 0
    %1304 = vmatpush1.bf16.xpose.msra.mxu0 0
    %1305 = vmatprep.subr.bf16.mxu0 0
    %1306 = vmatpush1.bf16.xpose.msra.mxu0 %v1289
    %1307 = vmatprep.subr.bf16.mxu0 0
    %1308 = vmatpush2.bf16.xpose.msra.mxu0 0
    %1309 = vmatprep.subr.bf16.mxu0 0
    %1310 = vmatpush2.bf16.xpose.msra.mxu0 0
    %1311 = vmatprep.subr.bf16.mxu0 0
    %1312 = vmatpush2.bf16.xpose.msra.mxu0 0
    %1313 = vmatprep.subr.bf16.mxu0 0
    %1314 = vmatpush2.bf16.xpose.msra.mxu0 0
    %1315 = vmatprep.subr.bf16.mxu0 0
    %1316 = vmatpush2.bf16.xpose.msra.mxu0 0
    %1317 = vmatprep.subr.bf16.mxu0 0
    %1318 = vmatpush2.bf16.xpose.msra.mxu0 0
    %1319 = vmatprep.subr.bf16.mxu0 0
    %1320 = vmatpush2.bf16.xpose.msra.mxu0 0
    %1321 = vmatprep.subr.bf16.mxu0 0
    %1322 = vmatpush2.bf16.xpose.msra.mxu0 0
    %1323 = vmatprep.mubr.bf16.mxu0 0
    %1324 = vmatmul.mubr.bf16.gmra.mxu0 %v1286
    %v1325 = vpop.f32.mrf.mxu0
    %v1326 = vadd.f32 0.0, %v1325
    %v1327 = vpop.f32.mrf.mxu0
    %v1328 = vpop.f32.mrf.mxu0
    %v1329 = vpop.f32.mrf.mxu0
    %1330 = vdwg.mxu0
    %v1331 = vsel %vm673, %v1276, -inf
    %1332 = vmax.xlane.f32.xlu0 %v1331
    %v1333 = vpop.xlane.xlu0 %1332
    %v1334 = vsel %vm673, %v1326, -inf
    %1335 = vmax.xlane.f32.xlu0 %v1334
    %v1336 = vpop.xlane.xlu0 %1335
    %v1337 = vsub.f32 %v1276, %v1333
    %v1338 = vsub.f32 %v1326, %v1336
    %v1339 = vmul.f32 %v1337, 1.442695
    %v1340 = vpow.pop %v1339
    %v1341 = vmul.f32 %v1338, 1.442695
    %v1342 = vpow.pop %v1341
    %v1343 = vsel %vm673, %v1340, 0.0
    %1344 = vadd.xlane.f32.xlu0 %v1343
    %v1345 = vpop.xlane.xlu0 %1344
    %v1346 = vsel %vm673, %v1342, 0.0
    %1347 = vadd.xlane.f32.xlu0 %v1346
    %v1348 = vpop.xlane.xlu0 %1347
    %v1349 = vrcp.pop %v1345
    %v1350 = vrcp.pop %v1348
    %v1351 = vmul.f32 %v1340, %v1349
    %v1352 = vmul.f32 %v1342, %v1350
    %v1353 = vpack.c.bf16 %v1351, %v1351
    %v1354 = vpack.c.bf16 %v1352, %v1352
    %1355 = vrot.lane.b32.xlu0 %v578, 32
    %v1356 = vpop.permute.xlu0 %1355
    %v1358 = vsel %vm673, %v1353, 0
    %v1361 = vsel %vm701, %v1356, 0
    %1363 = vmatprep.subr.bf16.mxu0 0
    %1364 = vmatpush1.bf16.msra.mxu0 0
    %1365 = vmatprep.subr.bf16.mxu0 0
    %1366 = vmatpush1.bf16.msra.mxu0 0
    %1367 = vmatprep.subr.bf16.mxu0 0
    %1368 = vmatpush1.bf16.msra.mxu0 0
    %1369 = vmatprep.subr.bf16.mxu0 0
    %1370 = vmatpush1.bf16.msra.mxu0 0
    %1371 = vmatprep.subr.bf16.mxu0 0
    %1372 = vmatpush1.bf16.msra.mxu0 0
    %1373 = vmatprep.subr.bf16.mxu0 0
    %1374 = vmatpush1.bf16.msra.mxu0 0
    %1375 = vmatprep.subr.bf16.mxu0 0
    %1376 = vmatpush1.bf16.msra.mxu0 0
    %1377 = vmatprep.subr.bf16.mxu0 0
    %1378 = vmatpush1.bf16.msra.mxu0 %v1361
    %1379 = vmatprep.subr.bf16.mxu0 0
    %1380 = vmatpush2.bf16.msra.mxu0 0
    %1381 = vmatprep.subr.bf16.mxu0 0
    %1382 = vmatpush2.bf16.msra.mxu0 0
    %1383 = vmatprep.subr.bf16.mxu0 0
    %1384 = vmatpush2.bf16.msra.mxu0 0
    %1385 = vmatprep.subr.bf16.mxu0 0
    %1386 = vmatpush2.bf16.msra.mxu0 0
    %1387 = vmatprep.subr.bf16.mxu0 0
    %1388 = vmatpush2.bf16.msra.mxu0 0
    %1389 = vmatprep.subr.bf16.mxu0 0
    %1390 = vmatpush2.bf16.msra.mxu0 0
    %1391 = vmatprep.subr.bf16.mxu0 0
    %1392 = vmatpush2.bf16.msra.mxu0 0
    %1393 = vmatprep.subr.bf16.mxu0 0
    %1394 = vmatpush2.bf16.msra.mxu0 0
    %1395 = vmatprep.mubr.bf16.mxu0 0
    %1396 = vmatmul.mubr.bf16.gmra.mxu0 %v1358
    %v1397 = vpop.f32.mrf.mxu0
    %v1398 = vadd.f32 0.0, %v1397
    %v1399 = vpop.f32.mrf.mxu0
    %v1400 = vpop.f32.mrf.mxu0
    %v1401 = vpop.f32.mrf.mxu0
    %1402 = vdwg.mxu0
    %1403 = vrot.lane.b32.xlu0 %v579, 32
    %v1404 = vpop.permute.xlu0 %1403
    %v1406 = vsel %vm673, %v1354, 0
    %v1409 = vsel %vm701, %v1404, 0
    %1411 = vmatprep.subr.bf16.mxu0 0
    %1412 = vmatpush1.bf16.msra.mxu0 0
    %1413 = vmatprep.subr.bf16.mxu0 0
    %1414 = vmatpush1.bf16.msra.mxu0 0
    %1415 = vmatprep.subr.bf16.mxu0 0
    %1416 = vmatpush1.bf16.msra.mxu0 0
    %1417 = vmatprep.subr.bf16.mxu0 0
    %1418 = vmatpush1.bf16.msra.mxu0 0
    %1419 = vmatprep.subr.bf16.mxu0 0
    %1420 = vmatpush1.bf16.msra.mxu0 0
    %1421 = vmatprep.subr.bf16.mxu0 0
    %1422 = vmatpush1.bf16.msra.mxu0 0
    %1423 = vmatprep.subr.bf16.mxu0 0
    %1424 = vmatpush1.bf16.msra.mxu0 0
    %1425 = vmatprep.subr.bf16.mxu0 0
    %1426 = vmatpush1.bf16.msra.mxu0 %v1409
    %1427 = vmatprep.subr.bf16.mxu0 0
    %1428 = vmatpush2.bf16.msra.mxu0 0
    %1429 = vmatprep.subr.bf16.mxu0 0
    %1430 = vmatpush2.bf16.msra.mxu0 0
    %1431 = vmatprep.subr.bf16.mxu0 0
    %1432 = vmatpush2.bf16.msra.mxu0 0
    %1433 = vmatprep.subr.bf16.mxu0 0
    %1434 = vmatpush2.bf16.msra.mxu0 0
    %1435 = vmatprep.subr.bf16.mxu0 0
    %1436 = vmatpush2.bf16.msra.mxu0 0
    %1437 = vmatprep.subr.bf16.mxu0 0
    %1438 = vmatpush2.bf16.msra.mxu0 0
    %1439 = vmatprep.subr.bf16.mxu0 0
    %1440 = vmatpush2.bf16.msra.mxu0 0
    %1441 = vmatprep.subr.bf16.mxu0 0
    %1442 = vmatpush2.bf16.msra.mxu0 0
    %1443 = vmatprep.mubr.bf16.mxu0 0
    %1444 = vmatmul.mubr.bf16.gmra.mxu0 %v1406
    %v1445 = vpop.f32.mrf.mxu0
    %v1446 = vadd.f32 0.0, %v1445
    %v1447 = vpop.f32.mrf.mxu0
    %v1448 = vpop.f32.mrf.mxu0
    %v1449 = vpop.f32.mrf.mxu0
    %1450 = vdwg.mxu0
    %1453 = vrot.lane.b32.xlu0 %v958, 32
    %v1454 = vpop.permute.xlu0 %1453
    %1455 = vrot.lane.b32.xlu0 %v1006, 32
    %v1456 = vpop.permute.xlu0 %1455
    %1461 = vrot.lane.b32.xlu0 %v1178, 64
    %v1462 = vpop.permute.xlu0 %1461
    %1463 = vrot.lane.b32.xlu0 %v1226, 64
    %v1464 = vpop.permute.xlu0 %1463
    %1469 = vrot.lane.b32.xlu0 %v1398, 96
    %v1470 = vpop.permute.xlu0 %1469
    %1471 = vrot.lane.b32.xlu0 %v1446, 96
    %v1472 = vpop.permute.xlu0 %1471
    %v1475 = vsel %vm580, %v740, %v1454
    %v1476 = vsel %vm580, %v786, %v1456
    %vm1477 = vcmask 523264
    %v1478 = vsel %vm1477, %v1475, %v1462
    %v1479 = vsel %vm1477, %v1476, %v1464
    %vm1480 = vcmask 785408
    %v1481 = vsel %vm1480, %v1478, %v1470
    %v1482 = vsel %vm1480, %v1479, %v1472
    %v1483 = vpack.c.bf16 %v1482, %v1481
    %v1484 = vld [vmem:[#allocation14] sm:$0xf]
    %v1485 = vld [vmem:[#allocation14 + $0x4] sm:$0xf]
    %v1486 = vld [vmem:[#allocation14 + $0x8] sm:$0xf]
    %v1487 = vld [vmem:[#allocation14 + $0xc] sm:$0xf]
    %v1488 = vld [vmem:[#allocation14 + $0x10] sm:$0xf]
    %v1489 = vld [vmem:[#allocation14 + $0x14] sm:$0xf]
    %v1490 = vld [vmem:[#allocation14 + $0x18] sm:$0xf]
    %v1491 = vld [vmem:[#allocation14 + $0x1c] sm:$0xf]
    %v1492 = vld [vmem:[#allocation14 + $0x20] sm:$0xf]
    %v1493 = vld [vmem:[#allocation14 + $0x24] sm:$0xf]
    %v1494 = vld [vmem:[#allocation14 + $0x28] sm:$0xf]
    %v1495 = vld [vmem:[#allocation14 + $0x2c] sm:$0xf]
    %v1496 = vld [vmem:[#allocation14 + $0x30] sm:$0xf]
    %v1497 = vld [vmem:[#allocation14 + $0x34] sm:$0xf]
    %v1498 = vld [vmem:[#allocation14 + $0x38] sm:$0xf]
    %v1499 = vld [vmem:[#allocation14 + $0x3c] sm:$0xf]
    %v1500 = vld [vmem:[%s13] sm:$0x1]
    %v1502 = vlaneseq
    %v1503 = vshrl.u32 %v1502, 7
    %v1504 = vsub.s32 0, %v1503
    %v1505 = vrot.slane %v1500, %v1504
    %v1523 = vunpack.c.l.b16 %v1484
    %v1524 = vunpack.c.l.b16 %v1485
    %v1525 = vunpack.c.l.b16 %v1486
    %v1526 = vunpack.c.l.b16 %v1487
    %v1527 = vunpack.c.l.b16 %v1488
    %v1528 = vunpack.c.l.b16 %v1489
    %v1529 = vunpack.c.l.b16 %v1490
    %v1530 = vunpack.c.l.b16 %v1491
    %v1531 = vunpack.c.l.b16 %v1492
    %v1532 = vunpack.c.l.b16 %v1493
    %v1533 = vunpack.c.l.b16 %v1494
    %v1534 = vunpack.c.l.b16 %v1495
    %v1535 = vunpack.c.l.b16 %v1496
    %v1536 = vunpack.c.l.b16 %v1497
    %v1537 = vunpack.c.l.b16 %v1498
    %v1538 = vunpack.c.l.b16 %v1499
    %v1539 = vpack.c.b16 %v1524, %v1523
    %v1540 = vpack.c.b16 %v1526, %v1525
    %v1541 = vpack.c.b16 %v1528, %v1527
    %v1542 = vpack.c.b16 %v1530, %v1529
    %v1543 = vpack.c.b16 %v1532, %v1531
    %v1544 = vpack.c.b16 %v1534, %v1533
    %v1545 = vpack.c.b16 %v1536, %v1535
    %v1546 = vpack.c.b16 %v1538, %v1537
    %1555 = vmatprep.subr.bf16.mxu0 0
    %1556 = vmatpush1.bf16.msra.mxu0 %v1546
    %1557 = vmatprep.subr.bf16.mxu0 0
    %1558 = vmatpush1.bf16.msra.mxu0 %v1545
    %1559 = vmatprep.subr.bf16.mxu0 0
    %1560 = vmatpush1.bf16.msra.mxu0 %v1544
    %1561 = vmatprep.subr.bf16.mxu0 0
    %1562 = vmatpush1.bf16.msra.mxu0 %v1543
    %1563 = vmatprep.subr.bf16.mxu0 0
    %1564 = vmatpush1.bf16.msra.mxu0 %v1542
    %1565 = vmatprep.subr.bf16.mxu0 0
    %1566 = vmatpush1.bf16.msra.mxu0 %v1541
    %1567 = vmatprep.subr.bf16.mxu0 0
    %1568 = vmatpush1.bf16.msra.mxu0 %v1540
    %1569 = vmatprep.subr.bf16.mxu0 0
    %1570 = vmatpush1.bf16.msra.mxu0 %v1539
    %1571 = vmatprep.subr.bf16.mxu0 0
    %1572 = vmatpush2.bf16.msra.mxu0 0
    %1573 = vmatprep.subr.bf16.mxu0 0
    %1574 = vmatpush2.bf16.msra.mxu0 0
    %1575 = vmatprep.subr.bf16.mxu0 0
    %1576 = vmatpush2.bf16.msra.mxu0 0
    %1577 = vmatprep.subr.bf16.mxu0 0
    %1578 = vmatpush2.bf16.msra.mxu0 0
    %1579 = vmatprep.subr.bf16.mxu0 0
    %1580 = vmatpush2.bf16.msra.mxu0 0
    %1581 = vmatprep.subr.bf16.mxu0 0
    %1582 = vmatpush2.bf16.msra.mxu0 0
    %1583 = vmatprep.subr.bf16.mxu0 0
    %1584 = vmatpush2.bf16.msra.mxu0 0
    %1585 = vmatprep.subr.bf16.mxu0 0
    %1586 = vmatpush2.bf16.msra.mxu0 0
    %1587 = vmatprep.mubr.bf16.mxu0 0
    %1588 = vmatmul.mubr.bf16.gmra.mxu0 %v1483
    %v1589 = vpop.f32.mrf.mxu0
    %v1590 = vadd.f32 %v1505, %v1589
    %v1591 = vpop.f32.mrf.mxu0
    %v1592 = vpop.f32.mrf.mxu0
    %v1593 = vadd.f32 %v1505, %v1592
    %v1594 = vpop.f32.mrf.mxu0
    %1595 = vdwg.mxu0
    %v1596 = vadd.f32 %v251, %v1590
    %v1597 = vadd.f32 %v252, %v1593
    %v1598 = vld [vmem:[#allocation8] sm:$0x1]
    %v1599 = vld [vmem:[#allocation10] sm:$0x1]
    %1600 = vadd.xlane.f32.xlu0 %v1596
    %v1601 = vpop.xlane.xlu0 %1600
    %1602 = vadd.xlane.f32.xlu0 %v1597
    %v1603 = vpop.xlane.xlu0 %1602
    %v1604 = vmul.f32 %v1601, %v263
    %v1605 = vmul.f32 %v1603, %v263
    %v1606 = vsub.f32 %v1596, %v1604
    %v1607 = vsub.f32 %v1597, %v1605
    %v1608 = vmul.f32 %v1606, %v1606
    %v1609 = vmul.f32 %v1607, %v1607
    %1610 = vadd.xlane.f32.xlu0 %v1608
    %v1611 = vpop.xlane.xlu0 %1610
    %1612 = vadd.xlane.f32.xlu0 %v1609
    %v1613 = vpop.xlane.xlu0 %1612
    %v1614 = vmul.f32 %v1611, %v263
    %v1615 = vmul.f32 %v1613, %v263
    %v1616 = vadd.f32 %v1614, 1e-05
    %v1617 = vadd.f32 %v1615, 1e-05
    %v1618 = vrsqrt.pop %v1616
    %v1619 = vrsqrt.pop %v1617
    %v1620 = vmul.f32 %v1606, %v1618
    %v1621 = vmul.f32 %v1607, %v1619
    %v1623 = vlaneseq
    %v1624 = vshrl.u32 %v1623, 7
    %v1625 = vsub.s32 0, %v1624
    %v1626 = vrot.slane %v1598, %v1625
    %v1628 = vmul.f32 %v1620, %v1626
    %v1629 = vmul.f32 %v1621, %v1626
    %v1631 = vlaneseq
    %v1632 = vshrl.u32 %v1631, 7
    %v1633 = vsub.s32 0, %v1632
    %v1634 = vrot.slane %v1599, %v1633
    %v1636 = vadd.f32 %v1628, %v1634
    %v1637 = vadd.f32 %v1629, %v1634
    %v1638 = vpack.c.bf16 %v1637, %v1636
    %v1639 = vld [vmem:[#allocation16] sm:$0xf]
    %v1640 = vld [vmem:[#allocation16 + $0x4] sm:$0xf]
    %v1641 = vld [vmem:[#allocation16 + $0x8] sm:$0xf]
    %v1642 = vld [vmem:[#allocation16 + $0xc] sm:$0xf]
    %v1643 = vld [vmem:[#allocation16 + $0x10] sm:$0xf]
    %v1644 = vld [vmem:[#allocation16 + $0x14] sm:$0xf]
    %v1645 = vld [vmem:[#allocation16 + $0x18] sm:$0xf]
    %v1646 = vld [vmem:[#allocation16 + $0x1c] sm:$0xf]
    %v1647 = vld [vmem:[#allocation16 + $0x20] sm:$0xf]
    %v1648 = vld [vmem:[#allocation16 + $0x24] sm:$0xf]
    %v1649 = vld [vmem:[#allocation16 + $0x28] sm:$0xf]
    %v1650 = vld [vmem:[#allocation16 + $0x2c] sm:$0xf]
    %v1651 = vld [vmem:[#allocation16 + $0x30] sm:$0xf]
    %v1652 = vld [vmem:[#allocation16 + $0x34] sm:$0xf]
    %v1653 = vld [vmem:[#allocation16 + $0x38] sm:$0xf]
    %v1654 = vld [vmem:[#allocation16 + $0x3c] sm:$0xf]
    %v1655 = vld [vmem:[%s15] sm:$0x1]
    %v1657 = vlaneseq
    %v1658 = vshrl.u32 %v1657, 7
    %v1659 = vsub.s32 0, %v1658
    %v1660 = vrot.slane %v1655, %v1659
    %v1678 = vunpack.c.l.b16 %v1639
    %v1679 = vunpack.c.l.b16 %v1640
    %v1680 = vunpack.c.l.b16 %v1641
    %v1681 = vunpack.c.l.b16 %v1642
    %v1682 = vunpack.c.l.b16 %v1643
    %v1683 = vunpack.c.l.b16 %v1644
    %v1684 = vunpack.c.l.b16 %v1645
    %v1685 = vunpack.c.l.b16 %v1646
    %v1686 = vunpack.c.l.b16 %v1647
    %v1687 = vunpack.c.l.b16 %v1648
    %v1688 = vunpack.c.l.b16 %v1649
    %v1689 = vunpack.c.l.b16 %v1650
    %v1690 = vunpack.c.l.b16 %v1651
    %v1691 = vunpack.c.l.b16 %v1652
    %v1692 = vunpack.c.l.b16 %v1653
    %v1693 = vunpack.c.l.b16 %v1654
    %v1694 = vpack.c.b16 %v1679, %v1678
    %v1695 = vpack.c.b16 %v1681, %v1680
    %v1696 = vpack.c.b16 %v1683, %v1682
    %v1697 = vpack.c.b16 %v1685, %v1684
    %v1698 = vpack.c.b16 %v1687, %v1686
    %v1699 = vpack.c.b16 %v1689, %v1688
    %v1700 = vpack.c.b16 %v1691, %v1690
    %v1701 = vpack.c.b16 %v1693, %v1692
    %1710 = vmatprep.subr.bf16.mxu0 0
    %1711 = vmatpush1.bf16.msra.mxu0 %v1701
    %1712 = vmatprep.subr.bf16.mxu0 0
    %1713 = vmatpush1.bf16.msra.mxu0 %v1700
    %1714 = vmatprep.subr.bf16.mxu0 0
    %1715 = vmatpush1.bf16.msra.mxu0 %v1699
    %1716 = vmatprep.subr.bf16.mxu0 0
    %1717 = vmatpush1.bf16.msra.mxu0 %v1698
    %1718 = vmatprep.subr.bf16.mxu0 0
    %1719 = vmatpush1.bf16.msra.mxu0 %v1697
    %1720 = vmatprep.subr.bf16.mxu0 0
    %1721 = vmatpush1.bf16.msra.mxu0 %v1696
    %1722 = vmatprep.subr.bf16.mxu0 0
    %1723 = vmatpush1.bf16.msra.mxu0 %v1695
    %1724 = vmatprep.subr.bf16.mxu0 0
    %1725 = vmatpush1.bf16.msra.mxu0 %v1694
    %1726 = vmatprep.subr.bf16.mxu0 0
    %1727 = vmatpush2.bf16.msra.mxu0 0
    %1728 = vmatprep.subr.bf16.mxu0 0
    %1729 = vmatpush2.bf16.msra.mxu0 0
    %1730 = vmatprep.subr.bf16.mxu0 0
    %1731 = vmatpush2.bf16.msra.mxu0 0
    %1732 = vmatprep.subr.bf16.mxu0 0
    %1733 = vmatpush2.bf16.msra.mxu0 0
    %1734 = vmatprep.subr.bf16.mxu0 0
    %1735 = vmatpush2.bf16.msra.mxu0 0
    %1736 = vmatprep.subr.bf16.mxu0 0
    %1737 = vmatpush2.bf16.msra.mxu0 0
    %1738 = vmatprep.subr.bf16.mxu0 0
    %1739 = vmatpush2.bf16.msra.mxu0 0
    %1740 = vmatprep.subr.bf16.mxu0 0
    %1741 = vmatpush2.bf16.msra.mxu0 0
    %1742 = vmatprep.mubr.bf16.mxu0 0
    %1743 = vmatmul.mubr.bf16.gmra.mxu0 %v1638
    %v1744 = vpop.f32.mrf.mxu0
    %v1745 = vadd.f32 %v1660, %v1744
    %v1746 = vpop.f32.mrf.mxu0
    %v1747 = vpop.f32.mrf.mxu0
    %v1748 = vadd.f32 %v1660, %v1747
    %v1749 = vpop.f32.mrf.mxu0
    %1750 = vdwg.mxu0
    %v1751 = vpack.c.bf16 %v1748, %v1745
    %v1752 = vld [vmem:[#allocation17] sm:$0xff]
    %v1753 = vld [vmem:[#allocation17 + $0x8] sm:$0xff]
    %v1754 = vld [vmem:[#allocation17 + $0x10] sm:$0xff]
    %v1755 = vld [vmem:[#allocation17 + $0x18] sm:$0xff]
    %v1756 = vld [vmem:[#allocation17 + $0x20] sm:$0xff]
    %v1757 = vld [vmem:[#allocation17 + $0x28] sm:$0xff]
    %v1758 = vld [vmem:[#allocation17 + $0x30] sm:$0xff]
    %v1759 = vld [vmem:[#allocation17 + $0x38] sm:$0xff]
    %v1760 = vld [vmem:[#allocation17 + $0x40] sm:$0xff]
    %v1761 = vld [vmem:[#allocation17 + $0x48] sm:$0xff]
    %v1762 = vld [vmem:[#allocation17 + $0x50] sm:$0xff]
    %v1763 = vld [vmem:[#allocation17 + $0x58] sm:$0xff]
    %v1764 = vld [vmem:[#allocation17 + $0x60] sm:$0xff]
    %v1765 = vld [vmem:[#allocation17 + $0x68] sm:$0xff]
    %v1766 = vld [vmem:[#allocation17 + $0x70] sm:$0xff]
    %v1767 = vld [vmem:[#allocation17 + $0x78] sm:$0xff]
    %v1768 = vld [vmem:[%s17] sm:$0x3]
    %v1770 = vlaneseq
    %v1771 = vshrl.u32 %v1770, 7
    %v1772 = vsub.s32 0, %v1771
    %v1773 = vrot.slane %v1768, %v1772
    %v1774 = vlaneseq
    %v1775 = vshrl.u32 %v1774, 7
    %v1776 = vsub.s32 1, %v1775
    %v1777 = vrot.slane %v1768, %v1776
    %v1784 = vunpack.c.l.b16 %v253
    %v1785 = vunpack.c.l.b16 %v254
    %v1786 = vunpack.c.l.b16 %v255
    %v1787 = vunpack.c.l.b16 %v256
    %v1788 = vpack.c.b16 %v1785, %v1784
    %v1789 = vpack.c.b16 %v1787, %v1786
    %v1808 = vunpack.c.l.b16 %v1752
    %v1809 = vunpack.c.h.b16 %v1752
    %v1810 = vunpack.c.l.b16 %v1753
    %v1811 = vunpack.c.h.b16 %v1753
    %v1812 = vunpack.c.l.b16 %v1754
    %v1813 = vunpack.c.h.b16 %v1754
    %v1814 = vunpack.c.l.b16 %v1755
    %v1815 = vunpack.c.h.b16 %v1755
    %v1816 = vunpack.c.l.b16 %v1756
    %v1817 = vunpack.c.h.b16 %v1756
    %v1818 = vunpack.c.l.b16 %v1757
    %v1819 = vunpack.c.h.b16 %v1757
    %v1820 = vunpack.c.l.b16 %v1758
    %v1821 = vunpack.c.h.b16 %v1758
    %v1822 = vunpack.c.l.b16 %v1759
    %v1823 = vunpack.c.h.b16 %v1759
    %v1824 = vunpack.c.l.b16 %v1760
    %v1825 = vunpack.c.h.b16 %v1760
    %v1826 = vunpack.c.l.b16 %v1761
    %v1827 = vunpack.c.h.b16 %v1761
    %v1828 = vunpack.c.l.b16 %v1762
    %v1829 = vunpack.c.h.b16 %v1762
    %v1830 = vunpack.c.l.b16 %v1763
    %v1831 = vunpack.c.h.b16 %v1763
    %v1832 = vunpack.c.l.b16 %v1764
    %v1833 = vunpack.c.h.b16 %v1764
    %v1834 = vunpack.c.l.b16 %v1765
    %v1835 = vunpack.c.h.b16 %v1765
    %v1836 = vunpack.c.l.b16 %v1766
    %v1837 = vunpack.c.h.b16 %v1766
    %v1838 = vunpack.c.l.b16 %v1767
    %v1839 = vunpack.c.h.b16 %v1767
    %v1840 = vpack.c.b16 %v1810, %v1808
    %v1841 = vpack.c.b16 %v1811, %v1809
    %v1842 = vpack.c.b16 %v1814, %v1812
    %v1843 = vpack.c.b16 %v1815, %v1813
    %v1844 = vpack.c.b16 %v1818, %v1816
    %v1845 = vpack.c.b16 %v1819, %v1817
    %v1846 = vpack.c.b16 %v1822, %v1820
    %v1847 = vpack.c.b16 %v1823, %v1821
    %v1848 = vpack.c.b16 %v1826, %v1824
    %v1849 = vpack.c.b16 %v1827, %v1825
    %v1850 = vpack.c.b16 %v1830, %v1828
    %v1851 = vpack.c.b16 %v1831, %v1829
    %v1852 = vpack.c.b16 %v1834, %v1832
    %v1853 = vpack.c.b16 %v1835, %v1833
    %v1854 = vpack.c.b16 %v1838, %v1836
    %v1855 = vpack.c.b16 %v1839, %v1837
    %1872 = vmatprep.subr.bf16.mxu0 %v1855
    %1873 = vmatpush1.bf16.msra.mxu0 %v1854
    %1874 = vmatprep.subr.bf16.mxu0 %v1853
    %1875 = vmatpush1.bf16.msra.mxu0 %v1852
    %1876 = vmatprep.subr.bf16.mxu0 %v1851
    %1877 = vmatpush1.bf16.msra.mxu0 %v1850
    %1878 = vmatprep.subr.bf16.mxu0 %v1849
    %1879 = vmatpush1.bf16.msra.mxu0 %v1848
    %1880 = vmatprep.subr.bf16.mxu0 %v1847
    %1881 = vmatpush1.bf16.msra.mxu0 %v1846
    %1882 = vmatprep.subr.bf16.mxu0 %v1845
    %1883 = vmatpush1.bf16.msra.mxu0 %v1844
    %1884 = vmatprep.subr.bf16.mxu0 %v1843
    %1885 = vmatpush1.bf16.msra.mxu0 %v1842
    %1886 = vmatprep.subr.bf16.mxu0 %v1841
    %1887 = vmatpush1.bf16.msra.mxu0 %v1840
    %1888 = vmatprep.subr.bf16.mxu0 0
    %1889 = vmatpush2.bf16.msra.mxu0 0
    %1890 = vmatprep.subr.bf16.mxu0 0
    %1891 = vmatpush2.bf16.msra.mxu0 0
    %1892 = vmatprep.subr.bf16.mxu0 0
    %1893 = vmatpush2.bf16.msra.mxu0 0
    %1894 = vmatprep.subr.bf16.mxu0 0
    %1895 = vmatpush2.bf16.msra.mxu0 0
    %1896 = vmatprep.subr.bf16.mxu0 0
    %1897 = vmatpush2.bf16.msra.mxu0 0
    %1898 = vmatprep.subr.bf16.mxu0 0
    %1899 = vmatpush2.bf16.msra.mxu0 0
    %1900 = vmatprep.subr.bf16.mxu0 0
    %1901 = vmatpush2.bf16.msra.mxu0 0
    %1902 = vmatprep.subr.bf16.mxu0 0
    %1903 = vmatpush2.bf16.msra.mxu0 0
    %1904 = vmatprep.mubr.bf16.mxu0 0
    %1905 = vmatmul.mubr.bf16.gmra.mxu0 %v1788
    %v1906 = vpop.f32.mrf.mxu0
    %v1907 = vadd.f32 %v1773, %v1906
    %v1908 = vpop.f32.mrf.mxu0
    %v1909 = vadd.f32 %v1777, %v1908
    %v1910 = vpop.f32.mrf.mxu0
    %v1911 = vadd.f32 %v1773, %v1910
    %v1912 = vpop.f32.mrf.mxu0
    %v1913 = vadd.f32 %v1777, %v1912
    %1914 = vmatprep.mubr.bf16.mxu0 0
    %1915 = vmatmul.mubr.bf16.gmra.mxu0 %v1789
    %v1916 = vpop.f32.mrf.mxu0
    %v1917 = vadd.f32 %v1773, %v1916
    %v1918 = vpop.f32.mrf.mxu0
    %v1919 = vadd.f32 %v1777, %v1918
    %v1920 = vpop.f32.mrf.mxu0
    %v1921 = vadd.f32 %v1773, %v1920
    %v1922 = vpop.f32.mrf.mxu0
    %v1923 = vadd.f32 %v1777, %v1922
    %1924 = vdwg.mxu0
    %v1925 = vpack.c.bf16 %v1911, %v1907
    %v1926 = vpack.c.bf16 %v1921, %v1917
    %v1927 = vpack.c.bf16 %v1913, %v1909
    %v1928 = vpack.c.bf16 %v1923, %v1919
    %v1930 = vunpack.c.l.b16 %v1751
    %v1931 = vunpack.c.h.b16 %v1751
    %v1932 = vpack.c.b16 %v1930, %v1930
    %v1933 = vpack.c.b16 %v1931, %v1931
    %v1935 = vsel %vm580, %v1932, 0
    %v1938 = vsel %vm580, %v1925, 0
    %1940 = vmatprep.subr.bf16.mxu0 0
    %1941 = vmatpush1.bf16.xpose.msra.mxu0 0
    %1942 = vmatprep.subr.bf16.mxu0 0
    %1943 = vmatpush1.bf16.xpose.msra.mxu0 0
    %1944 = vmatprep.subr.bf16.mxu0 0
    %1945 = vmatpush1.bf16.xpose.msra.mxu0 0
    %1946 = vmatprep.subr.bf16.mxu0 0
    %1947 = vmatpush1.bf16.xpose.msra.mxu0 0
    %1948 = vmatprep.subr.bf16.mxu0 0
    %1949 = vmatpush1.bf16.xpose.msra.mxu0 0
    %1950 = vmatprep.subr.bf16.mxu0 0
    %1951 = vmatpush1.bf16.xpose.msra.mxu0 0
    %1952 = vmatprep.subr.bf16.mxu0 0
    %1953 = vmatpush1.bf16.xpose.msra.mxu0 0
    %1954 = vmatprep.subr.bf16.mxu0 0
    %1955 = vmatpush1.bf16.xpose.msra.mxu0 %v1938
    %1956 = vmatprep.subr.bf16.mxu0 0
    %1957 = vmatpush2.bf16.xpose.msra.mxu0 0
    %1958 = vmatprep.subr.bf16.mxu0 0
    %1959 = vmatpush2.bf16.xpose.msra.mxu0 0
    %1960 = vmatprep.subr.bf16.mxu0 0
    %1961 = vmatpush2.bf16.xpose.msra.mxu0 0
    %1962 = vmatprep.subr.bf16.mxu0 0
    %1963 = vmatpush2.bf16.xpose.msra.mxu0 0
    %1964 = vmatprep.subr.bf16.mxu0 0
    %1965 = vmatpush2.bf16.xpose.msra.mxu0 0
    %1966 = vmatprep.subr.bf16.mxu0 0
    %1967 = vmatpush2.bf16.xpose.msra.mxu0 0
    %1968 = vmatprep.subr.bf16.mxu0 0
    %1969 = vmatpush2.bf16.xpose.msra.mxu0 0
    %1970 = vmatprep.subr.bf16.mxu0 0
    %1971 = vmatpush2.bf16.xpose.msra.mxu0 0
    %1972 = vmatprep.mubr.bf16.mxu0 0
    %1973 = vmatmul.mubr.bf16.gmra.mxu0 %v1935
    %v1974 = vpop.f32.mrf.mxu0
    %v1975 = vadd.f32 0.0, %v1974
    %v1976 = vpop.f32.mrf.mxu0
    %v1977 = vpop.f32.mrf.mxu0
    %v1978 = vpop.f32.mrf.mxu0
    %1979 = vdwg.mxu0
    %v1981 = vsel %vm580, %v1933, 0
    %v1984 = vsel %vm580, %v1926, 0
    %1986 = vmatprep.subr.bf16.mxu0 0
    %1987 = vmatpush1.bf16.xpose.msra.mxu0 0
    %1988 = vmatprep.subr.bf16.mxu0 0
    %1989 = vmatpush1.bf16.xpose.msra.mxu0 0
    %1990 = vmatprep.subr.bf16.mxu0 0
    %1991 = vmatpush1.bf16.xpose.msra.mxu0 0
    %1992 = vmatprep.subr.bf16.mxu0 0
    %1993 = vmatpush1.bf16.xpose.msra.mxu0 0
    %1994 = vmatprep.subr.bf16.mxu0 0
    %1995 = vmatpush1.bf16.xpose.msra.mxu0 0
    %1996 = vmatprep.subr.bf16.mxu0 0
    %1997 = vmatpush1.bf16.xpose.msra.mxu0 0
    %1998 = vmatprep.subr.bf16.mxu0 0
    %1999 = vmatpush1.bf16.xpose.msra.mxu0 0
    %2000 = vmatprep.subr.bf16.mxu0 0
    %2001 = vmatpush1.bf16.xpose.msra.mxu0 %v1984
    %2002 = vmatprep.subr.bf16.mxu0 0
    %2003 = vmatpush2.bf16.xpose.msra.mxu0 0
    %2004 = vmatprep.subr.bf16.mxu0 0
    %2005 = vmatpush2.bf16.xpose.msra.mxu0 0
    %2006 = vmatprep.subr.bf16.mxu0 0
    %2007 = vmatpush2.bf16.xpose.msra.mxu0 0
    %2008 = vmatprep.subr.bf16.mxu0 0
    %2009 = vmatpush2.bf16.xpose.msra.mxu0 0
    %2010 = vmatprep.subr.bf16.mxu0 0
    %2011 = vmatpush2.bf16.xpose.msra.mxu0 0
    %2012 = vmatprep.subr.bf16.mxu0 0
    %2013 = vmatpush2.bf16.xpose.msra.mxu0 0
    %2014 = vmatprep.subr.bf16.mxu0 0
    %2015 = vmatpush2.bf16.xpose.msra.mxu0 0
    %2016 = vmatprep.subr.bf16.mxu0 0
    %2017 = vmatpush2.bf16.xpose.msra.mxu0 0
    %2018 = vmatprep.mubr.bf16.mxu0 0
    %2019 = vmatmul.mubr.bf16.gmra.mxu0 %v1981
    %v2020 = vpop.f32.mrf.mxu0
    %v2021 = vadd.f32 0.0, %v2020
    %v2022 = vpop.f32.mrf.mxu0
    %v2023 = vpop.f32.mrf.mxu0
    %v2024 = vpop.f32.mrf.mxu0
    %2025 = vdwg.mxu0
    %vm2026 = vcmask 130048
    %v2027 = vsel %vm2026, %v1975, -inf
    %2028 = vmax.xlane.f32.xlu0 %v2027
    %v2029 = vpop.xlane.xlu0 %2028
    %v2030 = vsel %vm2026, %v2021, -inf
    %2031 = vmax.xlane.f32.xlu0 %v2030
    %v2032 = vpop.xlane.xlu0 %2031
    %v2033 = vsub.f32 %v1975, %v2029
    %v2034 = vsub.f32 %v2021, %v2032
    %v2035 = vmul.f32 %v2033, 1.442695
    %v2036 = vpow.pop %v2035
    %v2037 = vmul.f32 %v2034, 1.442695
    %v2038 = vpow.pop %v2037
    %v2039 = vsel %vm2026, %v2036, 0.0
    %2040 = vadd.xlane.f32.xlu0 %v2039
    %v2041 = vpop.xlane.xlu0 %2040
    %v2042 = vsel %vm2026, %v2038, 0.0
    %2043 = vadd.xlane.f32.xlu0 %v2042
    %v2044 = vpop.xlane.xlu0 %2043
    %v2045 = vrcp.pop %v2041
    %v2046 = vrcp.pop %v2044
    %v2047 = vmul.f32 %v2036, %v2045
    %v2048 = vmul.f32 %v2038, %v2046
    %v2049 = vpack.c.bf16 %v2047, %v2047
    %v2050 = vpack.c.bf16 %v2048, %v2048
    %v2052 = vsel %vm2026, %v2049, 0
    %2054 = vmatprep.subr.bf16.mxu0 0
    %2055 = vmatpush1.bf16.msra.mxu0 0
    %2056 = vmatprep.subr.bf16.mxu0 0
    %2057 = vmatpush1.bf16.msra.mxu0 0
    %2058 = vmatprep.subr.bf16.mxu0 0
    %2059 = vmatpush1.bf16.msra.mxu0 0
    %2060 = vmatprep.subr.bf16.mxu0 0
    %2061 = vmatpush1.bf16.msra.mxu0 0
    %2062 = vmatprep.subr.bf16.mxu0 0
    %2063 = vmatpush1.bf16.msra.mxu0 0
    %2064 = vmatprep.subr.bf16.mxu0 0
    %2065 = vmatpush1.bf16.msra.mxu0 0
    %2066 = vmatprep.subr.bf16.mxu0 0
    %2067 = vmatpush1.bf16.msra.mxu0 0
    %2068 = vmatprep.subr.bf16.mxu0 0
    %2069 = vmatpush1.bf16.msra.mxu0 %v1927
    %2070 = vmatprep.subr.bf16.mxu0 0
    %2071 = vmatpush2.bf16.msra.mxu0 0
    %2072 = vmatprep.subr.bf16.mxu0 0
    %2073 = vmatpush2.bf16.msra.mxu0 0
    %2074 = vmatprep.subr.bf16.mxu0 0
    %2075 = vmatpush2.bf16.msra.mxu0 0
    %2076 = vmatprep.subr.bf16.mxu0 0
    %2077 = vmatpush2.bf16.msra.mxu0 0
    %2078 = vmatprep.subr.bf16.mxu0 0
    %2079 = vmatpush2.bf16.msra.mxu0 0
    %2080 = vmatprep.subr.bf16.mxu0 0
    %2081 = vmatpush2.bf16.msra.mxu0 0
    %2082 = vmatprep.subr.bf16.mxu0 0
    %2083 = vmatpush2.bf16.msra.mxu0 0
    %2084 = vmatprep.subr.bf16.mxu0 0
    %2085 = vmatpush2.bf16.msra.mxu0 0
    %2086 = vmatprep.mubr.bf16.mxu0 0
    %2087 = vmatmul.mubr.bf16.gmra.mxu0 %v2052
    %v2088 = vpop.f32.mrf.mxu0
    %v2089 = vadd.f32 0.0, %v2088
    %v2090 = vpop.f32.mrf.mxu0
    %v2091 = vpop.f32.mrf.mxu0
    %v2092 = vpop.f32.mrf.mxu0
    %2093 = vdwg.mxu0
    %v2095 = vsel %vm2026, %v2050, 0
    %2097 = vmatprep.subr.bf16.mxu0 0
    %2098 = vmatpush1.bf16.msra.mxu0 0
    %2099 = vmatprep.subr.bf16.mxu0 0
    %2100 = vmatpush1.bf16.msra.mxu0 0
    %2101 = vmatprep.subr.bf16.mxu0 0
    %2102 = vmatpush1.bf16.msra.mxu0 0
    %2103 = vmatprep.subr.bf16.mxu0 0
    %2104 = vmatpush1.bf16.msra.mxu0 0
    %2105 = vmatprep.subr.bf16.mxu0 0
    %2106 = vmatpush1.bf16.msra.mxu0 0
    %2107 = vmatprep.subr.bf16.mxu0 0
    %2108 = vmatpush1.bf16.msra.mxu0 0
    %2109 = vmatprep.subr.bf16.mxu0 0
    %2110 = vmatpush1.bf16.msra.mxu0 0
    %2111 = vmatprep.subr.bf16.mxu0 0
    %2112 = vmatpush1.bf16.msra.mxu0 %v1928
    %2113 = vmatprep.subr.bf16.mxu0 0
    %2114 = vmatpush2.bf16.msra.mxu0 0
    %2115 = vmatprep.subr.bf16.mxu0 0
    %2116 = vmatpush2.bf16.msra.mxu0 0
    %2117 = vmatprep.subr.bf16.mxu0 0
    %2118 = vmatpush2.bf16.msra.mxu0 0
    %2119 = vmatprep.subr.bf16.mxu0 0
    %2120 = vmatpush2.bf16.msra.mxu0 0
    %2121 = vmatprep.subr.bf16.mxu0 0
    %2122 = vmatpush2.bf16.msra.mxu0 0
    %2123 = vmatprep.subr.bf16.mxu0 0
    %2124 = vmatpush2.bf16.msra.mxu0 0
    %2125 = vmatprep.subr.bf16.mxu0 0
    %2126 = vmatpush2.bf16.msra.mxu0 0
    %2127 = vmatprep.subr.bf16.mxu0 0
    %2128 = vmatpush2.bf16.msra.mxu0 0
    %2129 = vmatprep.mubr.bf16.mxu0 0
    %2130 = vmatmul.mubr.bf16.gmra.mxu0 %v2095
    %v2131 = vpop.f32.mrf.mxu0
    %v2132 = vadd.f32 0.0, %v2131
    %v2133 = vpop.f32.mrf.mxu0
    %v2134 = vpop.f32.mrf.mxu0
    %v2135 = vpop.f32.mrf.mxu0
    %2136 = vdwg.mxu0
    %2137 = vrot.lane.b32.xlu0 %v1932, 96
    %v2138 = vpop.permute.xlu0 %2137
    %2140 = vrot.lane.b32.xlu0 %v1925, 96
    %v2141 = vpop.permute.xlu0 %2140
    %v2143 = vsel %vm580, %v2138, 0
    %v2146 = vsel %vm580, %v2141, 0
    %2148 = vmatprep.subr.bf16.mxu0 0
    %2149 = vmatpush1.bf16.xpose.msra.mxu0 0
    %2150 = vmatprep.subr.bf16.mxu0 0
    %2151 = vmatpush1.bf16.xpose.msra.mxu0 0
    %2152 = vmatprep.subr.bf16.mxu0 0
    %2153 = vmatpush1.bf16.xpose.msra.mxu0 0
    %2154 = vmatprep.subr.bf16.mxu0 0
    %2155 = vmatpush1.bf16.xpose.msra.mxu0 0
    %2156 = vmatprep.subr.bf16.mxu0 0
    %2157 = vmatpush1.bf16.xpose.msra.mxu0 0
    %2158 = vmatprep.subr.bf16.mxu0 0
    %2159 = vmatpush1.bf16.xpose.msra.mxu0 0
    %2160 = vmatprep.subr.bf16.mxu0 0
    %2161 = vmatpush1.bf16.xpose.msra.mxu0 0
    %2162 = vmatprep.subr.bf16.mxu0 0
    %2163 = vmatpush1.bf16.xpose.msra.mxu0 %v2146
    %2164 = vmatprep.subr.bf16.mxu0 0
    %2165 = vmatpush2.bf16.xpose.msra.mxu0 0
    %2166 = vmatprep.subr.bf16.mxu0 0
    %2167 = vmatpush2.bf16.xpose.msra.mxu0 0
    %2168 = vmatprep.subr.bf16.mxu0 0
    %2169 = vmatpush2.bf16.xpose.msra.mxu0 0
    %2170 = vmatprep.subr.bf16.mxu0 0
    %2171 = vmatpush2.bf16.xpose.msra.mxu0 0
    %2172 = vmatprep.subr.bf16.mxu0 0
    %2173 = vmatpush2.bf16.xpose.msra.mxu0 0
    %2174 = vmatprep.subr.bf16.mxu0 0
    %2175 = vmatpush2.bf16.xpose.msra.mxu0 0
    %2176 = vmatprep.subr.bf16.mxu0 0
    %2177 = vmatpush2.bf16.xpose.msra.mxu0 0
    %2178 = vmatprep.subr.bf16.mxu0 0
    %2179 = vmatpush2.bf16.xpose.msra.mxu0 0
    %2180 = vmatprep.mubr.bf16.mxu0 0
    %2181 = vmatmul.mubr.bf16.gmra.mxu0 %v2143
    %v2182 = vpop.f32.mrf.mxu0
    %v2183 = vadd.f32 0.0, %v2182
    %v2184 = vpop.f32.mrf.mxu0
    %v2185 = vpop.f32.mrf.mxu0
    %v2186 = vpop.f32.mrf.mxu0
    %2187 = vdwg.mxu0
    %2188 = vrot.lane.b32.xlu0 %v1933, 96
    %v2189 = vpop.permute.xlu0 %2188
    %2191 = vrot.lane.b32.xlu0 %v1926, 96
    %v2192 = vpop.permute.xlu0 %2191
    %v2194 = vsel %vm580, %v2189, 0
    %v2197 = vsel %vm580, %v2192, 0
    %2199 = vmatprep.subr.bf16.mxu0 0
    %2200 = vmatpush1.bf16.xpose.msra.mxu0 0
    %2201 = vmatprep.subr.bf16.mxu0 0
    %2202 = vmatpush1.bf16.xpose.msra.mxu0 0
    %2203 = vmatprep.subr.bf16.mxu0 0
    %2204 = vmatpush1.bf16.xpose.msra.mxu0 0
    %2205 = vmatprep.subr.bf16.mxu0 0
    %2206 = vmatpush1.bf16.xpose.msra.mxu0 0
    %2207 = vmatprep.subr.bf16.mxu0 0
    %2208 = vmatpush1.bf16.xpose.msra.mxu0 0
    %2209 = vmatprep.subr.bf16.mxu0 0
    %2210 = vmatpush1.bf16.xpose.msra.mxu0 0
    %2211 = vmatprep.subr.bf16.mxu0 0
    %2212 = vmatpush1.bf16.xpose.msra.mxu0 0
    %2213 = vmatprep.subr.bf16.mxu0 0
    %2214 = vmatpush1.bf16.xpose.msra.mxu0 %v2197
    %2215 = vmatprep.subr.bf16.mxu0 0
    %2216 = vmatpush2.bf16.xpose.msra.mxu0 0
    %2217 = vmatprep.subr.bf16.mxu0 0
    %2218 = vmatpush2.bf16.xpose.msra.mxu0 0
    %2219 = vmatprep.subr.bf16.mxu0 0
    %2220 = vmatpush2.bf16.xpose.msra.mxu0 0
    %2221 = vmatprep.subr.bf16.mxu0 0
    %2222 = vmatpush2.bf16.xpose.msra.mxu0 0
    %2223 = vmatprep.subr.bf16.mxu0 0
    %2224 = vmatpush2.bf16.xpose.msra.mxu0 0
    %2225 = vmatprep.subr.bf16.mxu0 0
    %2226 = vmatpush2.bf16.xpose.msra.mxu0 0
    %2227 = vmatprep.subr.bf16.mxu0 0
    %2228 = vmatpush2.bf16.xpose.msra.mxu0 0
    %2229 = vmatprep.subr.bf16.mxu0 0
    %2230 = vmatpush2.bf16.xpose.msra.mxu0 0
    %2231 = vmatprep.mubr.bf16.mxu0 0
    %2232 = vmatmul.mubr.bf16.gmra.mxu0 %v2194
    %v2233 = vpop.f32.mrf.mxu0
    %v2234 = vadd.f32 0.0, %v2233
    %v2235 = vpop.f32.mrf.mxu0
    %v2236 = vpop.f32.mrf.mxu0
    %v2237 = vpop.f32.mrf.mxu0
    %2238 = vdwg.mxu0
    %v2239 = vsel %vm2026, %v2183, -inf
    %2240 = vmax.xlane.f32.xlu0 %v2239
    %v2241 = vpop.xlane.xlu0 %2240
    %v2242 = vsel %vm2026, %v2234, -inf
    %2243 = vmax.xlane.f32.xlu0 %v2242
    %v2244 = vpop.xlane.xlu0 %2243
    %v2245 = vsub.f32 %v2183, %v2241
    %v2246 = vsub.f32 %v2234, %v2244
    %v2247 = vmul.f32 %v2245, 1.442695
    %v2248 = vpow.pop %v2247
    %v2249 = vmul.f32 %v2246, 1.442695
    %v2250 = vpow.pop %v2249
    %v2251 = vsel %vm2026, %v2248, 0.0
    %2252 = vadd.xlane.f32.xlu0 %v2251
    %v2253 = vpop.xlane.xlu0 %2252
    %v2254 = vsel %vm2026, %v2250, 0.0
    %2255 = vadd.xlane.f32.xlu0 %v2254
    %v2256 = vpop.xlane.xlu0 %2255
    %v2257 = vrcp.pop %v2253
    %v2258 = vrcp.pop %v2256
    %v2259 = vmul.f32 %v2248, %v2257
    %v2260 = vmul.f32 %v2250, %v2258
    %v2261 = vpack.c.bf16 %v2259, %v2259
    %v2262 = vpack.c.bf16 %v2260, %v2260
    %2264 = vrot.lane.b32.xlu0 %v1927, 96
    %v2265 = vpop.permute.xlu0 %2264
    %v2268 = vsel %vm2026, %v2261, 0
    %2270 = vmatprep.subr.bf16.mxu0 0
    %2271 = vmatpush1.bf16.msra.mxu0 0
    %2272 = vmatprep.subr.bf16.mxu0 0
    %2273 = vmatpush1.bf16.msra.mxu0 0
    %2274 = vmatprep.subr.bf16.mxu0 0
    %2275 = vmatpush1.bf16.msra.mxu0 0
    %2276 = vmatprep.subr.bf16.mxu0 0
    %2277 = vmatpush1.bf16.msra.mxu0 0
    %2278 = vmatprep.subr.bf16.mxu0 0
    %2279 = vmatpush1.bf16.msra.mxu0 0
    %2280 = vmatprep.subr.bf16.mxu0 0
    %2281 = vmatpush1.bf16.msra.mxu0 0
    %2282 = vmatprep.subr.bf16.mxu0 0
    %2283 = vmatpush1.bf16.msra.mxu0 0
    %2284 = vmatprep.subr.bf16.mxu0 0
    %2285 = vmatpush1.bf16.msra.mxu0 %v2265
    %2286 = vmatprep.subr.bf16.mxu0 0
    %2287 = vmatpush2.bf16.msra.mxu0 0
    %2288 = vmatprep.subr.bf16.mxu0 0
    %2289 = vmatpush2.bf16.msra.mxu0 0
    %2290 = vmatprep.subr.bf16.mxu0 0
    %2291 = vmatpush2.bf16.msra.mxu0 0
    %2292 = vmatprep.subr.bf16.mxu0 0
    %2293 = vmatpush2.bf16.msra.mxu0 0
    %2294 = vmatprep.subr.bf16.mxu0 0
    %2295 = vmatpush2.bf16.msra.mxu0 0
    %2296 = vmatprep.subr.bf16.mxu0 0
    %2297 = vmatpush2.bf16.msra.mxu0 0
    %2298 = vmatprep.subr.bf16.mxu0 0
    %2299 = vmatpush2.bf16.msra.mxu0 0
    %2300 = vmatprep.subr.bf16.mxu0 0
    %2301 = vmatpush2.bf16.msra.mxu0 0
    %2302 = vmatprep.mubr.bf16.mxu0 0
    %2303 = vmatmul.mubr.bf16.gmra.mxu0 %v2268
    %v2304 = vpop.f32.mrf.mxu0
    %v2305 = vadd.f32 0.0, %v2304
    %v2306 = vpop.f32.mrf.mxu0
    %v2307 = vpop.f32.mrf.mxu0
    %v2308 = vpop.f32.mrf.mxu0
    %2309 = vdwg.mxu0
    %2311 = vrot.lane.b32.xlu0 %v1928, 96
    %v2312 = vpop.permute.xlu0 %2311
    %v2315 = vsel %vm2026, %v2262, 0
    %2317 = vmatprep.subr.bf16.mxu0 0
    %2318 = vmatpush1.bf16.msra.mxu0 0
    %2319 = vmatprep.subr.bf16.mxu0 0
    %2320 = vmatpush1.bf16.msra.mxu0 0
    %2321 = vmatprep.subr.bf16.mxu0 0
    %2322 = vmatpush1.bf16.msra.mxu0 0
    %2323 = vmatprep.subr.bf16.mxu0 0
    %2324 = vmatpush1.bf16.msra.mxu0 0
    %2325 = vmatprep.subr.bf16.mxu0 0
    %2326 = vmatpush1.bf16.msra.mxu0 0
    %2327 = vmatprep.subr.bf16.mxu0 0
    %2328 = vmatpush1.bf16.msra.mxu0 0
    %2329 = vmatprep.subr.bf16.mxu0 0
    %2330 = vmatpush1.bf16.msra.mxu0 0
    %2331 = vmatprep.subr.bf16.mxu0 0
    %2332 = vmatpush1.bf16.msra.mxu0 %v2312
    %2333 = vmatprep.subr.bf16.mxu0 0
    %2334 = vmatpush2.bf16.msra.mxu0 0
    %2335 = vmatprep.subr.bf16.mxu0 0
    %2336 = vmatpush2.bf16.msra.mxu0 0
    %2337 = vmatprep.subr.bf16.mxu0 0
    %2338 = vmatpush2.bf16.msra.mxu0 0
    %2339 = vmatprep.subr.bf16.mxu0 0
    %2340 = vmatpush2.bf16.msra.mxu0 0
    %2341 = vmatprep.subr.bf16.mxu0 0
    %2342 = vmatpush2.bf16.msra.mxu0 0
    %2343 = vmatprep.subr.bf16.mxu0 0
    %2344 = vmatpush2.bf16.msra.mxu0 0
    %2345 = vmatprep.subr.bf16.mxu0 0
    %2346 = vmatpush2.bf16.msra.mxu0 0
    %2347 = vmatprep.subr.bf16.mxu0 0
    %2348 = vmatpush2.bf16.msra.mxu0 0
    %2349 = vmatprep.mubr.bf16.mxu0 0
    %2350 = vmatmul.mubr.bf16.gmra.mxu0 %v2315
    %v2351 = vpop.f32.mrf.mxu0
    %v2352 = vadd.f32 0.0, %v2351
    %v2353 = vpop.f32.mrf.mxu0
    %v2354 = vpop.f32.mrf.mxu0
    %v2355 = vpop.f32.mrf.mxu0
    %2356 = vdwg.mxu0
    %2357 = vrot.lane.b32.xlu0 %v1932, 64
    %v2358 = vpop.permute.xlu0 %2357
    %2359 = vrot.lane.b32.xlu0 %v1925, 64
    %v2360 = vpop.permute.xlu0 %2359
    %v2362 = vsel %vm580, %v2358, 0
    %v2365 = vsel %vm580, %v2360, 0
    %2367 = vmatprep.subr.bf16.mxu0 0
    %2368 = vmatpush1.bf16.xpose.msra.mxu0 0
    %2369 = vmatprep.subr.bf16.mxu0 0
    %2370 = vmatpush1.bf16.xpose.msra.mxu0 0
    %2371 = vmatprep.subr.bf16.mxu0 0
    %2372 = vmatpush1.bf16.xpose.msra.mxu0 0
    %2373 = vmatprep.subr.bf16.mxu0 0
    %2374 = vmatpush1.bf16.xpose.msra.mxu0 0
    %2375 = vmatprep.subr.bf16.mxu0 0
    %2376 = vmatpush1.bf16.xpose.msra.mxu0 0
    %2377 = vmatprep.subr.bf16.mxu0 0
    %2378 = vmatpush1.bf16.xpose.msra.mxu0 0
    %2379 = vmatprep.subr.bf16.mxu0 0
    %2380 = vmatpush1.bf16.xpose.msra.mxu0 0
    %2381 = vmatprep.subr.bf16.mxu0 0
    %2382 = vmatpush1.bf16.xpose.msra.mxu0 %v2365
    %2383 = vmatprep.subr.bf16.mxu0 0
    %2384 = vmatpush2.bf16.xpose.msra.mxu0 0
    %2385 = vmatprep.subr.bf16.mxu0 0
    %2386 = vmatpush2.bf16.xpose.msra.mxu0 0
    %2387 = vmatprep.subr.bf16.mxu0 0
    %2388 = vmatpush2.bf16.xpose.msra.mxu0 0
    %2389 = vmatprep.subr.bf16.mxu0 0
    %2390 = vmatpush2.bf16.xpose.msra.mxu0 0
    %2391 = vmatprep.subr.bf16.mxu0 0
    %2392 = vmatpush2.bf16.xpose.msra.mxu0 0
    %2393 = vmatprep.subr.bf16.mxu0 0
    %2394 = vmatpush2.bf16.xpose.msra.mxu0 0
    %2395 = vmatprep.subr.bf16.mxu0 0
    %2396 = vmatpush2.bf16.xpose.msra.mxu0 0
    %2397 = vmatprep.subr.bf16.mxu0 0
    %2398 = vmatpush2.bf16.xpose.msra.mxu0 0
    %2399 = vmatprep.mubr.bf16.mxu0 0
    %2400 = vmatmul.mubr.bf16.gmra.mxu0 %v2362
    %v2401 = vpop.f32.mrf.mxu0
    %v2402 = vadd.f32 0.0, %v2401
    %v2403 = vpop.f32.mrf.mxu0
    %v2404 = vpop.f32.mrf.mxu0
    %v2405 = vpop.f32.mrf.mxu0
    %2406 = vdwg.mxu0
    %2407 = vrot.lane.b32.xlu0 %v1933, 64
    %v2408 = vpop.permute.xlu0 %2407
    %2409 = vrot.lane.b32.xlu0 %v1926, 64
    %v2410 = vpop.permute.xlu0 %2409
    %v2412 = vsel %vm580, %v2408, 0
    %v2415 = vsel %vm580, %v2410, 0
    %2417 = vmatprep.subr.bf16.mxu0 0
    %2418 = vmatpush1.bf16.xpose.msra.mxu0 0
    %2419 = vmatprep.subr.bf16.mxu0 0
    %2420 = vmatpush1.bf16.xpose.msra.mxu0 0
    %2421 = vmatprep.subr.bf16.mxu0 0
    %2422 = vmatpush1.bf16.xpose.msra.mxu0 0
    %2423 = vmatprep.subr.bf16.mxu0 0
    %2424 = vmatpush1.bf16.xpose.msra.mxu0 0
    %2425 = vmatprep.subr.bf16.mxu0 0
    %2426 = vmatpush1.bf16.xpose.msra.mxu0 0
    %2427 = vmatprep.subr.bf16.mxu0 0
    %2428 = vmatpush1.bf16.xpose.msra.mxu0 0
    %2429 = vmatprep.subr.bf16.mxu0 0
    %2430 = vmatpush1.bf16.xpose.msra.mxu0 0
    %2431 = vmatprep.subr.bf16.mxu0 0
    %2432 = vmatpush1.bf16.xpose.msra.mxu0 %v2415
    %2433 = vmatprep.subr.bf16.mxu0 0
    %2434 = vmatpush2.bf16.xpose.msra.mxu0 0
    %2435 = vmatprep.subr.bf16.mxu0 0
    %2436 = vmatpush2.bf16.xpose.msra.mxu0 0
    %2437 = vmatprep.subr.bf16.mxu0 0
    %2438 = vmatpush2.bf16.xpose.msra.mxu0 0
    %2439 = vmatprep.subr.bf16.mxu0 0
    %2440 = vmatpush2.bf16.xpose.msra.mxu0 0
    %2441 = vmatprep.subr.bf16.mxu0 0
    %2442 = vmatpush2.bf16.xpose.msra.mxu0 0
    %2443 = vmatprep.subr.bf16.mxu0 0
    %2444 = vmatpush2.bf16.xpose.msra.mxu0 0
    %2445 = vmatprep.subr.bf16.mxu0 0
    %2446 = vmatpush2.bf16.xpose.msra.mxu0 0
    %2447 = vmatprep.subr.bf16.mxu0 0
    %2448 = vmatpush2.bf16.xpose.msra.mxu0 0
    %2449 = vmatprep.mubr.bf16.mxu0 0
    %2450 = vmatmul.mubr.bf16.gmra.mxu0 %v2412
    %v2451 = vpop.f32.mrf.mxu0
    %v2452 = vadd.f32 0.0, %v2451
    %v2453 = vpop.f32.mrf.mxu0
    %v2454 = vpop.f32.mrf.mxu0
    %v2455 = vpop.f32.mrf.mxu0
    %2456 = vdwg.mxu0
    %v2457 = vsel %vm2026, %v2402, -inf
    %2458 = vmax.xlane.f32.xlu0 %v2457
    %v2459 = vpop.xlane.xlu0 %2458
    %v2460 = vsel %vm2026, %v2452, -inf
    %2461 = vmax.xlane.f32.xlu0 %v2460
    %v2462 = vpop.xlane.xlu0 %2461
    %v2463 = vsub.f32 %v2402, %v2459
    %v2464 = vsub.f32 %v2452, %v2462
    %v2465 = vmul.f32 %v2463, 1.442695
    %v2466 = vpow.pop %v2465
    %v2467 = vmul.f32 %v2464, 1.442695
    %v2468 = vpow.pop %v2467
    %v2469 = vsel %vm2026, %v2466, 0.0
    %2470 = vadd.xlane.f32.xlu0 %v2469
    %v2471 = vpop.xlane.xlu0 %2470
    %v2472 = vsel %vm2026, %v2468, 0.0
    %2473 = vadd.xlane.f32.xlu0 %v2472
    %v2474 = vpop.xlane.xlu0 %2473
    %v2475 = vrcp.pop %v2471
    %v2476 = vrcp.pop %v2474
    %v2477 = vmul.f32 %v2466, %v2475
    %v2478 = vmul.f32 %v2468, %v2476
    %v2479 = vpack.c.bf16 %v2477, %v2477
    %v2480 = vpack.c.bf16 %v2478, %v2478
    %2481 = vrot.lane.b32.xlu0 %v1927, 64
    %v2482 = vpop.permute.xlu0 %2481
    %v2485 = vsel %vm2026, %v2479, 0
    %2487 = vmatprep.subr.bf16.mxu0 0
    %2488 = vmatpush1.bf16.msra.mxu0 0
    %2489 = vmatprep.subr.bf16.mxu0 0
    %2490 = vmatpush1.bf16.msra.mxu0 0
    %2491 = vmatprep.subr.bf16.mxu0 0
    %2492 = vmatpush1.bf16.msra.mxu0 0
    %2493 = vmatprep.subr.bf16.mxu0 0
    %2494 = vmatpush1.bf16.msra.mxu0 0
    %2495 = vmatprep.subr.bf16.mxu0 0
    %2496 = vmatpush1.bf16.msra.mxu0 0
    %2497 = vmatprep.subr.bf16.mxu0 0
    %2498 = vmatpush1.bf16.msra.mxu0 0
    %2499 = vmatprep.subr.bf16.mxu0 0
    %2500 = vmatpush1.bf16.msra.mxu0 0
    %2501 = vmatprep.subr.bf16.mxu0 0
    %2502 = vmatpush1.bf16.msra.mxu0 %v2482
    %2503 = vmatprep.subr.bf16.mxu0 0
    %2504 = vmatpush2.bf16.msra.mxu0 0
    %2505 = vmatprep.subr.bf16.mxu0 0
    %2506 = vmatpush2.bf16.msra.mxu0 0
    %2507 = vmatprep.subr.bf16.mxu0 0
    %2508 = vmatpush2.bf16.msra.mxu0 0
    %2509 = vmatprep.subr.bf16.mxu0 0
    %2510 = vmatpush2.bf16.msra.mxu0 0
    %2511 = vmatprep.subr.bf16.mxu0 0
    %2512 = vmatpush2.bf16.msra.mxu0 0
    %2513 = vmatprep.subr.bf16.mxu0 0
    %2514 = vmatpush2.bf16.msra.mxu0 0
    %2515 = vmatprep.subr.bf16.mxu0 0
    %2516 = vmatpush2.bf16.msra.mxu0 0
    %2517 = vmatprep.subr.bf16.mxu0 0
    %2518 = vmatpush2.bf16.msra.mxu0 0
    %2519 = vmatprep.mubr.bf16.mxu0 0
    %2520 = vmatmul.mubr.bf16.gmra.mxu0 %v2485
    %v2521 = vpop.f32.mrf.mxu0
    %v2522 = vadd.f32 0.0, %v2521
    %v2523 = vpop.f32.mrf.mxu0
    %v2524 = vpop.f32.mrf.mxu0
    %v2525 = vpop.f32.mrf.mxu0
    %2526 = vdwg.mxu0
    %2527 = vrot.lane.b32.xlu0 %v1928, 64
    %v2528 = vpop.permute.xlu0 %2527
    %v2531 = vsel %vm2026, %v2480, 0
    %2533 = vmatprep.subr.bf16.mxu0 0
    %2534 = vmatpush1.bf16.msra.mxu0 0
    %2535 = vmatprep.subr.bf16.mxu0 0
    %2536 = vmatpush1.bf16.msra.mxu0 0
    %2537 = vmatprep.subr.bf16.mxu0 0
    %2538 = vmatpush1.bf16.msra.mxu0 0
    %2539 = vmatprep.subr.bf16.mxu0 0
    %2540 = vmatpush1.bf16.msra.mxu0 0
    %2541 = vmatprep.subr.bf16.mxu0 0
    %2542 = vmatpush1.bf16.msra.mxu0 0
    %2543 = vmatprep.subr.bf16.mxu0 0
    %2544 = vmatpush1.bf16.msra.mxu0 0
    %2545 = vmatprep.subr.bf16.mxu0 0
    %2546 = vmatpush1.bf16.msra.mxu0 0
    %2547 = vmatprep.subr.bf16.mxu0 0
    %2548 = vmatpush1.bf16.msra.mxu0 %v2528
    %2549 = vmatprep.subr.bf16.mxu0 0
    %2550 = vmatpush2.bf16.msra.mxu0 0
    %2551 = vmatprep.subr.bf16.mxu0 0
    %2552 = vmatpush2.bf16.msra.mxu0 0
    %2553 = vmatprep.subr.bf16.mxu0 0
    %2554 = vmatpush2.bf16.msra.mxu0 0
    %2555 = vmatprep.subr.bf16.mxu0 0
    %2556 = vmatpush2.bf16.msra.mxu0 0
    %2557 = vmatprep.subr.bf16.mxu0 0
    %2558 = vmatpush2.bf16.msra.mxu0 0
    %2559 = vmatprep.subr.bf16.mxu0 0
    %2560 = vmatpush2.bf16.msra.mxu0 0
    %2561 = vmatprep.subr.bf16.mxu0 0
    %2562 = vmatpush2.bf16.msra.mxu0 0
    %2563 = vmatprep.subr.bf16.mxu0 0
    %2564 = vmatpush2.bf16.msra.mxu0 0
    %2565 = vmatprep.mubr.bf16.mxu0 0
    %2566 = vmatmul.mubr.bf16.gmra.mxu0 %v2531
    %v2567 = vpop.f32.mrf.mxu0
    %v2568 = vadd.f32 0.0, %v2567
    %v2569 = vpop.f32.mrf.mxu0
    %v2570 = vpop.f32.mrf.mxu0
    %v2571 = vpop.f32.mrf.mxu0
    %2572 = vdwg.mxu0
    %2573 = vrot.lane.b32.xlu0 %v1932, 32
    %v2574 = vpop.permute.xlu0 %2573
    %2575 = vrot.lane.b32.xlu0 %v1925, 32
    %v2576 = vpop.permute.xlu0 %2575
    %v2578 = vsel %vm580, %v2574, 0
    %v2581 = vsel %vm580, %v2576, 0
    %2583 = vmatprep.subr.bf16.mxu0 0
    %2584 = vmatpush1.bf16.xpose.msra.mxu0 0
    %2585 = vmatprep.subr.bf16.mxu0 0
    %2586 = vmatpush1.bf16.xpose.msra.mxu0 0
    %2587 = vmatprep.subr.bf16.mxu0 0
    %2588 = vmatpush1.bf16.xpose.msra.mxu0 0
    %2589 = vmatprep.subr.bf16.mxu0 0
    %2590 = vmatpush1.bf16.xpose.msra.mxu0 0
    %2591 = vmatprep.subr.bf16.mxu0 0
    %2592 = vmatpush1.bf16.xpose.msra.mxu0 0
    %2593 = vmatprep.subr.bf16.mxu0 0
    %2594 = vmatpush1.bf16.xpose.msra.mxu0 0
    %2595 = vmatprep.subr.bf16.mxu0 0
    %2596 = vmatpush1.bf16.xpose.msra.mxu0 0
    %2597 = vmatprep.subr.bf16.mxu0 0
    %2598 = vmatpush1.bf16.xpose.msra.mxu0 %v2581
    %2599 = vmatprep.subr.bf16.mxu0 0
    %2600 = vmatpush2.bf16.xpose.msra.mxu0 0
    %2601 = vmatprep.subr.bf16.mxu0 0
    %2602 = vmatpush2.bf16.xpose.msra.mxu0 0
    %2603 = vmatprep.subr.bf16.mxu0 0
    %2604 = vmatpush2.bf16.xpose.msra.mxu0 0
    %2605 = vmatprep.subr.bf16.mxu0 0
    %2606 = vmatpush2.bf16.xpose.msra.mxu0 0
    %2607 = vmatprep.subr.bf16.mxu0 0
    %2608 = vmatpush2.bf16.xpose.msra.mxu0 0
    %2609 = vmatprep.subr.bf16.mxu0 0
    %2610 = vmatpush2.bf16.xpose.msra.mxu0 0
    %2611 = vmatprep.subr.bf16.mxu0 0
    %2612 = vmatpush2.bf16.xpose.msra.mxu0 0
    %2613 = vmatprep.subr.bf16.mxu0 0
    %2614 = vmatpush2.bf16.xpose.msra.mxu0 0
    %2615 = vmatprep.mubr.bf16.mxu0 0
    %2616 = vmatmul.mubr.bf16.gmra.mxu0 %v2578
    %v2617 = vpop.f32.mrf.mxu0
    %v2618 = vadd.f32 0.0, %v2617
    %v2619 = vpop.f32.mrf.mxu0
    %v2620 = vpop.f32.mrf.mxu0
    %v2621 = vpop.f32.mrf.mxu0
    %2622 = vdwg.mxu0
    %2623 = vrot.lane.b32.xlu0 %v1933, 32
    %v2624 = vpop.permute.xlu0 %2623
    %2625 = vrot.lane.b32.xlu0 %v1926, 32
    %v2626 = vpop.permute.xlu0 %2625
    %v2628 = vsel %vm580, %v2624, 0
    %v2631 = vsel %vm580, %v2626, 0
    %2633 = vmatprep.subr.bf16.mxu0 0
    %2634 = vmatpush1.bf16.xpose.msra.mxu0 0
    %2635 = vmatprep.subr.bf16.mxu0 0
    %2636 = vmatpush1.bf16.xpose.msra.mxu0 0
    %2637 = vmatprep.subr.bf16.mxu0 0
    %2638 = vmatpush1.bf16.xpose.msra.mxu0 0
    %2639 = vmatprep.subr.bf16.mxu0 0
    %2640 = vmatpush1.bf16.xpose.msra.mxu0 0
    %2641 = vmatprep.subr.bf16.mxu0 0
    %2642 = vmatpush1.bf16.xpose.msra.mxu0 0
    %2643 = vmatprep.subr.bf16.mxu0 0
    %2644 = vmatpush1.bf16.xpose.msra.mxu0 0
    %2645 = vmatprep.subr.bf16.mxu0 0
    %2646 = vmatpush1.bf16.xpose.msra.mxu0 0
    %2647 = vmatprep.subr.bf16.mxu0 0
    %2648 = vmatpush1.bf16.xpose.msra.mxu0 %v2631
    %2649 = vmatprep.subr.bf16.mxu0 0
    %2650 = vmatpush2.bf16.xpose.msra.mxu0 0
    %2651 = vmatprep.subr.bf16.mxu0 0
    %2652 = vmatpush2.bf16.xpose.msra.mxu0 0
    %2653 = vmatprep.subr.bf16.mxu0 0
    %2654 = vmatpush2.bf16.xpose.msra.mxu0 0
    %2655 = vmatprep.subr.bf16.mxu0 0
    %2656 = vmatpush2.bf16.xpose.msra.mxu0 0
    %2657 = vmatprep.subr.bf16.mxu0 0
    %2658 = vmatpush2.bf16.xpose.msra.mxu0 0
    %2659 = vmatprep.subr.bf16.mxu0 0
    %2660 = vmatpush2.bf16.xpose.msra.mxu0 0
    %2661 = vmatprep.subr.bf16.mxu0 0
    %2662 = vmatpush2.bf16.xpose.msra.mxu0 0
    %2663 = vmatprep.subr.bf16.mxu0 0
    %2664 = vmatpush2.bf16.xpose.msra.mxu0 0
    %2665 = vmatprep.mubr.bf16.mxu0 0
    %2666 = vmatmul.mubr.bf16.gmra.mxu0 %v2628
    %v2667 = vpop.f32.mrf.mxu0
    %v2668 = vadd.f32 0.0, %v2667
    %v2669 = vpop.f32.mrf.mxu0
    %v2670 = vpop.f32.mrf.mxu0
    %v2671 = vpop.f32.mrf.mxu0
    %2672 = vdwg.mxu0
    %v2673 = vsel %vm2026, %v2618, -inf
    %2674 = vmax.xlane.f32.xlu0 %v2673
    %v2675 = vpop.xlane.xlu0 %2674
    %v2676 = vsel %vm2026, %v2668, -inf
    %2677 = vmax.xlane.f32.xlu0 %v2676
    %v2678 = vpop.xlane.xlu0 %2677
    %v2679 = vsub.f32 %v2618, %v2675
    %v2680 = vsub.f32 %v2668, %v2678
    %v2681 = vmul.f32 %v2679, 1.442695
    %v2682 = vpow.pop %v2681
    %v2683 = vmul.f32 %v2680, 1.442695
    %v2684 = vpow.pop %v2683
    %v2685 = vsel %vm2026, %v2682, 0.0
    %2686 = vadd.xlane.f32.xlu0 %v2685
    %v2687 = vpop.xlane.xlu0 %2686
    %v2688 = vsel %vm2026, %v2684, 0.0
    %2689 = vadd.xlane.f32.xlu0 %v2688
    %v2690 = vpop.xlane.xlu0 %2689
    %v2691 = vrcp.pop %v2687
    %v2692 = vrcp.pop %v2690
    %v2693 = vmul.f32 %v2682, %v2691
    %v2694 = vmul.f32 %v2684, %v2692
    %v2695 = vpack.c.bf16 %v2693, %v2693
    %v2696 = vpack.c.bf16 %v2694, %v2694
    %2697 = vrot.lane.b32.xlu0 %v1927, 32
    %v2698 = vpop.permute.xlu0 %2697
    %v2701 = vsel %vm2026, %v2695, 0
    %2703 = vmatprep.subr.bf16.mxu0 0
    %2704 = vmatpush1.bf16.msra.mxu0 0
    %2705 = vmatprep.subr.bf16.mxu0 0
    %2706 = vmatpush1.bf16.msra.mxu0 0
    %2707 = vmatprep.subr.bf16.mxu0 0
    %2708 = vmatpush1.bf16.msra.mxu0 0
    %2709 = vmatprep.subr.bf16.mxu0 0
    %2710 = vmatpush1.bf16.msra.mxu0 0
    %2711 = vmatprep.subr.bf16.mxu0 0
    %2712 = vmatpush1.bf16.msra.mxu0 0
    %2713 = vmatprep.subr.bf16.mxu0 0
    %2714 = vmatpush1.bf16.msra.mxu0 0
    %2715 = vmatprep.subr.bf16.mxu0 0
    %2716 = vmatpush1.bf16.msra.mxu0 0
    %2717 = vmatprep.subr.bf16.mxu0 0
    %2718 = vmatpush1.bf16.msra.mxu0 %v2698
    %2719 = vmatprep.subr.bf16.mxu0 0
    %2720 = vmatpush2.bf16.msra.mxu0 0
    %2721 = vmatprep.subr.bf16.mxu0 0
    %2722 = vmatpush2.bf16.msra.mxu0 0
    %2723 = vmatprep.subr.bf16.mxu0 0
    %2724 = vmatpush2.bf16.msra.mxu0 0
    %2725 = vmatprep.subr.bf16.mxu0 0
    %2726 = vmatpush2.bf16.msra.mxu0 0
    %2727 = vmatprep.subr.bf16.mxu0 0
    %2728 = vmatpush2.bf16.msra.mxu0 0
    %2729 = vmatprep.subr.bf16.mxu0 0
    %2730 = vmatpush2.bf16.msra.mxu0 0
    %2731 = vmatprep.subr.bf16.mxu0 0
    %2732 = vmatpush2.bf16.msra.mxu0 0
    %2733 = vmatprep.subr.bf16.mxu0 0
    %2734 = vmatpush2.bf16.msra.mxu0 0
    %2735 = vmatprep.mubr.bf16.mxu0 0
    %2736 = vmatmul.mubr.bf16.gmra.mxu0 %v2701
    %v2737 = vpop.f32.mrf.mxu0
    %v2738 = vadd.f32 0.0, %v2737
    %v2739 = vpop.f32.mrf.mxu0
    %v2740 = vpop.f32.mrf.mxu0
    %v2741 = vpop.f32.mrf.mxu0
    %2742 = vdwg.mxu0
    %2743 = vrot.lane.b32.xlu0 %v1928, 32
    %v2744 = vpop.permute.xlu0 %2743
    %v2747 = vsel %vm2026, %v2696, 0
    %2749 = vmatprep.subr.bf16.mxu0 0
    %2750 = vmatpush1.bf16.msra.mxu0 0
    %2751 = vmatprep.subr.bf16.mxu0 0
    %2752 = vmatpush1.bf16.msra.mxu0 0
    %2753 = vmatprep.subr.bf16.mxu0 0
    %2754 = vmatpush1.bf16.msra.mxu0 0
    %2755 = vmatprep.subr.bf16.mxu0 0
    %2756 = vmatpush1.bf16.msra.mxu0 0
    %2757 = vmatprep.subr.bf16.mxu0 0
    %2758 = vmatpush1.bf16.msra.mxu0 0
    %2759 = vmatprep.subr.bf16.mxu0 0
    %2760 = vmatpush1.bf16.msra.mxu0 0
    %2761 = vmatprep.subr.bf16.mxu0 0
    %2762 = vmatpush1.bf16.msra.mxu0 0
    %2763 = vmatprep.subr.bf16.mxu0 0
    %2764 = vmatpush1.bf16.msra.mxu0 %v2744
    %2765 = vmatprep.subr.bf16.mxu0 0
    %2766 = vmatpush2.bf16.msra.mxu0 0
    %2767 = vmatprep.subr.bf16.mxu0 0
    %2768 = vmatpush2.bf16.msra.mxu0 0
    %2769 = vmatprep.subr.bf16.mxu0 0
    %2770 = vmatpush2.bf16.msra.mxu0 0
    %2771 = vmatprep.subr.bf16.mxu0 0
    %2772 = vmatpush2.bf16.msra.mxu0 0
    %2773 = vmatprep.subr.bf16.mxu0 0
    %2774 = vmatpush2.bf16.msra.mxu0 0
    %2775 = vmatprep.subr.bf16.mxu0 0
    %2776 = vmatpush2.bf16.msra.mxu0 0
    %2777 = vmatprep.subr.bf16.mxu0 0
    %2778 = vmatpush2.bf16.msra.mxu0 0
    %2779 = vmatprep.subr.bf16.mxu0 0
    %2780 = vmatpush2.bf16.msra.mxu0 0
    %2781 = vmatprep.mubr.bf16.mxu0 0
    %2782 = vmatmul.mubr.bf16.gmra.mxu0 %v2747
    %v2783 = vpop.f32.mrf.mxu0
    %v2784 = vadd.f32 0.0, %v2783
    %v2785 = vpop.f32.mrf.mxu0
    %v2786 = vpop.f32.mrf.mxu0
    %v2787 = vpop.f32.mrf.mxu0
    %2788 = vdwg.mxu0
    %2791 = vrot.lane.b32.xlu0 %v2305, 32
    %v2792 = vpop.permute.xlu0 %2791
    %2793 = vrot.lane.b32.xlu0 %v2352, 32
    %v2794 = vpop.permute.xlu0 %2793
    %2799 = vrot.lane.b32.xlu0 %v2522, 64
    %v2800 = vpop.permute.xlu0 %2799
    %2801 = vrot.lane.b32.xlu0 %v2568, 64
    %v2802 = vpop.permute.xlu0 %2801
    %2807 = vrot.lane.b32.xlu0 %v2738, 96
    %v2808 = vpop.permute.xlu0 %2807
    %2809 = vrot.lane.b32.xlu0 %v2784, 96
    %v2810 = vpop.permute.xlu0 %2809
    %v2813 = vsel %vm580, %v2089, %v2792
    %v2814 = vsel %vm580, %v2132, %v2794
    %v2815 = vsel %vm1477, %v2813, %v2800
    %v2816 = vsel %vm1477, %v2814, %v2802
    %v2817 = vsel %vm1480, %v2815, %v2808
    %v2818 = vsel %vm1480, %v2816, %v2810
    %v2819 = vpack.c.bf16 %v2818, %v2817
    %v2820 = vld [vmem:[#allocation19] sm:$0xf]
    %v2821 = vld [vmem:[#allocation19 + $0x4] sm:$0xf]
    %v2822 = vld [vmem:[#allocation19 + $0x8] sm:$0xf]
    %v2823 = vld [vmem:[#allocation19 + $0xc] sm:$0xf]
    %v2824 = vld [vmem:[#allocation19 + $0x10] sm:$0xf]
    %v2825 = vld [vmem:[#allocation19 + $0x14] sm:$0xf]
    %v2826 = vld [vmem:[#allocation19 + $0x18] sm:$0xf]
    %v2827 = vld [vmem:[#allocation19 + $0x1c] sm:$0xf]
    %v2828 = vld [vmem:[#allocation19 + $0x20] sm:$0xf]
    %v2829 = vld [vmem:[#allocation19 + $0x24] sm:$0xf]
    %v2830 = vld [vmem:[#allocation19 + $0x28] sm:$0xf]
    %v2831 = vld [vmem:[#allocation19 + $0x2c] sm:$0xf]
    %v2832 = vld [vmem:[#allocation19 + $0x30] sm:$0xf]
    %v2833 = vld [vmem:[#allocation19 + $0x34] sm:$0xf]
    %v2834 = vld [vmem:[#allocation19 + $0x38] sm:$0xf]
    %v2835 = vld [vmem:[#allocation19 + $0x3c] sm:$0xf]
    %v2836 = vld [vmem:[%s19] sm:$0x1]
    %v2838 = vlaneseq
    %v2839 = vshrl.u32 %v2838, 7
    %v2840 = vsub.s32 0, %v2839
    %v2841 = vrot.slane %v2836, %v2840
    %v2859 = vunpack.c.l.b16 %v2820
    %v2860 = vunpack.c.l.b16 %v2821
    %v2861 = vunpack.c.l.b16 %v2822
    %v2862 = vunpack.c.l.b16 %v2823
    %v2863 = vunpack.c.l.b16 %v2824
    %v2864 = vunpack.c.l.b16 %v2825
    %v2865 = vunpack.c.l.b16 %v2826
    %v2866 = vunpack.c.l.b16 %v2827
    %v2867 = vunpack.c.l.b16 %v2828
    %v2868 = vunpack.c.l.b16 %v2829
    %v2869 = vunpack.c.l.b16 %v2830
    %v2870 = vunpack.c.l.b16 %v2831
    %v2871 = vunpack.c.l.b16 %v2832
    %v2872 = vunpack.c.l.b16 %v2833
    %v2873 = vunpack.c.l.b16 %v2834
    %v2874 = vunpack.c.l.b16 %v2835
    %v2875 = vpack.c.b16 %v2860, %v2859
    %v2876 = vpack.c.b16 %v2862, %v2861
    %v2877 = vpack.c.b16 %v2864, %v2863
    %v2878 = vpack.c.b16 %v2866, %v2865
    %v2879 = vpack.c.b16 %v2868, %v2867
    %v2880 = vpack.c.b16 %v2870, %v2869
    %v2881 = vpack.c.b16 %v2872, %v2871
    %v2882 = vpack.c.b16 %v2874, %v2873
    %2891 = vmatprep.subr.bf16.mxu0 0
    %2892 = vmatpush1.bf16.msra.mxu0 %v2882
    %2893 = vmatprep.subr.bf16.mxu0 0
    %2894 = vmatpush1.bf16.msra.mxu0 %v2881
    %2895 = vmatprep.subr.bf16.mxu0 0
    %2896 = vmatpush1.bf16.msra.mxu0 %v2880
    %2897 = vmatprep.subr.bf16.mxu0 0
    %2898 = vmatpush1.bf16.msra.mxu0 %v2879
    %2899 = vmatprep.subr.bf16.mxu0 0
    %2900 = vmatpush1.bf16.msra.mxu0 %v2878
    %2901 = vmatprep.subr.bf16.mxu0 0
    %2902 = vmatpush1.bf16.msra.mxu0 %v2877
    %2903 = vmatprep.subr.bf16.mxu0 0
    %2904 = vmatpush1.bf16.msra.mxu0 %v2876
    %2905 = vmatprep.subr.bf16.mxu0 0
    %2906 = vmatpush1.bf16.msra.mxu0 %v2875
    %2907 = vmatprep.subr.bf16.mxu0 0
    %2908 = vmatpush2.bf16.msra.mxu0 0
    %2909 = vmatprep.subr.bf16.mxu0 0
    %2910 = vmatpush2.bf16.msra.mxu0 0
    %2911 = vmatprep.subr.bf16.mxu0 0
    %2912 = vmatpush2.bf16.msra.mxu0 0
    %2913 = vmatprep.subr.bf16.mxu0 0
    %2914 = vmatpush2.bf16.msra.mxu0 0
    %2915 = vmatprep.subr.bf16.mxu0 0
    %2916 = vmatpush2.bf16.msra.mxu0 0
    %2917 = vmatprep.subr.bf16.mxu0 0
    %2918 = vmatpush2.bf16.msra.mxu0 0
    %2919 = vmatprep.subr.bf16.mxu0 0
    %2920 = vmatpush2.bf16.msra.mxu0 0
    %2921 = vmatprep.subr.bf16.mxu0 0
    %2922 = vmatpush2.bf16.msra.mxu0 0
    %2923 = vmatprep.mubr.bf16.mxu0 0
    %2924 = vmatmul.mubr.bf16.gmra.mxu0 %v2819
    %v2925 = vpop.f32.mrf.mxu0
    %v2926 = vadd.f32 %v2841, %v2925
    %v2927 = vpop.f32.mrf.mxu0
    %v2928 = vpop.f32.mrf.mxu0
    %v2929 = vadd.f32 %v2841, %v2928
    %v2930 = vpop.f32.mrf.mxu0
    %2931 = vdwg.mxu0
    %v2932 = vadd.f32 %v1596, %v2926
    %v2933 = vadd.f32 %v1597, %v2929
    %v2934 = vld [vmem:[%s6] sm:$0x1]
    %v2935 = vld [vmem:[%s7] sm:$0x1]
    %2936 = vadd.xlane.f32.xlu0 %v2932
    %v2937 = vpop.xlane.xlu0 %2936
    %2938 = vadd.xlane.f32.xlu0 %v2933
    %v2939 = vpop.xlane.xlu0 %2938
    %v2940 = vmul.f32 %v2937, %v263
    %v2941 = vmul.f32 %v2939, %v263
    %v2942 = vsub.f32 %v2932, %v2940
    %v2943 = vsub.f32 %v2933, %v2941
    %v2944 = vmul.f32 %v2942, %v2942
    %v2945 = vmul.f32 %v2943, %v2943
    %2946 = vadd.xlane.f32.xlu0 %v2944
    %v2947 = vpop.xlane.xlu0 %2946
    %2948 = vadd.xlane.f32.xlu0 %v2945
    %v2949 = vpop.xlane.xlu0 %2948
    %v2950 = vmul.f32 %v2947, %v263
    %v2951 = vmul.f32 %v2949, %v263
    %v2952 = vadd.f32 %v2950, 1e-05
    %v2953 = vadd.f32 %v2951, 1e-05
    %v2954 = vrsqrt.pop %v2952
    %v2955 = vrsqrt.pop %v2953
    %v2956 = vmul.f32 %v2942, %v2954
    %v2957 = vmul.f32 %v2943, %v2955
    %v2959 = vlaneseq
    %v2960 = vshrl.u32 %v2959, 7
    %v2961 = vsub.s32 0, %v2960
    %v2962 = vrot.slane %v2934, %v2961
    %v2964 = vmul.f32 %v2956, %v2962
    %v2965 = vmul.f32 %v2957, %v2962
    %v2967 = vlaneseq
    %v2968 = vshrl.u32 %v2967, 7
    %v2969 = vsub.s32 0, %v2968
    %v2970 = vrot.slane %v2935, %v2969
    %v2972 = vadd.f32 %v2964, %v2970
    %v2973 = vadd.f32 %v2965, %v2970
    %v2974 = vpack.c.bf16 %v2973, %v2972
    %v2975 = vld [vmem:[#allocation20] sm:$0xff]
    %v2976 = vld [vmem:[#allocation20 + $0x8] sm:$0xff]
    %v2977 = vld [vmem:[#allocation20 + $0x10] sm:$0xff]
    %v2978 = vld [vmem:[#allocation20 + $0x18] sm:$0xff]
    %v2979 = vld [vmem:[#allocation20 + $0x20] sm:$0xff]
    %v2980 = vld [vmem:[#allocation20 + $0x28] sm:$0xff]
    %v2981 = vld [vmem:[#allocation20 + $0x30] sm:$0xff]
    %v2982 = vld [vmem:[#allocation20 + $0x38] sm:$0xff]
    %v2983 = vld [vmem:[#allocation20 + $0x40] sm:$0xff]
    %v2984 = vld [vmem:[#allocation20 + $0x48] sm:$0xff]
    %v2985 = vld [vmem:[#allocation20 + $0x50] sm:$0xff]
    %v2986 = vld [vmem:[#allocation20 + $0x58] sm:$0xff]
    %v2987 = vld [vmem:[#allocation20 + $0x60] sm:$0xff]
    %v2988 = vld [vmem:[#allocation20 + $0x68] sm:$0xff]
    %v2989 = vld [vmem:[#allocation20 + $0x70] sm:$0xff]
    %v2990 = vld [vmem:[#allocation20 + $0x78] sm:$0xff]
    %v2991 = vld [vmem:[#allocation20 + $0x80] sm:$0xff]
    %v2992 = vld [vmem:[#allocation20 + $0x88] sm:$0xff]
    %v2993 = vld [vmem:[#allocation20 + $0x90] sm:$0xff]
    %v2994 = vld [vmem:[#allocation20 + $0x98] sm:$0xff]
    %v2995 = vld [vmem:[#allocation20 + $0xa0] sm:$0xff]
    %v2996 = vld [vmem:[#allocation20 + $0xa8] sm:$0xff]
    %v2997 = vld [vmem:[#allocation20 + $0xb0] sm:$0xff]
    %v2998 = vld [vmem:[#allocation20 + $0xb8] sm:$0xff]
    %v2999 = vld [vmem:[#allocation20 + $0xc0] sm:$0xff]
    %v3000 = vld [vmem:[#allocation20 + $0xc8] sm:$0xff]
    %v3001 = vld [vmem:[#allocation20 + $0xd0] sm:$0xff]
    %v3002 = vld [vmem:[#allocation20 + $0xd8] sm:$0xff]
    %v3003 = vld [vmem:[#allocation20 + $0xe0] sm:$0xff]
    %v3004 = vld [vmem:[#allocation20 + $0xe8] sm:$0xff]
    %v3005 = vld [vmem:[#allocation20 + $0xf0] sm:$0xff]
    %v3006 = vld [vmem:[#allocation20 + $0xf8] sm:$0xff]
    %v3007 = vld [vmem:[%s21] sm:$0xf]
    %v3009 = vlaneseq
    %v3010 = vshrl.u32 %v3009, 7
    %v3011 = vsub.s32 0, %v3010
    %v3012 = vrot.slane %v3007, %v3011
    %v3013 = vlaneseq
    %v3014 = vshrl.u32 %v3013, 7
    %v3015 = vsub.s32 1, %v3014
    %v3016 = vrot.slane %v3007, %v3015
    %v3017 = vlaneseq
    %v3018 = vshrl.u32 %v3017, 7
    %v3019 = vsub.s32 2, %v3018
    %v3020 = vrot.slane %v3007, %v3019
    %v3021 = vlaneseq
    %v3022 = vshrl.u32 %v3021, 7
    %v3023 = vsub.s32 3, %v3022
    %v3024 = vrot.slane %v3007, %v3023
    %v3061 = vunpack.c.l.b16 %v2975
    %v3062 = vunpack.c.h.b16 %v2975
    %v3063 = vunpack.c.l.b16 %v2976
    %v3064 = vunpack.c.h.b16 %v2976
    %v3065 = vunpack.c.l.b16 %v2977
    %v3066 = vunpack.c.h.b16 %v2977
    %v3067 = vunpack.c.l.b16 %v2978
    %v3068 = vunpack.c.h.b16 %v2978
    %v3069 = vunpack.c.l.b16 %v2979
    %v3070 = vunpack.c.h.b16 %v2979
    %v3071 = vunpack.c.l.b16 %v2980
    %v3072 = vunpack.c.h.b16 %v2980
    %v3073 = vunpack.c.l.b16 %v2981
    %v3074 = vunpack.c.h.b16 %v2981
    %v3075 = vunpack.c.l.b16 %v2982
    %v3076 = vunpack.c.h.b16 %v2982
    %v3077 = vunpack.c.l.b16 %v2983
    %v3078 = vunpack.c.h.b16 %v2983
    %v3079 = vunpack.c.l.b16 %v2984
    %v3080 = vunpack.c.h.b16 %v2984
    %v3081 = vunpack.c.l.b16 %v2985
    %v3082 = vunpack.c.h.b16 %v2985
    %v3083 = vunpack.c.l.b16 %v2986
    %v3084 = vunpack.c.h.b16 %v2986
    %v3085 = vunpack.c.l.b16 %v2987
    %v3086 = vunpack.c.h.b16 %v2987
    %v3087 = vunpack.c.l.b16 %v2988
    %v3088 = vunpack.c.h.b16 %v2988
    %v3089 = vunpack.c.l.b16 %v2989
    %v3090 = vunpack.c.h.b16 %v2989
    %v3091 = vunpack.c.l.b16 %v2990
    %v3092 = vunpack.c.h.b16 %v2990
    %v3093 = vunpack.c.l.b16 %v2991
    %v3094 = vunpack.c.h.b16 %v2991
    %v3095 = vunpack.c.l.b16 %v2992
    %v3096 = vunpack.c.h.b16 %v2992
    %v3097 = vunpack.c.l.b16 %v2993
    %v3098 = vunpack.c.h.b16 %v2993
    %v3099 = vunpack.c.l.b16 %v2994
    %v3100 = vunpack.c.h.b16 %v2994
    %v3101 = vunpack.c.l.b16 %v2995
    %v3102 = vunpack.c.h.b16 %v2995
    %v3103 = vunpack.c.l.b16 %v2996
    %v3104 = vunpack.c.h.b16 %v2996
    %v3105 = vunpack.c.l.b16 %v2997
    %v3106 = vunpack.c.h.b16 %v2997
    %v3107 = vunpack.c.l.b16 %v2998
    %v3108 = vunpack.c.h.b16 %v2998
    %v3109 = vunpack.c.l.b16 %v2999
    %v3110 = vunpack.c.h.b16 %v2999
    %v3111 = vunpack.c.l.b16 %v3000
    %v3112 = vunpack.c.h.b16 %v3000
    %v3113 = vunpack.c.l.b16 %v3001
    %v3114 = vunpack.c.h.b16 %v3001
    %v3115 = vunpack.c.l.b16 %v3002
    %v3116 = vunpack.c.h.b16 %v3002
    %v3117 = vunpack.c.l.b16 %v3003
    %v3118 = vunpack.c.h.b16 %v3003
    %v3119 = vunpack.c.l.b16 %v3004
    %v3120 = vunpack.c.h.b16 %v3004
    %v3121 = vunpack.c.l.b16 %v3005
    %v3122 = vunpack.c.h.b16 %v3005
    %v3123 = vunpack.c.l.b16 %v3006
    %v3124 = vunpack.c.h.b16 %v3006
    %v3125 = vpack.c.b16 %v3065, %v3061
    %v3126 = vpack.c.b16 %v3066, %v3062
    %v3127 = vpack.c.b16 %v3067, %v3063
    %v3128 = vpack.c.b16 %v3068, %v3064
    %v3129 = vpack.c.b16 %v3073, %v3069
    %v3130 = vpack.c.b16 %v3074, %v3070
    %v3131 = vpack.c.b16 %v3075, %v3071
    %v3132 = vpack.c.b16 %v3076, %v3072
    %v3133 = vpack.c.b16 %v3081, %v3077
    %v3134 = vpack.c.b16 %v3082, %v3078
    %v3135 = vpack.c.b16 %v3083, %v3079
    %v3136 = vpack.c.b16 %v3084, %v3080
    %v3137 = vpack.c.b16 %v3089, %v3085
    %v3138 = vpack.c.b16 %v3090, %v3086
    %v3139 = vpack.c.b16 %v3091, %v3087
    %v3140 = vpack.c.b16 %v3092, %v3088
    %v3141 = vpack.c.b16 %v3097, %v3093
    %v3142 = vpack.c.b16 %v3098, %v3094
    %v3143 = vpack.c.b16 %v3099, %v3095
    %v3144 = vpack.c.b16 %v3100, %v3096
    %v3145 = vpack.c.b16 %v3105, %v3101
    %v3146 = vpack.c.b16 %v3106, %v3102
    %v3147 = vpack.c.b16 %v3107, %v3103
    %v3148 = vpack.c.b16 %v3108, %v3104
    %v3149 = vpack.c.b16 %v3113, %v3109
    %v3150 = vpack.c.b16 %v3114, %v3110
    %v3151 = vpack.c.b16 %v3115, %v3111
    %v3152 = vpack.c.b16 %v3116, %v3112
    %v3153 = vpack.c.b16 %v3121, %v3117
    %v3154 = vpack.c.b16 %v3122, %v3118
    %v3155 = vpack.c.b16 %v3123, %v3119
    %v3156 = vpack.c.b16 %v3124, %v3120
    %3189 = vmatprep.subr.bf16.mxu0 %v3154
    %3190 = vmatpush1.bf16.msra.mxu0 %v3153
    %3191 = vmatprep.subr.bf16.mxu0 %v3150
    %3192 = vmatpush1.bf16.msra.mxu0 %v3149
    %3193 = vmatprep.subr.bf16.mxu0 %v3146
    %3194 = vmatpush1.bf16.msra.mxu0 %v3145
    %3195 = vmatprep.subr.bf16.mxu0 %v3142
    %3196 = vmatpush1.bf16.msra.mxu0 %v3141
    %3197 = vmatprep.subr.bf16.mxu0 %v3138
    %3198 = vmatpush1.bf16.msra.mxu0 %v3137
    %3199 = vmatprep.subr.bf16.mxu0 %v3134
    %3200 = vmatpush1.bf16.msra.mxu0 %v3133
    %3201 = vmatprep.subr.bf16.mxu0 %v3130
    %3202 = vmatpush1.bf16.msra.mxu0 %v3129
    %3203 = vmatprep.subr.bf16.mxu0 %v3126
    %3204 = vmatpush1.bf16.msra.mxu0 %v3125
    %3205 = vmatprep.subr.bf16.mxu0 0
    %3206 = vmatpush2.bf16.msra.mxu0 0
    %3207 = vmatprep.subr.bf16.mxu0 0
    %3208 = vmatpush2.bf16.msra.mxu0 0
    %3209 = vmatprep.subr.bf16.mxu0 0
    %3210 = vmatpush2.bf16.msra.mxu0 0
    %3211 = vmatprep.subr.bf16.mxu0 0
    %3212 = vmatpush2.bf16.msra.mxu0 0
    %3213 = vmatprep.subr.bf16.mxu0 0
    %3214 = vmatpush2.bf16.msra.mxu0 0
    %3215 = vmatprep.subr.bf16.mxu0 0
    %3216 = vmatpush2.bf16.msra.mxu0 0
    %3217 = vmatprep.subr.bf16.mxu0 0
    %3218 = vmatpush2.bf16.msra.mxu0 0
    %3219 = vmatprep.subr.bf16.mxu0 0
    %3220 = vmatpush2.bf16.msra.mxu0 0
    %3221 = vmatprep.mubr.bf16.mxu0 0
    %3222 = vmatmul.mubr.bf16.gmra.mxu0 %v2974
    %v3223 = vpop.f32.mrf.mxu0
    %v3224 = vadd.f32 %v3012, %v3223
    %v3225 = vpop.f32.mrf.mxu0
    %v3226 = vadd.f32 %v3016, %v3225
    %v3227 = vpop.f32.mrf.mxu0
    %v3228 = vadd.f32 %v3012, %v3227
    %v3229 = vpop.f32.mrf.mxu0
    %v3230 = vadd.f32 %v3016, %v3229
    %3231 = vdwg.mxu0
    %3232 = vmatprep.subr.bf16.mxu0 %v3156
    %3233 = vmatpush1.bf16.msra.mxu0 %v3155
    %3234 = vmatprep.subr.bf16.mxu0 %v3152
    %3235 = vmatpush1.bf16.msra.mxu0 %v3151
    %3236 = vmatprep.subr.bf16.mxu0 %v3148
    %3237 = vmatpush1.bf16.msra.mxu0 %v3147
    %3238 = vmatprep.subr.bf16.mxu0 %v3144
    %3239 = vmatpush1.bf16.msra.mxu0 %v3143
    %3240 = vmatprep.subr.bf16.mxu0 %v3140
    %3241 = vmatpush1.bf16.msra.mxu0 %v3139
    %3242 = vmatprep.subr.bf16.mxu0 %v3136
    %3243 = vmatpush1.bf16.msra.mxu0 %v3135
    %3244 = vmatprep.subr.bf16.mxu0 %v3132
    %3245 = vmatpush1.bf16.msra.mxu0 %v3131
    %3246 = vmatprep.subr.bf16.mxu0 %v3128
    %3247 = vmatpush1.bf16.msra.mxu0 %v3127
    %3248 = vmatprep.subr.bf16.mxu0 0
    %3249 = vmatpush2.bf16.msra.mxu0 0
    %3250 = vmatprep.subr.bf16.mxu0 0
    %3251 = vmatpush2.bf16.msra.mxu0 0
    %3252 = vmatprep.subr.bf16.mxu0 0
    %3253 = vmatpush2.bf16.msra.mxu0 0
    %3254 = vmatprep.subr.bf16.mxu0 0
    %3255 = vmatpush2.bf16.msra.mxu0 0
    %3256 = vmatprep.subr.bf16.mxu0 0
    %3257 = vmatpush2.bf16.msra.mxu0 0
    %3258 = vmatprep.subr.bf16.mxu0 0
    %3259 = vmatpush2.bf16.msra.mxu0 0
    %3260 = vmatprep.subr.bf16.mxu0 0
    %3261 = vmatpush2.bf16.msra.mxu0 0
    %3262 = vmatprep.subr.bf16.mxu0 0
    %3263 = vmatpush2.bf16.msra.mxu0 0
    %3264 = vmatprep.mubr.bf16.mxu0 0
    %3265 = vmatmul.mubr.bf16.gmra.mxu0 %v2974
    %v3266 = vpop.f32.mrf.mxu0
    %v3267 = vadd.f32 %v3020, %v3266
    %v3268 = vpop.f32.mrf.mxu0
    %v3269 = vadd.f32 %v3024, %v3268
    %v3270 = vpop.f32.mrf.mxu0
    %v3271 = vadd.f32 %v3020, %v3270
    %v3272 = vpop.f32.mrf.mxu0
    %v3273 = vadd.f32 %v3024, %v3272
    %3274 = vdwg.mxu0
    %v3275 = vmul.f32 %v3224, 0.5
    %v3276 = vmul.f32 %v3226, 0.5
    %v3277 = vmul.f32 %v3267, 0.5
    %v3278 = vmul.f32 %v3269, 0.5
    %v3279 = vmul.f32 %v3228, 0.5
    %v3280 = vmul.f32 %v3230, 0.5
    %v3281 = vmul.f32 %v3271, 0.5
    %v3282 = vmul.f32 %v3273, 0.5
    %v3283 = vmul.f32 %v3224, 0.044715
    %v3284 = vmul.f32 %v3226, 0.044715
    %v3285 = vmul.f32 %v3267, 0.044715
    %v3286 = vmul.f32 %v3269, 0.044715
    %v3287 = vmul.f32 %v3228, 0.044715
    %v3288 = vmul.f32 %v3230, 0.044715
    %v3289 = vmul.f32 %v3271, 0.044715
    %v3290 = vmul.f32 %v3273, 0.044715
    %v3291 = vmul.f32 %v3283, %v3224
    %v3292 = vmul.f32 %v3284, %v3226
    %v3293 = vmul.f32 %v3285, %v3267
    %v3294 = vmul.f32 %v3286, %v3269
    %v3295 = vmul.f32 %v3287, %v3228
    %v3296 = vmul.f32 %v3288, %v3230
    %v3297 = vmul.f32 %v3289, %v3271
    %v3298 = vmul.f32 %v3290, %v3273
    %v3299 = vmul.f32 %v3291, %v3224
    %v3300 = vmul.f32 %v3292, %v3226
    %v3301 = vmul.f32 %v3293, %v3267
    %v3302 = vmul.f32 %v3294, %v3269
    %v3303 = vmul.f32 %v3295, %v3228
    %v3304 = vmul.f32 %v3296, %v3230
    %v3305 = vmul.f32 %v3297, %v3271
    %v3306 = vmul.f32 %v3298, %v3273
    %v3307 = vadd.f32 %v3224, %v3299
    %v3308 = vadd.f32 %v3226, %v3300
    %v3309 = vadd.f32 %v3267, %v3301
    %v3310 = vadd.f32 %v3269, %v3302
    %v3311 = vadd.f32 %v3228, %v3303
    %v3312 = vadd.f32 %v3230, %v3304
    %v3313 = vadd.f32 %v3271, %v3305
    %v3314 = vadd.f32 %v3273, %v3306
    %v3315 = vmul.f32 %v3307, 0.7978846
    %v3316 = vmul.f32 %v3308, 0.7978846
    %v3317 = vmul.f32 %v3309, 0.7978846
    %v3318 = vmul.f32 %v3310, 0.7978846
    %v3319 = vmul.f32 %v3311, 0.7978846
    %v3320 = vmul.f32 %v3312, 0.7978846
    %v3321 = vmul.f32 %v3313, 0.7978846
    %v3322 = vmul.f32 %v3314, 0.7978846
    %v3323 = vtanh.pop %v3315
    %v3324 = vtanh.pop %v3316
    %v3325 = vtanh.pop %v3317
    %v3326 = vtanh.pop %v3318
    %v3327 = vtanh.pop %v3319
    %v3328 = vtanh.pop %v3320
    %v3329 = vtanh.pop %v3321
    %v3330 = vtanh.pop %v3322
    %v3331 = vadd.f32 %v3323, 1.0
    %v3332 = vadd.f32 %v3324, 1.0
    %v3333 = vadd.f32 %v3325, 1.0
    %v3334 = vadd.f32 %v3326, 1.0
    %v3335 = vadd.f32 %v3327, 1.0
    %v3336 = vadd.f32 %v3328, 1.0
    %v3337 = vadd.f32 %v3329, 1.0
    %v3338 = vadd.f32 %v3330, 1.0
    %v3339 = vmul.f32 %v3275, %v3331
    %v3340 = vmul.f32 %v3276, %v3332
    %v3341 = vmul.f32 %v3277, %v3333
    %v3342 = vmul.f32 %v3278, %v3334
    %v3343 = vmul.f32 %v3279, %v3335
    %v3344 = vmul.f32 %v3280, %v3336
    %v3345 = vmul.f32 %v3281, %v3337
    %v3346 = vmul.f32 %v3282, %v3338
    %v3347 = vpack.c.bf16 %v3343, %v3339
    %v3348 = vpack.c.bf16 %v3344, %v3340
    %v3349 = vpack.c.bf16 %v3345, %v3341
    %v3350 = vpack.c.bf16 %v3346, %v3342
    %v3351 = vld [vmem:[#allocation22] sm:$0xf]
    %v3352 = vld [vmem:[#allocation22 + $0x4] sm:$0xf]
    %v3353 = vld [vmem:[#allocation22 + $0x8] sm:$0xf]
    %v3354 = vld [vmem:[#allocation22 + $0xc] sm:$0xf]
    %v3355 = vld [vmem:[#allocation22 + $0x10] sm:$0xf]
    %v3356 = vld [vmem:[#allocation22 + $0x14] sm:$0xf]
    %v3357 = vld [vmem:[#allocation22 + $0x18] sm:$0xf]
    %v3358 = vld [vmem:[#allocation22 + $0x1c] sm:$0xf]
    %v3359 = vld [vmem:[#allocation22 + $0x20] sm:$0xf]
    %v3360 = vld [vmem:[#allocation22 + $0x24] sm:$0xf]
    %v3361 = vld [vmem:[#allocation22 + $0x28] sm:$0xf]
    %v3362 = vld [vmem:[#allocation22 + $0x2c] sm:$0xf]
    %v3363 = vld [vmem:[#allocation22 + $0x30] sm:$0xf]
    %v3364 = vld [vmem:[#allocation22 + $0x34] sm:$0xf]
    %v3365 = vld [vmem:[#allocation22 + $0x38] sm:$0xf]
    %v3366 = vld [vmem:[#allocation22 + $0x3c] sm:$0xf]
    %v3367 = vld [vmem:[#allocation22 + $0x40] sm:$0xf]
    %v3368 = vld [vmem:[#allocation22 + $0x44] sm:$0xf]
    %v3369 = vld [vmem:[#allocation22 + $0x48] sm:$0xf]
    %v3370 = vld [vmem:[#allocation22 + $0x4c] sm:$0xf]
    %v3371 = vld [vmem:[#allocation22 + $0x50] sm:$0xf]
    %v3372 = vld [vmem:[#allocation22 + $0x54] sm:$0xf]
    %v3373 = vld [vmem:[#allocation22 + $0x58] sm:$0xf]
    %v3374 = vld [vmem:[#allocation22 + $0x5c] sm:$0xf]
    %v3375 = vld [vmem:[#allocation22 + $0x60] sm:$0xf]
    %v3376 = vld [vmem:[#allocation22 + $0x64] sm:$0xf]
    %v3377 = vld [vmem:[#allocation22 + $0x68] sm:$0xf]
    %v3378 = vld [vmem:[#allocation22 + $0x6c] sm:$0xf]
    %v3379 = vld [vmem:[#allocation22 + $0x70] sm:$0xf]
    %v3380 = vld [vmem:[#allocation22 + $0x74] sm:$0xf]
    %v3381 = vld [vmem:[#allocation22 + $0x78] sm:$0xf]
    %v3382 = vld [vmem:[#allocation22 + $0x7c] sm:$0xf]
    %v3383 = vld [vmem:[#allocation22 + $0x80] sm:$0xf]
    %v3384 = vld [vmem:[#allocation22 + $0x84] sm:$0xf]
    %v3385 = vld [vmem:[#allocation22 + $0x88] sm:$0xf]
    %v3386 = vld [vmem:[#allocation22 + $0x8c] sm:$0xf]
    %v3387 = vld [vmem:[#allocation22 + $0x90] sm:$0xf]
    %v3388 = vld [vmem:[#allocation22 + $0x94] sm:$0xf]
    %v3389 = vld [vmem:[#allocation22 + $0x98] sm:$0xf]
    %v3390 = vld [vmem:[#allocation22 + $0x9c] sm:$0xf]
    %v3391 = vld [vmem:[#allocation22 + $0xa0] sm:$0xf]
    %v3392 = vld [vmem:[#allocation22 + $0xa4] sm:$0xf]
    %v3393 = vld [vmem:[#allocation22 + $0xa8] sm:$0xf]
    %v3394 = vld [vmem:[#allocation22 + $0xac] sm:$0xf]
    %v3395 = vld [vmem:[#allocation22 + $0xb0] sm:$0xf]
    %v3396 = vld [vmem:[#allocation22 + $0xb4] sm:$0xf]
    %v3397 = vld [vmem:[#allocation22 + $0xb8] sm:$0xf]
    %v3398 = vld [vmem:[#allocation22 + $0xbc] sm:$0xf]
    %v3399 = vld [vmem:[#allocation22 + $0xc0] sm:$0xf]
    %v3400 = vld [vmem:[#allocation22 + $0xc4] sm:$0xf]
    %v3401 = vld [vmem:[#allocation22 + $0xc8] sm:$0xf]
    %v3402 = vld [vmem:[#allocation22 + $0xcc] sm:$0xf]
    %v3403 = vld [vmem:[#allocation22 + $0xd0] sm:$0xf]
    %v3404 = vld [vmem:[#allocation22 + $0xd4] sm:$0xf]
    %v3405 = vld [vmem:[#allocation22 + $0xd8] sm:$0xf]
    %v3406 = vld [vmem:[#allocation22 + $0xdc] sm:$0xf]
    %v3407 = vld [vmem:[#allocation22 + $0xe0] sm:$0xf]
    %v3408 = vld [vmem:[#allocation22 + $0xe4] sm:$0xf]
    %v3409 = vld [vmem:[#allocation22 + $0xe8] sm:$0xf]
    %v3410 = vld [vmem:[#allocation22 + $0xec] sm:$0xf]
    %v3411 = vld [vmem:[#allocation22 + $0xf0] sm:$0xf]
    %v3412 = vld [vmem:[#allocation22 + $0xf4] sm:$0xf]
    %v3413 = vld [vmem:[#allocation22 + $0xf8] sm:$0xf]
    %v3414 = vld [vmem:[#allocation22 + $0xfc] sm:$0xf]
    %v3415 = vld [vmem:[%s23] sm:$0x1]
    %v3417 = vlaneseq
    %v3418 = vshrl.u32 %v3417, 7
    %v3419 = vsub.s32 0, %v3418
    %v3420 = vrot.slane %v3415, %v3419
    %v3486 = vunpack.c.l.b16 %v3351
    %v3487 = vunpack.c.l.b16 %v3352
    %v3488 = vunpack.c.l.b16 %v3353
    %v3489 = vunpack.c.l.b16 %v3354
    %v3490 = vunpack.c.l.b16 %v3355
    %v3491 = vunpack.c.l.b16 %v3356
    %v3492 = vunpack.c.l.b16 %v3357
    %v3493 = vunpack.c.l.b16 %v3358
    %v3494 = vunpack.c.l.b16 %v3359
    %v3495 = vunpack.c.l.b16 %v3360
    %v3496 = vunpack.c.l.b16 %v3361
    %v3497 = vunpack.c.l.b16 %v3362
    %v3498 = vunpack.c.l.b16 %v3363
    %v3499 = vunpack.c.l.b16 %v3364
    %v3500 = vunpack.c.l.b16 %v3365
    %v3501 = vunpack.c.l.b16 %v3366
    %v3502 = vunpack.c.l.b16 %v3367
    %v3503 = vunpack.c.l.b16 %v3368
    %v3504 = vunpack.c.l.b16 %v3369
    %v3505 = vunpack.c.l.b16 %v3370
    %v3506 = vunpack.c.l.b16 %v3371
    %v3507 = vunpack.c.l.b16 %v3372
    %v3508 = vunpack.c.l.b16 %v3373
    %v3509 = vunpack.c.l.b16 %v3374
    %v3510 = vunpack.c.l.b16 %v3375
    %v3511 = vunpack.c.l.b16 %v3376
    %v3512 = vunpack.c.l.b16 %v3377
    %v3513 = vunpack.c.l.b16 %v3378
    %v3514 = vunpack.c.l.b16 %v3379
    %v3515 = vunpack.c.l.b16 %v3380
    %v3516 = vunpack.c.l.b16 %v3381
    %v3517 = vunpack.c.l.b16 %v3382
    %v3518 = vunpack.c.l.b16 %v3383
    %v3519 = vunpack.c.l.b16 %v3384
    %v3520 = vunpack.c.l.b16 %v3385
    %v3521 = vunpack.c.l.b16 %v3386
    %v3522 = vunpack.c.l.b16 %v3387
    %v3523 = vunpack.c.l.b16 %v3388
    %v3524 = vunpack.c.l.b16 %v3389
    %v3525 = vunpack.c.l.b16 %v3390
    %v3526 = vunpack.c.l.b16 %v3391
    %v3527 = vunpack.c.l.b16 %v3392
    %v3528 = vunpack.c.l.b16 %v3393
    %v3529 = vunpack.c.l.b16 %v3394
    %v3530 = vunpack.c.l.b16 %v3395
    %v3531 = vunpack.c.l.b16 %v3396
    %v3532 = vunpack.c.l.b16 %v3397
    %v3533 = vunpack.c.l.b16 %v3398
    %v3534 = vunpack.c.l.b16 %v3399
    %v3535 = vunpack.c.l.b16 %v3400
    %v3536 = vunpack.c.l.b16 %v3401
    %v3537 = vunpack.c.l.b16 %v3402
    %v3538 = vunpack.c.l.b16 %v3403
    %v3539 = vunpack.c.l.b16 %v3404
    %v3540 = vunpack.c.l.b16 %v3405
    %v3541 = vunpack.c.l.b16 %v3406
    %v3542 = vunpack.c.l.b16 %v3407
    %v3543 = vunpack.c.l.b16 %v3408
    %v3544 = vunpack.c.l.b16 %v3409
    %v3545 = vunpack.c.l.b16 %v3410
    %v3546 = vunpack.c.l.b16 %v3411
    %v3547 = vunpack.c.l.b16 %v3412
    %v3548 = vunpack.c.l.b16 %v3413
    %v3549 = vunpack.c.l.b16 %v3414
    %v3550 = vpack.c.b16 %v3487, %v3486
    %v3551 = vpack.c.b16 %v3489, %v3488
    %v3552 = vpack.c.b16 %v3491, %v3490
    %v3553 = vpack.c.b16 %v3493, %v3492
    %v3554 = vpack.c.b16 %v3495, %v3494
    %v3555 = vpack.c.b16 %v3497, %v3496
    %v3556 = vpack.c.b16 %v3499, %v3498
    %v3557 = vpack.c.b16 %v3501, %v3500
    %v3558 = vpack.c.b16 %v3503, %v3502
    %v3559 = vpack.c.b16 %v3505, %v3504
    %v3560 = vpack.c.b16 %v3507, %v3506
    %v3561 = vpack.c.b16 %v3509, %v3508
    %v3562 = vpack.c.b16 %v3511, %v3510
    %v3563 = vpack.c.b16 %v3513, %v3512
    %v3564 = vpack.c.b16 %v3515, %v3514
    %v3565 = vpack.c.b16 %v3517, %v3516
    %v3566 = vpack.c.b16 %v3519, %v3518
    %v3567 = vpack.c.b16 %v3521, %v3520
    %v3568 = vpack.c.b16 %v3523, %v3522
    %v3569 = vpack.c.b16 %v3525, %v3524
    %v3570 = vpack.c.b16 %v3527, %v3526
    %v3571 = vpack.c.b16 %v3529, %v3528
    %v3572 = vpack.c.b16 %v3531, %v3530
    %v3573 = vpack.c.b16 %v3533, %v3532
    %v3574 = vpack.c.b16 %v3535, %v3534
    %v3575 = vpack.c.b16 %v3537, %v3536
    %v3576 = vpack.c.b16 %v3539, %v3538
    %v3577 = vpack.c.b16 %v3541, %v3540
    %v3578 = vpack.c.b16 %v3543, %v3542
    %v3579 = vpack.c.b16 %v3545, %v3544
    %v3580 = vpack.c.b16 %v3547, %v3546
    %v3581 = vpack.c.b16 %v3549, %v3548
    %3614 = vmatprep.subr.bf16.mxu0 0
    %3615 = vmatpush1.bf16.msra.mxu0 %v3557
    %3616 = vmatprep.subr.bf16.mxu0 0
    %3617 = vmatpush1.bf16.msra.mxu0 %v3556
    %3618 = vmatprep.subr.bf16.mxu0 0
    %3619 = vmatpush1.bf16.msra.mxu0 %v3555
    %3620 = vmatprep.subr.bf16.mxu0 0
    %3621 = vmatpush1.bf16.msra.mxu0 %v3554
    %3622 = vmatprep.subr.bf16.mxu0 0
    %3623 = vmatpush1.bf16.msra.mxu0 %v3553
    %3624 = vmatprep.subr.bf16.mxu0 0
    %3625 = vmatpush1.bf16.msra.mxu0 %v3552
    %3626 = vmatprep.subr.bf16.mxu0 0
    %3627 = vmatpush1.bf16.msra.mxu0 %v3551
    %3628 = vmatprep.subr.bf16.mxu0 0
    %3629 = vmatpush1.bf16.msra.mxu0 %v3550
    %3630 = vmatprep.subr.bf16.mxu0 0
    %3631 = vmatpush2.bf16.msra.mxu0 %v3565
    %3632 = vmatprep.subr.bf16.mxu0 0
    %3633 = vmatpush2.bf16.msra.mxu0 %v3564
    %3634 = vmatprep.subr.bf16.mxu0 0
    %3635 = vmatpush2.bf16.msra.mxu0 %v3563
    %3636 = vmatprep.subr.bf16.mxu0 0
    %3637 = vmatpush2.bf16.msra.mxu0 %v3562
    %3638 = vmatprep.subr.bf16.mxu0 0
    %3639 = vmatpush2.bf16.msra.mxu0 %v3561
    %3640 = vmatprep.subr.bf16.mxu0 0
    %3641 = vmatpush2.bf16.msra.mxu0 %v3560
    %3642 = vmatprep.subr.bf16.mxu0 0
    %3643 = vmatpush2.bf16.msra.mxu0 %v3559
    %3644 = vmatprep.subr.bf16.mxu0 0
    %3645 = vmatpush2.bf16.msra.mxu0 %v3558
    %3646 = vmatprep.mubr.bf16.mxu0 %v3348
    %3647 = vmatmul.mubr.bf16.gmra.mxu0 %v3347
    %v3648 = vpop.f32.mrf.mxu0
    %v3649 = vadd.f32 %v3420, %v3648
    %v3650 = vpop.f32.mrf.mxu0
    %v3651 = vpop.f32.mrf.mxu0
    %v3652 = vadd.f32 %v3420, %v3651
    %v3653 = vpop.f32.mrf.mxu0
    %3654 = vdwg.mxu0
    %3655 = vmatprep.subr.bf16.mxu0 0
    %3656 = vmatpush1.bf16.msra.mxu0 %v3573
    %3657 = vmatprep.subr.bf16.mxu0 0
    %3658 = vmatpush1.bf16.msra.mxu0 %v3572
    %3659 = vmatprep.subr.bf16.mxu0 0
    %3660 = vmatpush1.bf16.msra.mxu0 %v3571
    %3661 = vmatprep.subr.bf16.mxu0 0
    %3662 = vmatpush1.bf16.msra.mxu0 %v3570
    %3663 = vmatprep.subr.bf16.mxu0 0
    %3664 = vmatpush1.bf16.msra.mxu0 %v3569
    %3665 = vmatprep.subr.bf16.mxu0 0
    %3666 = vmatpush1.bf16.msra.mxu0 %v3568
    %3667 = vmatprep.subr.bf16.mxu0 0
    %3668 = vmatpush1.bf16.msra.mxu0 %v3567
    %3669 = vmatprep.subr.bf16.mxu0 0
    %3670 = vmatpush1.bf16.msra.mxu0 %v3566
    %3671 = vmatprep.subr.bf16.mxu0 0
    %3672 = vmatpush2.bf16.msra.mxu0 %v3581
    %3673 = vmatprep.subr.bf16.mxu0 0
    %3674 = vmatpush2.bf16.msra.mxu0 %v3580
    %3675 = vmatprep.subr.bf16.mxu0 0
    %3676 = vmatpush2.bf16.msra.mxu0 %v3579
    %3677 = vmatprep.subr.bf16.mxu0 0
    %3678 = vmatpush2.bf16.msra.mxu0 %v3578
    %3679 = vmatprep.subr.bf16.mxu0 0
    %3680 = vmatpush2.bf16.msra.mxu0 %v3577
    %3681 = vmatprep.subr.bf16.mxu0 0
    %3682 = vmatpush2.bf16.msra.mxu0 %v3576
    %3683 = vmatprep.subr.bf16.mxu0 0
    %3684 = vmatpush2.bf16.msra.mxu0 %v3575
    %3685 = vmatprep.subr.bf16.mxu0 0
    %3686 = vmatpush2.bf16.msra.mxu0 %v3574
    %3687 = vmatprep.mubr.bf16.mxu0 %v3350
    %3688 = vmatmul.mubr.bf16.gmra.mxu0 %v3349
    %v3689 = vpop.f32.mrf.mxu0
    %v3690 = vadd.f32 %v3649, %v3689
    %v3691 = vpop.f32.mrf.mxu0
    %v3692 = vpop.f32.mrf.mxu0
    %v3693 = vadd.f32 %v3652, %v3692
    %v3694 = vpop.f32.mrf.mxu0
    %3695 = vdwg.mxu0
    %v3696 = vadd.f32 %v2932, %v3690
    %v3697 = vadd.f32 %v2933, %v3693
    %v3698 = vpack.c.bf16 %v3696, %v3696
    %v3699 = vpack.c.bf16 %v3697, %v3697
    %3700 = vst [vmem:[#allocation23] sm:$0xf] %v3698
    %3701 = vst [vmem:[#allocation23 + $0x4] sm:$0xf] %v3699
    // Predicated region
    $region150: #{tpu_custom_call.1} parent=1 // pred_check
      _
    $region151: #{tpu_custom_call.1} parent=1 // pred_check_branch
      %3703 = sbr.rel (0) target = $region153
    $region152: #{tpu_custom_call.1} parent=1 // pred_region
      %s3705 = ssub.s32 128, 128
      %3706 = vsyncadd [#allocation4], %s3705
      %s3707 = sshll.u32 [#allocation23], 4
      %s3708 = int_to_ptr.vmem [resolvable:$true] %s3707
      %3713 = dma.vmem_to_hbm [thread:$0]  %s3708, 128, %s24, [#allocation4], 64, 64, 4
    $region153: #{tpu_custom_call.1} parent=1 // pred_fallthru
      _
    // Predicated region
    $region154: #{tpu_custom_call.1} parent=1 // pred_check
      _
    $region155: #{tpu_custom_call.1} parent=1 // pred_check_branch
      %3715 = sbr.rel (0) target = $region157
    $region156: #{tpu_custom_call.1} parent=1 // pred_region
      %3716 = dma.done [#allocation4], 128
    $region157: #{tpu_custom_call.1} parent=1 // pred_fallthru
      _
    %3717 = vsyncpa [#allocation3], 1
    %3718 = vsyncpa [#allocation6], 1
    %3719 = vsyncpa [#allocation9], 1
    %3720 = vsyncpa [#allocation12], 1
    %3721 = vsyncpa [#allocation15], 1
    %3722 = vsyncpa [#allocation18], 1
    %3723 = vsyncpa [#allocation21], 1
    %3724 = vsyncpa [#allocation4], 1

</llo_original>
